<compile_context>
chip_gen: v5e
topology: v5e:2x2
jax: 0.10.0
libtpu: 0.0.40
codegen_flags: <defaults>
</compile_context>

<pallas_src>
import functools

import jax
import jax.numpy as jnp
from jax.experimental import pallas as pl
from jax.experimental.pallas import tpu as pltpu


# -----------------------------------------------------------------------------
# Small helpers
# -----------------------------------------------------------------------------
def _rup(x, m):
    return ((x + m - 1) // m) * m


def _choose_tile(dim, prefs):
    """Largest preferred tile that evenly divides dim rounded up to 128."""
    dr = _rup(dim, 128)
    for t in prefs:
        if dr % t == 0:
            return t
    return 128


# -----------------------------------------------------------------------------
# Kernel 1: tiled matmul (im2col conv) + fused bias / LeakyReLU / BN statistics
# -----------------------------------------------------------------------------
def _conv_kernel(*refs, has_bias, fuse_leaky, emit_stats, slope):
    a_ref, b_ref = refs[0], refs[1]
    pos = 2
    bias_ref = refs[pos] if has_bias else None
    pos += int(has_bias)
    o_ref = refs[pos]
    stats_ref = refs[pos + 1] if emit_stats else None

    k = pl.program_id(2)

    @pl.when(k == 0)
    def _init():
        # Fold the bias into the accumulator init (zeros for bias=False layers).
        if has_bias:
            o_ref[...] = jnp.broadcast_to(bias_ref[...], o_ref.shape)
        else:
            o_ref[...] = jnp.zeros_like(o_ref)

    # bf16 x bf16 -> f32, accumulated directly into the resident output block.
    o_ref[...] += jnp.dot(a_ref[...], b_ref[...],
                          preferred_element_type=jnp.float32)

    @pl.when(k == pl.num_programs(2) - 1)
    def _fini():
        y = o_ref[...]
        if fuse_leaky:
            y = jnp.maximum(y, slope * y)          # LeakyReLU (0 < slope < 1)
            o_ref[...] = y
        if emit_stats:
            # Per-channel partial sums for BatchNorm (padded rows are zero and
            # contribute nothing; the wrapper divides by the true M).
            s1 = jnp.sum(y, axis=0, keepdims=True)        # (1, TN)
            s2 = jnp.sum(y * y, axis=0, keepdims=True)    # (1, TN)
            stats_ref[...] = jnp.concatenate([s1, s2], axis=0)[None]


def conv_layer(patches, w_mat, bias, *, fuse_leaky, emit_stats, slope=0.2):
    """patches: [M, K] bf16, w_mat: [K, C] bf16 -> (y_padded [Mp, Cp] f32, stats|None)."""
    M, K = patches.shape
    _, C = w_mat.shape
    TM = _choose_tile(M, (512, 256, 128))
    TK = _choose_tile(K, (512, 256, 128))
    TN = _choose_tile(C, (256, 128))
    Mp, Kp, Cp = _rup(M, TM), _rup(K, TK), _rup(C, TN)
    gm, gn, gk = Mp // TM, Cp // TN, Kp // TK

    a = jnp.pad(patches, ((0, Mp - M), (0, Kp - K)))
    b = jnp.pad(w_mat, ((0, Kp - K), (0, Cp - C)))

    inputs = [a, b]
    in_specs = [pl.BlockSpec((TM, TK), lambda i, j, k: (i, k)),
                pl.BlockSpec((TK, TN), lambda i, j, k: (k, j))]
    has_bias = bias is not None
    if has_bias:
        bias_p = jnp.pad(bias.astype(jnp.float32), (0, Cp - C)).reshape(1, Cp)
        inputs.append(bias_p)
        in_specs.append(pl.BlockSpec((1, TN), lambda i, j, k: (0, j)))

    out_spec_y = pl.BlockSpec((TM, TN), lambda i, j, k: (i, j))
    if emit_stats:
        out_shape = (jax.ShapeDtypeStruct((Mp, Cp), jnp.float32),
                     jax.ShapeDtypeStruct((gm, 2, Cp), jnp.float32))
        out_specs = (out_spec_y,
                     pl.BlockSpec((1, 2, TN), lambda i, j, k: (i, 0, j)))
    else:
        out_shape = jax.ShapeDtypeStruct((Mp, Cp), jnp.float32)
        out_specs = out_spec_y

    kernel = functools.partial(_conv_kernel, has_bias=has_bias,
                               fuse_leaky=fuse_leaky, emit_stats=emit_stats,
                               slope=slope)
    res = pl.pallas_call(
        kernel,
        out_shape=out_shape,
        grid_spec=pltpu.PrefetchScalarGridSpec(
            num_scalar_prefetch=0,
            grid=(gm, gn, gk),
            in_specs=in_specs,
            out_specs=out_specs,
        ),
        compiler_params=pltpu.CompilerParams(
            dimension_semantics=("parallel", "parallel", "arbitrary")),
    )(*inputs)
    if emit_stats:
        return res[0], res[1]
    return res, None


# -----------------------------------------------------------------------------
# Kernel 2: BatchNorm affine (precomputed scale/shift) + LeakyReLU, tiled over M, C
# -----------------------------------------------------------------------------
def _bn_apply_kernel(y_ref, scale_ref, shift_ref, o_ref, *, slope):
    z = y_ref[...] * scale_ref[...] + shift_ref[...]
    o_ref[...] = jnp.maximum(z, slope * z)


def bn_apply(y_pad, scale_p, shift_p, *, slope=0.2):
    Mp, Cp = y_pad.shape
    TM = _choose_tile(Mp, (512, 256, 128))
    TN = _choose_tile(Cp, (256, 128))
    return pl.pallas_call(
        functools.partial(_bn_apply_kernel, slope=slope),
        out_shape=jax.ShapeDtypeStruct((Mp, Cp), jnp.float32),
        grid_spec=pltpu.PrefetchScalarGridSpec(
            num_scalar_prefetch=0,
            grid=(Mp // TM, Cp // TN),
            in_specs=[pl.BlockSpec((TM, TN), lambda i, j: (i, j)),
                      pl.BlockSpec((1, TN), lambda i, j: (0, j)),
                      pl.BlockSpec((1, TN), lambda i, j: (0, j))],
            out_specs=pl.BlockSpec((TM, TN), lambda i, j: (i, j)),
        ),
        compiler_params=pltpu.CompilerParams(
            dimension_semantics=("parallel", "parallel")),
    )(y_pad, scale_p, shift_p)


# -----------------------------------------------------------------------------
# Glue: im2col (bf16) + parameter setup + forward
# -----------------------------------------------------------------------------
def im2col(x_nhwc, kh, kw, stride, pad, dtype=jnp.bfloat16):
    N, H, W, C = x_nhwc.shape
    xp = jnp.pad(x_nhwc.astype(dtype), ((0, 0), (pad, pad), (pad, pad), (0, 0)))
    Hout = (H + 2 * pad - kh) // stride + 1
    Wout = (W + 2 * pad - kw) // stride + 1
    cols = [xp[:, i:i + stride * Hout:stride, j:j + stride * Wout:stride, :]
            for i in range(kh) for j in range(kw)]
    p = jnp.stack(cols, axis=3)                       # [N, Ho, Wo, kh*kw, C]
    p = p.reshape(N, Hout, Wout, kh * kw * C)
    return p.reshape(N * Hout * Wout, kh * kw * C), Hout, Wout


def init_params(key, input_nc, ndf=8, n_layer=3):
    # Mirror NLayerDiscriminator.__init__ layer structure (kw=4, padw=1).
    specs = [(input_nc, ndf, 2, True, False)]          # conv + bias + LeakyReLU
    nf = ndf
    for _ in range(1, n_layer):
        nf_prev, nf = nf, min(nf * 2, 512)
        specs.append((nf_prev, nf, 2, False, True))    # conv(no bias) + BN + LeakyReLU
    nf_prev, nf = nf, min(nf * 2, 512)
    specs.append((nf_prev, nf, 1, False, True))        # conv(no bias) + BN + LeakyReLU
    specs.append((nf, 1, 1, True, False))              # conv + bias (no activation)

    params = []
    for li, (cin, cout, stride, has_bias, has_bn) in enumerate(specs):
        key, k1, k2 = jax.random.split(key, 3)
        w = jax.random.normal(k1, (cout, cin, 4, 4), jnp.float32) / jnp.sqrt(cin * 16.0)
        # [Cout, Cin, kh, kw] -> [kh, kw, Cin, Cout] -> [kh*kw*Cin, Cout] (im2col K order)
        w_mat = jnp.transpose(w, (2, 3, 1, 0)).reshape(16 * cin, cout)
        # bf16 weights for the MXU path; keep the tiny final head in f32 (plain dot).
        w_mat = w_mat.astype(jnp.float32 if cout == 1 else jnp.bfloat16)
        b = (jax.random.normal(k2, (cout,), jnp.float32) * 0.01) if has_bias else None
        bn = ((jnp.ones((cout,), jnp.float32), jnp.zeros((cout,), jnp.float32))
              if has_bn else None)
        params.append(dict(w=w_mat, b=b, stride=stride, bn=bn,
                           fuse_leaky=(li == 0)))
    return params


def nlayer_discriminator_forward(x_nchw, params):
    """Returns res[1:]: list of intermediate outputs of every sub-model (NCHW)."""
    cur = jnp.transpose(x_nchw, (0, 2, 3, 1))          # NCHW -> NHWC for im2col glue
    results = []
    for p in params:
        N = cur.shape[0]
        patches, Ho, Wo = im2col(cur, 4, 4, p['stride'], 1)
        M = patches.shape[0]
        C = p['w'].shape[1]

        if C == 1:
            # Tiny 1-channel head: MXU padding 1 -> 128 lanes would waste >99% of the
            # work; a plain dot is faster and skips the pallas_call overhead.
            out = jnp.dot(patches.astype(jnp.float32), p['w']) + p['b']
        else:
            y_pad, stats = conv_layer(patches, p['w'], p['b'],
                                      fuse_leaky=p['fuse_leaky'],
                                      emit_stats=p['bn'] is not None)
            if p['bn'] is not None:
                gamma, beta = p['bn']
                s = jnp.sum(stats, axis=0)              # (2, Cp) tiny reduction
                mean = s[0, :C] / M
                var = jnp.maximum(s[1, :C] / M - mean * mean, 0.0)
                scale = gamma * jax.lax.rsqrt(var + 1e-5)
                shift = beta - mean * scale
                Cp = y_pad.shape[1]
                y_pad = bn_apply(y_pad,
                                 jnp.pad(scale, (0, Cp - C)).reshape(1, Cp),
                                 jnp.pad(shift, (0, Cp - C)).reshape(1, Cp))
            out = y_pad[:M, :C]

        out_nhwc = out.reshape(N, Ho, Wo, C)
        results.append(jnp.transpose(out_nhwc, (0, 3, 1, 2)))   # back to NCHW
        cur = out_nhwc
    return results


# -----------------------------------------------------------------------------
if __name__ == "__main__":
    key = jax.random.PRNGKey(0)
    key, kx = jax.random.split(key)

    # Small config: input_nc=4, ndf=8, n_layer=3, batch=2, spatial=32
    # (spatial >= 32 is required so the stride-1 tail convs have valid output size).
    N, C_IN, H, W = 2, 4, 32, 32
    x = jax.random.normal(kx, (N, C_IN, H, W), jnp.float32)

    params = init_params(key, input_nc=C_IN, ndf=8, n_layer=3)

    fwd = jax.jit(lambda inp: nlayer_discriminator_forward(inp, params))
    outs = fwd(x)
    for o in outs:
        jax.block_until_ready(o)

    # Expected shapes (NCHW): (2,8,16,16), (2,16,8,8), (2,32,4,4), (2,64,3,3), (2,1,2,2)
    assert [tuple(o.shape) for o in outs] == [
        (2, 8, 16, 16), (2, 16, 8, 8), (2, 32, 4, 4), (2, 64, 3, 3), (2, 1, 2, 2)]
    assert all(bool(jnp.all(jnp.isfinite(o))) for o in outs)
    print("KERNEL_OK")
</pallas_src>

<mosaic_0001>
module attributes {stable_mosaic.version = 11 : i64} {
  func.func @_conv_kernel(%arg0: i32, %arg1: i32, %arg2: i32, %arg3: memref<512x128xbf16, #tpu.memory_space<vmem>>, %arg4: memref<128x128xbf16, #tpu.memory_space<vmem>>, %arg5: memref<1x128xf32, #tpu.memory_space<vmem>>, %arg6: memref<512x128xf32, #tpu.memory_space<vmem>>) attributes {dimension_semantics = [#tpu.dimension_semantics<parallel>, #tpu.dimension_semantics<parallel>, #tpu.dimension_semantics<arbitrary>], iteration_bounds = array<i64: 1, 1, 1>, scalar_prefetch = 0 : i64, scratch_operands = 0 : i64, tpu.core_type = #tpu.core_type<tc>, window_params = [{transform_indices = @transform_0, window_bounds = array<i64: 512, 128>}, {transform_indices = @transform_1, window_bounds = array<i64: 128, 128>}, {transform_indices = @transform_2, window_bounds = array<i64: 1, 128>}, {transform_indices = @transform_3, window_bounds = array<i64: 512, 128>}]} {
    %c0_i32 = arith.constant 0 : i32
    %0 = arith.cmpi eq, %arg2, %c0_i32 : i32
    %1 = arith.extui %0 : i1 to i32
    %c0_i32_0 = arith.constant 0 : i32
    %2 = arith.cmpi ne, %1, %c0_i32_0 : i32
    scf.if %2 {
      %c0_10 = arith.constant 0 : index
      %c0_11 = arith.constant 0 : index
      %12 = vector.load %arg5[%c0_10, %c0_11] : memref<1x128xf32, #tpu.memory_space<vmem>>, vector<1x128xf32>
      %13 = vector.shape_cast %12 : vector<1x128xf32> to vector<1x128xf32>
      %14 = vector.broadcast %13 : vector<1x128xf32> to vector<512x128xf32>
      %c0_12 = arith.constant 0 : index
      %c0_13 = arith.constant 0 : index
      %15 = vector.load %arg6[%c0_12, %c0_13] : memref<512x128xf32, #tpu.memory_space<vmem>>, vector<512x128xf32>
      tpu.vector_store %arg6[%c0_12, %c0_13], %14 {strides = array<i32>} : memref<512x128xf32, #tpu.memory_space<vmem>>, vector<512x128xf32>,
    } else {
    }
    %c0 = arith.constant 0 : index
    %c0_1 = arith.constant 0 : index
    %3 = vector.load %arg6[%c0, %c0_1] : memref<512x128xf32, #tpu.memory_space<vmem>>, vector<512x128xf32>
    %c0_2 = arith.constant 0 : index
    %c0_3 = arith.constant 0 : index
    %4 = vector.load %arg3[%c0_2, %c0_3] : memref<512x128xbf16, #tpu.memory_space<vmem>>, vector<512x128xbf16>
    %c0_4 = arith.constant 0 : index
    %c0_5 = arith.constant 0 : index
    %5 = vector.load %arg4[%c0_4, %c0_5] : memref<128x128xbf16, #tpu.memory_space<vmem>>, vector<128x128xbf16>
    %cst = arith.constant dense<0.000000e+00> : vector<512x128xf32>
    %6 = tpu.matmul %4, %5, %cst {dimension_numbers = #tpu.dot_dimension_numbers<[1], [0], [0], [1], [0, 0, 1, 1], [], []>} : vector<512x128xbf16>, vector<128x128xbf16>, vector<512x128xf32> -> vector<512x128xf32>
    %7 = arith.addf %3, %6 : vector<512x128xf32>
    %c0_6 = arith.constant 0 : index
    %c0_7 = arith.constant 0 : index
    %8 = vector.load %arg6[%c0_6, %c0_7] : memref<512x128xf32, #tpu.memory_space<vmem>>, vector<512x128xf32>
    tpu.vector_store %arg6[%c0_6, %c0_7], %7 {strides = array<i32>} : memref<512x128xf32, #tpu.memory_space<vmem>>, vector<512x128xf32>,
    %c0_i32_8 = arith.constant 0 : i32
    %9 = arith.cmpi eq, %arg2, %c0_i32_8 : i32
    %10 = arith.extui %9 : i1 to i32
    %c0_i32_9 = arith.constant 0 : i32
    %11 = arith.cmpi ne, %10, %c0_i32_9 : i32
    scf.if %11 {
      %c0_10 = arith.constant 0 : index
      %c0_11 = arith.constant 0 : index
      %12 = vector.load %arg6[%c0_10, %c0_11] : memref<512x128xf32, #tpu.memory_space<vmem>>, vector<512x128xf32>
      %cst_12 = arith.constant 2.000000e-01 : f32
      %13 = vector.broadcast %cst_12 : f32 to vector<512x128xf32>
      %14 = arith.mulf %13, %12 : vector<512x128xf32>
      %15 = arith.maximumf %12, %14 : vector<512x128xf32>
      %c0_13 = arith.constant 0 : index
      %c0_14 = arith.constant 0 : index
      %16 = vector.load %arg6[%c0_13, %c0_14] : memref<512x128xf32, #tpu.memory_space<vmem>>, vector<512x128xf32>
      tpu.vector_store %arg6[%c0_13, %c0_14], %15 {strides = array<i32>} : memref<512x128xf32, #tpu.memory_space<vmem>>, vector<512x128xf32>,
    } else {
    }
    return
  }
  func.func @transform_0(%arg0: i32, %arg1: i32, %arg2: i32) -> (i32, i32) {
    %c0_i32 = arith.constant 0 : i32
    return %arg0, %arg2 : i32, i32
  }
  func.func @transform_1(%arg0: i32, %arg1: i32, %arg2: i32) -> (i32, i32) {
    %c0_i32 = arith.constant 0 : i32
    return %arg2, %arg1 : i32, i32
  }
  func.func @transform_2(%arg0: i32, %arg1: i32, %arg2: i32) -> (i32, i32) {
    %c0_i32 = arith.constant 0 : i32
    %c0_i32_0 = arith.constant 0 : i32
    return %c0_i32, %arg1 : i32, i32
  }
  func.func @transform_3(%arg0: i32, %arg1: i32, %arg2: i32) -> (i32, i32) {
    %c0_i32 = arith.constant 0 : i32
    return %arg0, %arg1 : i32, i32
  }
}

module attributes {stable_mosaic.version = 11 : i64} {
  func.func @_conv_kernel(%arg0: i32, %arg1: i32, %arg2: i32, %arg3: memref<128x128xbf16, #tpu.memory_space<vmem>>, %arg4: memref<128x128xbf16, #tpu.memory_space<vmem>>, %arg5: memref<128x128xf32, #tpu.memory_space<vmem>>, %arg6: memref<1x2x128xf32, #tpu.memory_space<vmem>>) attributes {dimension_semantics = [#tpu.dimension_semantics<parallel>, #tpu.dimension_semantics<parallel>, #tpu.dimension_semantics<arbitrary>], iteration_bounds = array<i64: 1, 1, 1>, scalar_prefetch = 0 : i64, scratch_operands = 0 : i64, tpu.core_type = #tpu.core_type<tc>, window_params = [{transform_indices = @transform_0, window_bounds = array<i64: 128, 128>}, {transform_indices = @transform_1, window_bounds = array<i64: 128, 128>}, {transform_indices = @transform_2, window_bounds = array<i64: 128, 128>}, {transform_indices = @transform_3, window_bounds = array<i64: 1, 2, 128>}]} {
    %c0_i32 = arith.constant 0 : i32
    %0 = arith.cmpi eq, %arg2, %c0_i32 : i32
    %1 = arith.extui %0 : i1 to i32
    %c0_i32_0 = arith.constant 0 : i32
    %2 = arith.cmpi ne, %1, %c0_i32_0 : i32
    scf.if %2 {
      %cst_10 = arith.constant 0.000000e+00 : f32
      %12 = vector.broadcast %cst_10 : f32 to vector<128x128xf32>
      %c0_11 = arith.constant 0 : index
      %c0_12 = arith.constant 0 : index
      %13 = vector.load %arg5[%c0_11, %c0_12] : memref<128x128xf32, #tpu.memory_space<vmem>>, vector<128x128xf32>
      tpu.vector_store %arg5[%c0_11, %c0_12], %12 {strides = array<i32>} : memref<128x128xf32, #tpu.memory_space<vmem>>, vector<128x128xf32>,
    } else {
    }
    %c0 = arith.constant 0 : index
    %c0_1 = arith.constant 0 : index
    %3 = vector.load %arg5[%c0, %c0_1] : memref<128x128xf32, #tpu.memory_space<vmem>>, vector<128x128xf32>
    %c0_2 = arith.constant 0 : index
    %c0_3 = arith.constant 0 : index
    %4 = vector.load %arg3[%c0_2, %c0_3] : memref<128x128xbf16, #tpu.memory_space<vmem>>, vector<128x128xbf16>
    %c0_4 = arith.constant 0 : index
    %c0_5 = arith.constant 0 : index
    %5 = vector.load %arg4[%c0_4, %c0_5] : memref<128x128xbf16, #tpu.memory_space<vmem>>, vector<128x128xbf16>
    %cst = arith.constant dense<0.000000e+00> : vector<128x128xf32>
    %6 = tpu.matmul %4, %5, %cst {dimension_numbers = #tpu.dot_dimension_numbers<[1], [0], [0], [1], [0, 0, 1, 1], [], []>} : vector<128x128xbf16>, vector<128x128xbf16>, vector<128x128xf32> -> vector<128x128xf32>
    %7 = arith.addf %3, %6 : vector<128x128xf32>
    %c0_6 = arith.constant 0 : index
    %c0_7 = arith.constant 0 : index
    %8 = vector.load %arg5[%c0_6, %c0_7] : memref<128x128xf32, #tpu.memory_space<vmem>>, vector<128x128xf32>
    tpu.vector_store %arg5[%c0_6, %c0_7], %7 {strides = array<i32>} : memref<128x128xf32, #tpu.memory_space<vmem>>, vector<128x128xf32>,
    %c0_i32_8 = arith.constant 0 : i32
    %9 = arith.cmpi eq, %arg2, %c0_i32_8 : i32
    %10 = arith.extui %9 : i1 to i32
    %c0_i32_9 = arith.constant 0 : i32
    %11 = arith.cmpi ne, %10, %c0_i32_9 : i32
    scf.if %11 {
      %c0_10 = arith.constant 0 : index
      %c0_11 = arith.constant 0 : index
      %12 = vector.load %arg5[%c0_10, %c0_11] : memref<128x128xf32, #tpu.memory_space<vmem>>, vector<128x128xf32>
      %cst_12 = arith.constant dense<0.000000e+00> : vector<128xf32>
      %13 = vector.multi_reduction <add>, %12, %cst_12 [0] : vector<128x128xf32> to vector<128xf32>
      %14 = vector.shape_cast %13 : vector<128xf32> to vector<1x128xf32>
      %15 = arith.mulf %12, %12 : vector<128x128xf32>
      %cst_13 = arith.constant dense<0.000000e+00> : vector<128xf32>
      %16 = vector.multi_reduction <add>, %15, %cst_13 [0] : vector<128x128xf32> to vector<128xf32>
      %17 = vector.shape_cast %16 : vector<128xf32> to vector<1x128xf32>
      %18 = tpu.concatenate %14, %17 in 0 : vector<1x128xf32>, vector<1x128xf32> -> vector<2x128xf32>
      %19 = vector.shape_cast %18 : vector<2x128xf32> to vector<1x2x128xf32>
      %c0_14 = arith.constant 0 : index
      %c0_15 = arith.constant 0 : index
      %c0_16 = arith.constant 0 : index
      %20 = vector.load %arg6[%c0_14, %c0_15, %c0_16] : memref<1x2x128xf32, #tpu.memory_space<vmem>>, vector<1x2x128xf32>
      tpu.vector_store %arg6[%c0_14, %c0_15, %c0_16], %19 {strides = array<i32>} : memref<1x2x128xf32, #tpu.memory_space<vmem>>, vector<1x2x128xf32>,
    } else {
    }
    return
  }
  func.func @transform_0(%arg0: i32, %arg1: i32, %arg2: i32) -> (i32, i32) {
    %c0_i32 = arith.constant 0 : i32
    return %arg0, %arg2 : i32, i32
  }
  func.func @transform_1(%arg0: i32, %arg1: i32, %arg2: i32) -> (i32, i32) {
    %c0_i32 = arith.constant 0 : i32
    return %arg2, %arg1 : i32, i32
  }
  func.func @transform_2(%arg0: i32, %arg1: i32, %arg2: i32) -> (i32, i32) {
    %c0_i32 = arith.constant 0 : i32
    return %arg0, %arg1 : i32, i32
  }
  func.func @transform_3(%arg0: i32, %arg1: i32, %arg2: i32) -> (i32, i32, i32) {
    %c0_i32 = arith.constant 0 : i32
    %c0_i32_0 = arith.constant 0 : i32
    return %arg0, %c0_i32, %arg1 : i32, i32, i32
  }
}

module attributes {stable_mosaic.version = 11 : i64} {
  func.func @_bn_apply_kernel(%arg0: i32, %arg1: i32, %arg2: memref<128x128xf32, #tpu.memory_space<vmem>>, %arg3: memref<1x128xf32, #tpu.memory_space<vmem>>, %arg4: memref<1x128xf32, #tpu.memory_space<vmem>>, %arg5: memref<128x128xf32, #tpu.memory_space<vmem>>) attributes {dimension_semantics = [#tpu.dimension_semantics<parallel>, #tpu.dimension_semantics<parallel>], iteration_bounds = array<i64: 1, 1>, scalar_prefetch = 0 : i64, scratch_operands = 0 : i64, tpu.core_type = #tpu.core_type<tc>, window_params = [{transform_indices = @transform_0, window_bounds = array<i64: 128, 128>}, {transform_indices = @transform_1, window_bounds = array<i64: 1, 128>}, {transform_indices = @transform_2, window_bounds = array<i64: 1, 128>}, {transform_indices = @transform_3, window_bounds = array<i64: 128, 128>}]} {
    %c0 = arith.constant 0 : index
    %c0_0 = arith.constant 0 : index
    %0 = vector.load %arg2[%c0, %c0_0] : memref<128x128xf32, #tpu.memory_space<vmem>>, vector<128x128xf32>
    %c0_1 = arith.constant 0 : index
    %c0_2 = arith.constant 0 : index
    %1 = vector.load %arg3[%c0_1, %c0_2] : memref<1x128xf32, #tpu.memory_space<vmem>>, vector<1x128xf32>
    %2 = vector.broadcast %1 : vector<1x128xf32> to vector<128x128xf32>
    %3 = arith.mulf %0, %2 : vector<128x128xf32>
    %c0_3 = arith.constant 0 : index
    %c0_4 = arith.constant 0 : index
    %4 = vector.load %arg4[%c0_3, %c0_4] : memref<1x128xf32, #tpu.memory_space<vmem>>, vector<1x128xf32>
    %5 = vector.broadcast %4 : vector<1x128xf32> to vector<128x128xf32>
    %6 = arith.addf %3, %5 : vector<128x128xf32>
    %cst = arith.constant 2.000000e-01 : f32
    %7 = vector.broadcast %cst : f32 to vector<128x128xf32>
    %8 = arith.mulf %7, %6 : vector<128x128xf32>
    %9 = arith.maximumf %6, %8 : vector<128x128xf32>
    %c0_5 = arith.constant 0 : index
    %c0_6 = arith.constant 0 : index
    %10 = vector.load %arg5[%c0_5, %c0_6] : memref<128x128xf32, #tpu.memory_space<vmem>>, vector<128x128xf32>
    tpu.vector_store %arg5[%c0_5, %c0_6], %9 {strides = array<i32>} : memref<128x128xf32, #tpu.memory_space<vmem>>, vector<128x128xf32>,
    return
  }
  func.func @transform_0(%arg0: i32, %arg1: i32) -> (i32, i32) {
    %c0_i32 = arith.constant 0 : i32
    return %arg0, %arg1 : i32, i32
  }
  func.func @transform_1(%arg0: i32, %arg1: i32) -> (i32, i32) {
    %c0_i32 = arith.constant 0 : i32
    %c0_i32_0 = arith.constant 0 : i32
    return %c0_i32, %arg1 : i32, i32
  }
  func.func @transform_2(%arg0: i32, %arg1: i32) -> (i32, i32) {
    %c0_i32 = arith.constant 0 : i32
    %c0_i32_0 = arith.constant 0 : i32
    return %c0_i32, %arg1 : i32, i32
  }
  func.func @transform_3(%arg0: i32, %arg1: i32) -> (i32, i32) {
    %c0_i32 = arith.constant 0 : i32
    return %arg0, %arg1 : i32, i32
  }
}

module attributes {stable_mosaic.version = 11 : i64} {
  func.func @_conv_kernel(%arg0: i32, %arg1: i32, %arg2: i32, %arg3: memref<128x256xbf16, #tpu.memory_space<vmem>>, %arg4: memref<256x128xbf16, #tpu.memory_space<vmem>>, %arg5: memref<128x128xf32, #tpu.memory_space<vmem>>, %arg6: memref<1x2x128xf32, #tpu.memory_space<vmem>>) attributes {dimension_semantics = [#tpu.dimension_semantics<parallel>, #tpu.dimension_semantics<parallel>, #tpu.dimension_semantics<arbitrary>], iteration_bounds = array<i64: 1, 1, 1>, scalar_prefetch = 0 : i64, scratch_operands = 0 : i64, tpu.core_type = #tpu.core_type<tc>, window_params = [{transform_indices = @transform_0, window_bounds = array<i64: 128, 256>}, {transform_indices = @transform_1, window_bounds = array<i64: 256, 128>}, {transform_indices = @transform_2, window_bounds = array<i64: 128, 128>}, {transform_indices = @transform_3, window_bounds = array<i64: 1, 2, 128>}]} {
    %c0_i32 = arith.constant 0 : i32
    %0 = arith.cmpi eq, %arg2, %c0_i32 : i32
    %1 = arith.extui %0 : i1 to i32
    %c0_i32_0 = arith.constant 0 : i32
    %2 = arith.cmpi ne, %1, %c0_i32_0 : i32
    scf.if %2 {
      %cst_10 = arith.constant 0.000000e+00 : f32
      %12 = vector.broadcast %cst_10 : f32 to vector<128x128xf32>
      %c0_11 = arith.constant 0 : index
      %c0_12 = arith.constant 0 : index
      %13 = vector.load %arg5[%c0_11, %c0_12] : memref<128x128xf32, #tpu.memory_space<vmem>>, vector<128x128xf32>
      tpu.vector_store %arg5[%c0_11, %c0_12], %12 {strides = array<i32>} : memref<128x128xf32, #tpu.memory_space<vmem>>, vector<128x128xf32>,
    } else {
    }
    %c0 = arith.constant 0 : index
    %c0_1 = arith.constant 0 : index
    %3 = vector.load %arg5[%c0, %c0_1] : memref<128x128xf32, #tpu.memory_space<vmem>>, vector<128x128xf32>
    %c0_2 = arith.constant 0 : index
    %c0_3 = arith.constant 0 : index
    %4 = vector.load %arg3[%c0_2, %c0_3] : memref<128x256xbf16, #tpu.memory_space<vmem>>, vector<128x256xbf16>
    %c0_4 = arith.constant 0 : index
    %c0_5 = arith.constant 0 : index
    %5 = vector.load %arg4[%c0_4, %c0_5] : memref<256x128xbf16, #tpu.memory_space<vmem>>, vector<256x128xbf16>
    %cst = arith.constant dense<0.000000e+00> : vector<128x128xf32>
    %6 = tpu.matmul %4, %5, %cst {dimension_numbers = #tpu.dot_dimension_numbers<[1], [0], [0], [1], [0, 0, 1, 1], [], []>} : vector<128x256xbf16>, vector<256x128xbf16>, vector<128x128xf32> -> vector<128x128xf32>
    %7 = arith.addf %3, %6 : vector<128x128xf32>
    %c0_6 = arith.constant 0 : index
    %c0_7 = arith.constant 0 : index
    %8 = vector.load %arg5[%c0_6, %c0_7] : memref<128x128xf32, #tpu.memory_space<vmem>>, vector<128x128xf32>
    tpu.vector_store %arg5[%c0_6, %c0_7], %7 {strides = array<i32>} : memref<128x128xf32, #tpu.memory_space<vmem>>, vector<128x128xf32>,
    %c0_i32_8 = arith.constant 0 : i32
    %9 = arith.cmpi eq, %arg2, %c0_i32_8 : i32
    %10 = arith.extui %9 : i1 to i32
    %c0_i32_9 = arith.constant 0 : i32
    %11 = arith.cmpi ne, %10, %c0_i32_9 : i32
    scf.if %11 {
      %c0_10 = arith.constant 0 : index
      %c0_11 = arith.constant 0 : index
      %12 = vector.load %arg5[%c0_10, %c0_11] : memref<128x128xf32, #tpu.memory_space<vmem>>, vector<128x128xf32>
      %cst_12 = arith.constant dense<0.000000e+00> : vector<128xf32>
      %13 = vector.multi_reduction <add>, %12, %cst_12 [0] : vector<128x128xf32> to vector<128xf32>
      %14 = vector.shape_cast %13 : vector<128xf32> to vector<1x128xf32>
      %15 = arith.mulf %12, %12 : vector<128x128xf32>
      %cst_13 = arith.constant dense<0.000000e+00> : vector<128xf32>
      %16 = vector.multi_reduction <add>, %15, %cst_13 [0] : vector<128x128xf32> to vector<128xf32>
      %17 = vector.shape_cast %16 : vector<128xf32> to vector<1x128xf32>
      %18 = tpu.concatenate %14, %17 in 0 : vector<1x128xf32>, vector<1x128xf32> -> vector<2x128xf32>
      %19 = vector.shape_cast %18 : vector<2x128xf32> to vector<1x2x128xf32>
      %c0_14 = arith.constant 0 : index
      %c0_15 = arith.constant 0 : index
      %c0_16 = arith.constant 0 : index
      %20 = vector.load %arg6[%c0_14, %c0_15, %c0_16] : memref<1x2x128xf32, #tpu.memory_space<vmem>>, vector<1x2x128xf32>
      tpu.vector_store %arg6[%c0_14, %c0_15, %c0_16], %19 {strides = array<i32>} : memref<1x2x128xf32, #tpu.memory_space<vmem>>, vector<1x2x128xf32>,
    } else {
    }
    return
  }
  func.func @transform_0(%arg0: i32, %arg1: i32, %arg2: i32) -> (i32, i32) {
    %c0_i32 = arith.constant 0 : i32
    return %arg0, %arg2 : i32, i32
  }
  func.func @transform_1(%arg0: i32, %arg1: i32, %arg2: i32) -> (i32, i32) {
    %c0_i32 = arith.constant 0 : i32
    return %arg2, %arg1 : i32, i32
  }
  func.func @transform_2(%arg0: i32, %arg1: i32, %arg2: i32) -> (i32, i32) {
    %c0_i32 = arith.constant 0 : i32
    return %arg0, %arg1 : i32, i32
  }
  func.func @transform_3(%arg0: i32, %arg1: i32, %arg2: i32) -> (i32, i32, i32) {
    %c0_i32 = arith.constant 0 : i32
    %c0_i32_0 = arith.constant 0 : i32
    return %arg0, %c0_i32, %arg1 : i32, i32, i32
  }
}

module attributes {stable_mosaic.version = 11 : i64} {
  func.func @_conv_kernel(%arg0: i32, %arg1: i32, %arg2: i32, %arg3: memref<128x512xbf16, #tpu.memory_space<vmem>>, %arg4: memref<512x128xbf16, #tpu.memory_space<vmem>>, %arg5: memref<128x128xf32, #tpu.memory_space<vmem>>, %arg6: memref<1x2x128xf32, #tpu.memory_space<vmem>>) attributes {dimension_semantics = [#tpu.dimension_semantics<parallel>, #tpu.dimension_semantics<parallel>, #tpu.dimension_semantics<arbitrary>], iteration_bounds = array<i64: 1, 1, 1>, scalar_prefetch = 0 : i64, scratch_operands = 0 : i64, tpu.core_type = #tpu.core_type<tc>, window_params = [{transform_indices = @transform_0, window_bounds = array<i64: 128, 512>}, {transform_indices = @transform_1, window_bounds = array<i64: 512, 128>}, {transform_indices = @transform_2, window_bounds = array<i64: 128, 128>}, {transform_indices = @transform_3, window_bounds = array<i64: 1, 2, 128>}]} {
    %c0_i32 = arith.constant 0 : i32
    %0 = arith.cmpi eq, %arg2, %c0_i32 : i32
    %1 = arith.extui %0 : i1 to i32
    %c0_i32_0 = arith.constant 0 : i32
    %2 = arith.cmpi ne, %1, %c0_i32_0 : i32
    scf.if %2 {
      %cst_10 = arith.constant 0.000000e+00 : f32
      %12 = vector.broadcast %cst_10 : f32 to vector<128x128xf32>
      %c0_11 = arith.constant 0 : index
      %c0_12 = arith.constant 0 : index
      %13 = vector.load %arg5[%c0_11, %c0_12] : memref<128x128xf32, #tpu.memory_space<vmem>>, vector<128x128xf32>
      tpu.vector_store %arg5[%c0_11, %c0_12], %12 {strides = array<i32>} : memref<128x128xf32, #tpu.memory_space<vmem>>, vector<128x128xf32>,
    } else {
    }
    %c0 = arith.constant 0 : index
    %c0_1 = arith.constant 0 : index
    %3 = vector.load %arg5[%c0, %c0_1] : memref<128x128xf32, #tpu.memory_space<vmem>>, vector<128x128xf32>
    %c0_2 = arith.constant 0 : index
    %c0_3 = arith.constant 0 : index
    %4 = vector.load %arg3[%c0_2, %c0_3] : memref<128x512xbf16, #tpu.memory_space<vmem>>, vector<128x512xbf16>
    %c0_4 = arith.constant 0 : index
    %c0_5 = arith.constant 0 : index
    %5 = vector.load %arg4[%c0_4, %c0_5] : memref<512x128xbf16, #tpu.memory_space<vmem>>, vector<512x128xbf16>
    %cst = arith.constant dense<0.000000e+00> : vector<128x128xf32>
    %6 = tpu.matmul %4, %5, %cst {dimension_numbers = #tpu.dot_dimension_numbers<[1], [0], [0], [1], [0, 0, 1, 1], [], []>} : vector<128x512xbf16>, vector<512x128xbf16>, vector<128x128xf32> -> vector<128x128xf32>
    %7 = arith.addf %3, %6 : vector<128x128xf32>
    %c0_6 = arith.constant 0 : index
    %c0_7 = arith.constant 0 : index
    %8 = vector.load %arg5[%c0_6, %c0_7] : memref<128x128xf32, #tpu.memory_space<vmem>>, vector<128x128xf32>
    tpu.vector_store %arg5[%c0_6, %c0_7], %7 {strides = array<i32>} : memref<128x128xf32, #tpu.memory_space<vmem>>, vector<128x128xf32>,
    %c0_i32_8 = arith.constant 0 : i32
    %9 = arith.cmpi eq, %arg2, %c0_i32_8 : i32
    %10 = arith.extui %9 : i1 to i32
    %c0_i32_9 = arith.constant 0 : i32
    %11 = arith.cmpi ne, %10, %c0_i32_9 : i32
    scf.if %11 {
      %c0_10 = arith.constant 0 : index
      %c0_11 = arith.constant 0 : index
      %12 = vector.load %arg5[%c0_10, %c0_11] : memref<128x128xf32, #tpu.memory_space<vmem>>, vector<128x128xf32>
      %cst_12 = arith.constant dense<0.000000e+00> : vector<128xf32>
      %13 = vector.multi_reduction <add>, %12, %cst_12 [0] : vector<128x128xf32> to vector<128xf32>
      %14 = vector.shape_cast %13 : vector<128xf32> to vector<1x128xf32>
      %15 = arith.mulf %12, %12 : vector<128x128xf32>
      %cst_13 = arith.constant dense<0.000000e+00> : vector<128xf32>
      %16 = vector.multi_reduction <add>, %15, %cst_13 [0] : vector<128x128xf32> to vector<128xf32>
      %17 = vector.shape_cast %16 : vector<128xf32> to vector<1x128xf32>
      %18 = tpu.concatenate %14, %17 in 0 : vector<1x128xf32>, vector<1x128xf32> -> vector<2x128xf32>
      %19 = vector.shape_cast %18 : vector<2x128xf32> to vector<1x2x128xf32>
      %c0_14 = arith.constant 0 : index
      %c0_15 = arith.constant 0 : index
      %c0_16 = arith.constant 0 : index
      %20 = vector.load %arg6[%c0_14, %c0_15, %c0_16] : memref<1x2x128xf32, #tpu.memory_space<vmem>>, vector<1x2x128xf32>
      tpu.vector_store %arg6[%c0_14, %c0_15, %c0_16], %19 {strides = array<i32>} : memref<1x2x128xf32, #tpu.memory_space<vmem>>, vector<1x2x128xf32>,
    } else {
    }
    return
  }
  func.func @transform_0(%arg0: i32, %arg1: i32, %arg2: i32) -> (i32, i32) {
    %c0_i32 = arith.constant 0 : i32
    return %arg0, %arg2 : i32, i32
  }
  func.func @transform_1(%arg0: i32, %arg1: i32, %arg2: i32) -> (i32, i32) {
    %c0_i32 = arith.constant 0 : i32
    return %arg2, %arg1 : i32, i32
  }
  func.func @transform_2(%arg0: i32, %arg1: i32, %arg2: i32) -> (i32, i32) {
    %c0_i32 = arith.constant 0 : i32
    return %arg0, %arg1 : i32, i32
  }
  func.func @transform_3(%arg0: i32, %arg1: i32, %arg2: i32) -> (i32, i32, i32) {
    %c0_i32 = arith.constant 0 : i32
    %c0_i32_0 = arith.constant 0 : i32
    return %arg0, %c0_i32, %arg1 : i32, i32, i32
  }
}

</mosaic_0001>

<llo_original>
// kernel: _lambda_.7
$region0: #{_lambda_.7}
  #allocation0 [shape = 'u32[]', space=smem, size = 0x4, offset = 0x4, fixed_abs, tag = 'smem constant byte address 0x4 - core index']
  #allocation1 [shape = 'u32[72,128]{1,0:T(1,128)}', space=vmem, size = 0x9000, scoped, tag = 'internal scratch']
  %s0 = inlined_call_operand.vmem [shape: bf16[512,128], index: 0, kind: input, shape index: {}]
  %s1 = inlined_call_operand.vmem [shape: bf16[128,128], index: 1, kind: input, shape index: {}]
  %s2 = inlined_call_operand.vmem [shape: f32[1,128], index: 2, kind: input, shape index: {}]
  %s3 = inlined_call_operand.vmem [shape: f32[512,128], index: 3, kind: output, shape index: {}]
  %s4 = sld [smem:[#allocation0]]
  $region30: #{_lambda_.7} parent=0
    _
  %s6 = ssub.s32 1, %s4
  %s7 = scalar_select 0, %s6, %s4
  // Predicated region
  $region2: #{_lambda_.7} parent=0 // pred_check
    _
  $region3: #{_lambda_.7} parent=0 // pred_check_branch
    %9 = sbr.rel (0) target = $region5
  $region4: #{_lambda_.7} parent=0 // pred_region
    _
  $region5: #{_lambda_.7} parent=0 // pred_fallthru
    _
  // Predicated region
  $region6: #{_lambda_.7} parent=0 // pred_check
    _
  $region7: #{_lambda_.7} parent=0 // pred_check_branch
    %11 = sbr.rel (0) target = $region9
  $region8: #{_lambda_.7} parent=0 // pred_region
    _
  $region9: #{_lambda_.7} parent=0 // pred_fallthru
    _
  // Predicated region
  $region10: #{_lambda_.7} parent=0 // pred_check
    _
  $region11: #{_lambda_.7} parent=0 // pred_check_branch
    %13 = sbr.rel (0) target = $region13
  $region12: #{_lambda_.7} parent=0 // pred_region
    _
  $region13: #{_lambda_.7} parent=0 // pred_fallthru
    _
  %p14 = scmp.eq.s32.totalorder 0, 0
  // Predicated region
  $region14: #{_lambda_.7} parent=0 // pred_check
    %p15 = pneg %p14
  $region15: #{_lambda_.7} parent=0 // pred_check_branch
    %17 = sbr.rel (%p15) target = $region17
  $region16: #{_lambda_.7} parent=0 // pred_region
    %v18 = vld [vmem:[%s2] sm:$0x1]
    %v20 = vperm.slane %v18, 0
    %22 = vst [vmem:[%s3] sm:$0xff] %v20
    %23 = vst [vmem:[%s3 + $0x8] sm:$0xff] %v20
    %24 = vst [vmem:[%s3 + $0x10] sm:$0xff] %v20
    %25 = vst [vmem:[%s3 + $0x18] sm:$0xff] %v20
    %26 = vst [vmem:[%s3 + $0x20] sm:$0xff] %v20
    %27 = vst [vmem:[%s3 + $0x28] sm:$0xff] %v20
    %28 = vst [vmem:[%s3 + $0x30] sm:$0xff] %v20
    %29 = vst [vmem:[%s3 + $0x38] sm:$0xff] %v20
    %30 = vst [vmem:[%s3 + $0x40] sm:$0xff] %v20
    %31 = vst [vmem:[%s3 + $0x48] sm:$0xff] %v20
    %32 = vst [vmem:[%s3 + $0x50] sm:$0xff] %v20
    %33 = vst [vmem:[%s3 + $0x58] sm:$0xff] %v20
    %34 = vst [vmem:[%s3 + $0x60] sm:$0xff] %v20
    %35 = vst [vmem:[%s3 + $0x68] sm:$0xff] %v20
    %36 = vst [vmem:[%s3 + $0x70] sm:$0xff] %v20
    %37 = vst [vmem:[%s3 + $0x78] sm:$0xff] %v20
    %38 = vst [vmem:[%s3 + $0x80] sm:$0xff] %v20
    %39 = vst [vmem:[%s3 + $0x88] sm:$0xff] %v20
    %40 = vst [vmem:[%s3 + $0x90] sm:$0xff] %v20
    %41 = vst [vmem:[%s3 + $0x98] sm:$0xff] %v20
    %42 = vst [vmem:[%s3 + $0xa0] sm:$0xff] %v20
    %43 = vst [vmem:[%s3 + $0xa8] sm:$0xff] %v20
    %44 = vst [vmem:[%s3 + $0xb0] sm:$0xff] %v20
    %45 = vst [vmem:[%s3 + $0xb8] sm:$0xff] %v20
    %46 = vst [vmem:[%s3 + $0xc0] sm:$0xff] %v20
    %47 = vst [vmem:[%s3 + $0xc8] sm:$0xff] %v20
    %48 = vst [vmem:[%s3 + $0xd0] sm:$0xff] %v20
    %49 = vst [vmem:[%s3 + $0xd8] sm:$0xff] %v20
    %50 = vst [vmem:[%s3 + $0xe0] sm:$0xff] %v20
    %51 = vst [vmem:[%s3 + $0xe8] sm:$0xff] %v20
    %52 = vst [vmem:[%s3 + $0xf0] sm:$0xff] %v20
    %53 = vst [vmem:[%s3 + $0xf8] sm:$0xff] %v20
    %54 = vst [vmem:[%s3 + $0x100] sm:$0xff] %v20
    %55 = vst [vmem:[%s3 + $0x108] sm:$0xff] %v20
    %56 = vst [vmem:[%s3 + $0x110] sm:$0xff] %v20
    %57 = vst [vmem:[%s3 + $0x118] sm:$0xff] %v20
    %58 = vst [vmem:[%s3 + $0x120] sm:$0xff] %v20
    %59 = vst [vmem:[%s3 + $0x128] sm:$0xff] %v20
    %60 = vst [vmem:[%s3 + $0x130] sm:$0xff] %v20
    %61 = vst [vmem:[%s3 + $0x138] sm:$0xff] %v20
    %62 = vst [vmem:[%s3 + $0x140] sm:$0xff] %v20
    %63 = vst [vmem:[%s3 + $0x148] sm:$0xff] %v20
    %64 = vst [vmem:[%s3 + $0x150] sm:$0xff] %v20
    %65 = vst [vmem:[%s3 + $0x158] sm:$0xff] %v20
    %66 = vst [vmem:[%s3 + $0x160] sm:$0xff] %v20
    %67 = vst [vmem:[%s3 + $0x168] sm:$0xff] %v20
    %68 = vst [vmem:[%s3 + $0x170] sm:$0xff] %v20
    %69 = vst [vmem:[%s3 + $0x178] sm:$0xff] %v20
    %70 = vst [vmem:[%s3 + $0x180] sm:$0xff] %v20
    %71 = vst [vmem:[%s3 + $0x188] sm:$0xff] %v20
    %72 = vst [vmem:[%s3 + $0x190] sm:$0xff] %v20
    %73 = vst [vmem:[%s3 + $0x198] sm:$0xff] %v20
    %74 = vst [vmem:[%s3 + $0x1a0] sm:$0xff] %v20
    %75 = vst [vmem:[%s3 + $0x1a8] sm:$0xff] %v20
    %76 = vst [vmem:[%s3 + $0x1b0] sm:$0xff] %v20
    %77 = vst [vmem:[%s3 + $0x1b8] sm:$0xff] %v20
    %78 = vst [vmem:[%s3 + $0x1c0] sm:$0xff] %v20
    %79 = vst [vmem:[%s3 + $0x1c8] sm:$0xff] %v20
    %80 = vst [vmem:[%s3 + $0x1d0] sm:$0xff] %v20
    %81 = vst [vmem:[%s3 + $0x1d8] sm:$0xff] %v20
    %82 = vst [vmem:[%s3 + $0x1e0] sm:$0xff] %v20
    %83 = vst [vmem:[%s3 + $0x1e8] sm:$0xff] %v20
    %84 = vst [vmem:[%s3 + $0x1f0] sm:$0xff] %v20
    %85 = vst [vmem:[%s3 + $0x1f8] sm:$0xff] %v20
  $region17: #{_lambda_.7} parent=0 // pred_fallthru
    _
  %v86 = vld [vmem:[%s3] sm:$0xff]
  %v87 = vld [vmem:[%s3 + $0x8] sm:$0xff]
  %v88 = vld [vmem:[%s3 + $0x10] sm:$0xff]
  %v89 = vld [vmem:[%s3 + $0x18] sm:$0xff]
  %v90 = vld [vmem:[%s3 + $0x20] sm:$0xff]
  %v91 = vld [vmem:[%s3 + $0x28] sm:$0xff]
  %v92 = vld [vmem:[%s3 + $0x30] sm:$0xff]
  %v93 = vld [vmem:[%s3 + $0x38] sm:$0xff]
  %v94 = vld [vmem:[%s3 + $0x40] sm:$0xff]
  %v95 = vld [vmem:[%s3 + $0x48] sm:$0xff]
  %v96 = vld [vmem:[%s3 + $0x50] sm:$0xff]
  %v97 = vld [vmem:[%s3 + $0x58] sm:$0xff]
  %v98 = vld [vmem:[%s3 + $0x60] sm:$0xff]
  %v99 = vld [vmem:[%s3 + $0x68] sm:$0xff]
  %v100 = vld [vmem:[%s3 + $0x70] sm:$0xff]
  %v101 = vld [vmem:[%s3 + $0x78] sm:$0xff]
  %v102 = vld [vmem:[%s3 + $0x80] sm:$0xff]
  %v103 = vld [vmem:[%s3 + $0x88] sm:$0xff]
  %v104 = vld [vmem:[%s3 + $0x90] sm:$0xff]
  %v105 = vld [vmem:[%s3 + $0x98] sm:$0xff]
  %v106 = vld [vmem:[%s3 + $0xa0] sm:$0xff]
  %v107 = vld [vmem:[%s3 + $0xa8] sm:$0xff]
  %v108 = vld [vmem:[%s3 + $0xb0] sm:$0xff]
  %v109 = vld [vmem:[%s3 + $0xb8] sm:$0xff]
  %v110 = vld [vmem:[%s3 + $0xc0] sm:$0xff]
  %v111 = vld [vmem:[%s3 + $0xc8] sm:$0xff]
  %v112 = vld [vmem:[%s3 + $0xd0] sm:$0xff]
  %v113 = vld [vmem:[%s3 + $0xd8] sm:$0xff]
  %v114 = vld [vmem:[%s3 + $0xe0] sm:$0xff]
  %v115 = vld [vmem:[%s3 + $0xe8] sm:$0xff]
  %v116 = vld [vmem:[%s3 + $0xf0] sm:$0xff]
  %v117 = vld [vmem:[%s3 + $0xf8] sm:$0xff]
  %v118 = vld [vmem:[%s3 + $0x100] sm:$0xff]
  %v119 = vld [vmem:[%s3 + $0x108] sm:$0xff]
  %v120 = vld [vmem:[%s3 + $0x110] sm:$0xff]
  %v121 = vld [vmem:[%s3 + $0x118] sm:$0xff]
  %v122 = vld [vmem:[%s3 + $0x120] sm:$0xff]
  %v123 = vld [vmem:[%s3 + $0x128] sm:$0xff]
  %v124 = vld [vmem:[%s3 + $0x130] sm:$0xff]
  %v125 = vld [vmem:[%s3 + $0x138] sm:$0xff]
  %v126 = vld [vmem:[%s3 + $0x140] sm:$0xff]
  %v127 = vld [vmem:[%s3 + $0x148] sm:$0xff]
  %v128 = vld [vmem:[%s3 + $0x150] sm:$0xff]
  %v129 = vld [vmem:[%s3 + $0x158] sm:$0xff]
  %v130 = vld [vmem:[%s3 + $0x160] sm:$0xff]
  %v131 = vld [vmem:[%s3 + $0x168] sm:$0xff]
  %v132 = vld [vmem:[%s3 + $0x170] sm:$0xff]
  %v133 = vld [vmem:[%s3 + $0x178] sm:$0xff]
  %v134 = vld [vmem:[%s3 + $0x180] sm:$0xff]
  %v135 = vld [vmem:[%s3 + $0x188] sm:$0xff]
  %v136 = vld [vmem:[%s3 + $0x190] sm:$0xff]
  %v137 = vld [vmem:[%s3 + $0x198] sm:$0xff]
  %v138 = vld [vmem:[%s3 + $0x1a0] sm:$0xff]
  %v139 = vld [vmem:[%s3 + $0x1a8] sm:$0xff]
  %v140 = vld [vmem:[%s3 + $0x1b0] sm:$0xff]
  %v141 = vld [vmem:[%s3 + $0x1b8] sm:$0xff]
  %v142 = vld [vmem:[%s3 + $0x1c0] sm:$0xff]
  %v143 = vld [vmem:[%s3 + $0x1c8] sm:$0xff]
  %v144 = vld [vmem:[%s3 + $0x1d0] sm:$0xff]
  %v145 = vld [vmem:[%s3 + $0x1d8] sm:$0xff]
  %v146 = vld [vmem:[%s3 + $0x1e0] sm:$0xff]
  %v147 = vld [vmem:[%s3 + $0x1e8] sm:$0xff]
  %v148 = vld [vmem:[%s3 + $0x1f0] sm:$0xff]
  %v149 = vld [vmem:[%s3 + $0x1f8] sm:$0xff]
  %v150 = vld [vmem:[%s0] sm:$0xf]
  %v151 = vld [vmem:[%s0 + $0x4] sm:$0xf]
  %v152 = vld [vmem:[%s0 + $0x8] sm:$0xf]
  %v153 = vld [vmem:[%s0 + $0xc] sm:$0xf]
  %v154 = vld [vmem:[%s0 + $0x10] sm:$0xf]
  %v155 = vld [vmem:[%s0 + $0x14] sm:$0xf]
  %v156 = vld [vmem:[%s0 + $0x18] sm:$0xf]
  %v157 = vld [vmem:[%s0 + $0x1c] sm:$0xf]
  %v158 = vld [vmem:[%s0 + $0x20] sm:$0xf]
  %v159 = vld [vmem:[%s0 + $0x24] sm:$0xf]
  %v160 = vld [vmem:[%s0 + $0x28] sm:$0xf]
  %v161 = vld [vmem:[%s0 + $0x2c] sm:$0xf]
  %v162 = vld [vmem:[%s0 + $0x30] sm:$0xf]
  %v163 = vld [vmem:[%s0 + $0x34] sm:$0xf]
  %v164 = vld [vmem:[%s0 + $0x38] sm:$0xf]
  %v165 = vld [vmem:[%s0 + $0x3c] sm:$0xf]
  %v166 = vld [vmem:[%s0 + $0x40] sm:$0xf]
  %v167 = vld [vmem:[%s0 + $0x44] sm:$0xf]
  %v168 = vld [vmem:[%s0 + $0x48] sm:$0xf]
  %v169 = vld [vmem:[%s0 + $0x4c] sm:$0xf]
  %v170 = vld [vmem:[%s0 + $0x50] sm:$0xf]
  %v171 = vld [vmem:[%s0 + $0x54] sm:$0xf]
  %v172 = vld [vmem:[%s0 + $0x58] sm:$0xf]
  %v173 = vld [vmem:[%s0 + $0x5c] sm:$0xf]
  %v174 = vld [vmem:[%s0 + $0x60] sm:$0xf]
  %v175 = vld [vmem:[%s0 + $0x64] sm:$0xf]
  %v176 = vld [vmem:[%s0 + $0x68] sm:$0xf]
  %v177 = vld [vmem:[%s0 + $0x6c] sm:$0xf]
  %v178 = vld [vmem:[%s0 + $0x70] sm:$0xf]
  %v179 = vld [vmem:[%s0 + $0x74] sm:$0xf]
  %v180 = vld [vmem:[%s0 + $0x78] sm:$0xf]
  %v181 = vld [vmem:[%s0 + $0x7c] sm:$0xf]
  %v182 = vld [vmem:[%s0 + $0x80] sm:$0xf]
  %v183 = vld [vmem:[%s0 + $0x84] sm:$0xf]
  %v184 = vld [vmem:[%s0 + $0x88] sm:$0xf]
  %v185 = vld [vmem:[%s0 + $0x8c] sm:$0xf]
  %v186 = vld [vmem:[%s0 + $0x90] sm:$0xf]
  %v187 = vld [vmem:[%s0 + $0x94] sm:$0xf]
  %v188 = vld [vmem:[%s0 + $0x98] sm:$0xf]
  %v189 = vld [vmem:[%s0 + $0x9c] sm:$0xf]
  %v190 = vld [vmem:[%s0 + $0xa0] sm:$0xf]
  %v191 = vld [vmem:[%s0 + $0xa4] sm:$0xf]
  %v192 = vld [vmem:[%s0 + $0xa8] sm:$0xf]
  %v193 = vld [vmem:[%s0 + $0xac] sm:$0xf]
  %v194 = vld [vmem:[%s0 + $0xb0] sm:$0xf]
  %v195 = vld [vmem:[%s0 + $0xb4] sm:$0xf]
  %v196 = vld [vmem:[%s0 + $0xb8] sm:$0xf]
  %v197 = vld [vmem:[%s0 + $0xbc] sm:$0xf]
  %v198 = vld [vmem:[%s0 + $0xc0] sm:$0xf]
  %v199 = vld [vmem:[%s0 + $0xc4] sm:$0xf]
  %v200 = vld [vmem:[%s0 + $0xc8] sm:$0xf]
  %v201 = vld [vmem:[%s0 + $0xcc] sm:$0xf]
  %v202 = vld [vmem:[%s0 + $0xd0] sm:$0xf]
  %v203 = vld [vmem:[%s0 + $0xd4] sm:$0xf]
  %v204 = vld [vmem:[%s0 + $0xd8] sm:$0xf]
  %v205 = vld [vmem:[%s0 + $0xdc] sm:$0xf]
  %v206 = vld [vmem:[%s0 + $0xe0] sm:$0xf]
  %v207 = vld [vmem:[%s0 + $0xe4] sm:$0xf]
  %v208 = vld [vmem:[%s0 + $0xe8] sm:$0xf]
  %v209 = vld [vmem:[%s0 + $0xec] sm:$0xf]
  %v210 = vld [vmem:[%s0 + $0xf0] sm:$0xf]
  %v211 = vld [vmem:[%s0 + $0xf4] sm:$0xf]
  %v212 = vld [vmem:[%s0 + $0xf8] sm:$0xf]
  %v213 = vld [vmem:[%s0 + $0xfc] sm:$0xf]
  %v214 = vld [vmem:[%s1] sm:$0xf]
  %v215 = vld [vmem:[%s1 + $0x4] sm:$0xf]
  %v216 = vld [vmem:[%s1 + $0x8] sm:$0xf]
  %v217 = vld [vmem:[%s1 + $0xc] sm:$0xf]
  %v218 = vld [vmem:[%s1 + $0x10] sm:$0xf]
  %v219 = vld [vmem:[%s1 + $0x14] sm:$0xf]
  %v220 = vld [vmem:[%s1 + $0x18] sm:$0xf]
  %v221 = vld [vmem:[%s1 + $0x1c] sm:$0xf]
  %v222 = vld [vmem:[%s1 + $0x20] sm:$0xf]
  %v223 = vld [vmem:[%s1 + $0x24] sm:$0xf]
  %v224 = vld [vmem:[%s1 + $0x28] sm:$0xf]
  %v225 = vld [vmem:[%s1 + $0x2c] sm:$0xf]
  %v226 = vld [vmem:[%s1 + $0x30] sm:$0xf]
  %v227 = vld [vmem:[%s1 + $0x34] sm:$0xf]
  %v228 = vld [vmem:[%s1 + $0x38] sm:$0xf]
  %v229 = vld [vmem:[%s1 + $0x3c] sm:$0xf]
  %v294 = vunpack.c.l.b16 %v150
  %v295 = vunpack.c.l.b16 %v151
  %v296 = vunpack.c.l.b16 %v152
  %v297 = vunpack.c.l.b16 %v153
  %v298 = vunpack.c.l.b16 %v154
  %v299 = vunpack.c.l.b16 %v155
  %v300 = vunpack.c.l.b16 %v156
  %v301 = vunpack.c.l.b16 %v157
  %v302 = vunpack.c.l.b16 %v158
  %v303 = vunpack.c.l.b16 %v159
  %v304 = vunpack.c.l.b16 %v160
  %v305 = vunpack.c.l.b16 %v161
  %v306 = vunpack.c.l.b16 %v162
  %v307 = vunpack.c.l.b16 %v163
  %v308 = vunpack.c.l.b16 %v164
  %v309 = vunpack.c.l.b16 %v165
  %v310 = vunpack.c.l.b16 %v166
  %v311 = vunpack.c.l.b16 %v167
  %v312 = vunpack.c.l.b16 %v168
  %v313 = vunpack.c.l.b16 %v169
  %v314 = vunpack.c.l.b16 %v170
  %v315 = vunpack.c.l.b16 %v171
  %v316 = vunpack.c.l.b16 %v172
  %v317 = vunpack.c.l.b16 %v173
  %v318 = vunpack.c.l.b16 %v174
  %v319 = vunpack.c.l.b16 %v175
  %v320 = vunpack.c.l.b16 %v176
  %v321 = vunpack.c.l.b16 %v177
  %v322 = vunpack.c.l.b16 %v178
  %v323 = vunpack.c.l.b16 %v179
  %v324 = vunpack.c.l.b16 %v180
  %v325 = vunpack.c.l.b16 %v181
  %v326 = vunpack.c.l.b16 %v182
  %v327 = vunpack.c.l.b16 %v183
  %v328 = vunpack.c.l.b16 %v184
  %v329 = vunpack.c.l.b16 %v185
  %v330 = vunpack.c.l.b16 %v186
  %v331 = vunpack.c.l.b16 %v187
  %v332 = vunpack.c.l.b16 %v188
  %v333 = vunpack.c.l.b16 %v189
  %v334 = vunpack.c.l.b16 %v190
  %v335 = vunpack.c.l.b16 %v191
  %v336 = vunpack.c.l.b16 %v192
  %v337 = vunpack.c.l.b16 %v193
  %v338 = vunpack.c.l.b16 %v194
  %v339 = vunpack.c.l.b16 %v195
  %v340 = vunpack.c.l.b16 %v196
  %v341 = vunpack.c.l.b16 %v197
  %v342 = vunpack.c.l.b16 %v198
  %v343 = vunpack.c.l.b16 %v199
  %v344 = vunpack.c.l.b16 %v200
  %v345 = vunpack.c.l.b16 %v201
  %v346 = vunpack.c.l.b16 %v202
  %v347 = vunpack.c.l.b16 %v203
  %v348 = vunpack.c.l.b16 %v204
  %v349 = vunpack.c.l.b16 %v205
  %v350 = vunpack.c.l.b16 %v206
  %v351 = vunpack.c.l.b16 %v207
  %v352 = vunpack.c.l.b16 %v208
  %v353 = vunpack.c.l.b16 %v209
  %v354 = vunpack.c.l.b16 %v210
  %v355 = vunpack.c.l.b16 %v211
  %v356 = vunpack.c.l.b16 %v212
  %v357 = vunpack.c.l.b16 %v213
  %v358 = vpack.c.b16 %v295, %v294
  %v359 = vpack.c.b16 %v297, %v296
  %v360 = vpack.c.b16 %v299, %v298
  %v361 = vpack.c.b16 %v301, %v300
  %v362 = vpack.c.b16 %v303, %v302
  %v363 = vpack.c.b16 %v305, %v304
  %v364 = vpack.c.b16 %v307, %v306
  %v365 = vpack.c.b16 %v309, %v308
  %v366 = vpack.c.b16 %v311, %v310
  %v367 = vpack.c.b16 %v313, %v312
  %v368 = vpack.c.b16 %v315, %v314
  %v369 = vpack.c.b16 %v317, %v316
  %v370 = vpack.c.b16 %v319, %v318
  %v371 = vpack.c.b16 %v321, %v320
  %v372 = vpack.c.b16 %v323, %v322
  %v373 = vpack.c.b16 %v325, %v324
  %v374 = vpack.c.b16 %v327, %v326
  %v375 = vpack.c.b16 %v329, %v328
  %v376 = vpack.c.b16 %v331, %v330
  %v377 = vpack.c.b16 %v333, %v332
  %v378 = vpack.c.b16 %v335, %v334
  %v379 = vpack.c.b16 %v337, %v336
  %v380 = vpack.c.b16 %v339, %v338
  %v381 = vpack.c.b16 %v341, %v340
  %v382 = vpack.c.b16 %v343, %v342
  %v383 = vpack.c.b16 %v345, %v344
  %v384 = vpack.c.b16 %v347, %v346
  %v385 = vpack.c.b16 %v349, %v348
  %v386 = vpack.c.b16 %v351, %v350
  %v387 = vpack.c.b16 %v353, %v352
  %v388 = vpack.c.b16 %v355, %v354
  %v389 = vpack.c.b16 %v357, %v356
  %v438 = vunpack.c.l.b16 %v214
  %v439 = vunpack.c.l.b16 %v215
  %v440 = vunpack.c.l.b16 %v216
  %v441 = vunpack.c.l.b16 %v217
  %v442 = vunpack.c.l.b16 %v218
  %v443 = vunpack.c.l.b16 %v219
  %v444 = vunpack.c.l.b16 %v220
  %v445 = vunpack.c.l.b16 %v221
  %v446 = vunpack.c.l.b16 %v222
  %v447 = vunpack.c.l.b16 %v223
  %v448 = vunpack.c.l.b16 %v224
  %v449 = vunpack.c.l.b16 %v225
  %v450 = vunpack.c.l.b16 %v226
  %v451 = vunpack.c.l.b16 %v227
  %v452 = vunpack.c.l.b16 %v228
  %v453 = vunpack.c.l.b16 %v229
  %v454 = vpack.c.b16 %v439, %v438
  %v455 = vpack.c.b16 %v441, %v440
  %v456 = vpack.c.b16 %v443, %v442
  %v457 = vpack.c.b16 %v445, %v444
  %v458 = vpack.c.b16 %v447, %v446
  %v459 = vpack.c.b16 %v449, %v448
  %v460 = vpack.c.b16 %v451, %v450
  %v461 = vpack.c.b16 %v453, %v452
  %470 = vmatpush.bf16.msra.mxu0 %v461
  %471 = vmatpush.bf16.msra.mxu0 %v460
  %472 = vmatpush.bf16.msra.mxu0 %v459
  %473 = vmatpush.bf16.msra.mxu0 %v458
  %474 = vmatpush.bf16.msra.mxu0 %v457
  %475 = vmatpush.bf16.msra.mxu0 %v456
  %476 = vmatpush.bf16.msra.mxu0 %v455
  %477 = vmatpush.bf16.msra.mxu0 %v454
  %478 = vmatmul.bf16.gmra.mxu0 %v358
  %v479 = vpop.f32.mrf.mxu0
  %v480 = vadd.f32 0.0, %v479
  %v481 = vpop.f32.mrf.mxu0
  %v482 = vadd.f32 0.0, %v481
  %483 = vmatmul.bf16.gmra.mxu0 %v359
  %v484 = vpop.f32.mrf.mxu0
  %v485 = vadd.f32 0.0, %v484
  %v486 = vpop.f32.mrf.mxu0
  %v487 = vadd.f32 0.0, %v486
  %488 = vmatmul.bf16.gmra.mxu0 %v360
  %v489 = vpop.f32.mrf.mxu0
  %v490 = vadd.f32 0.0, %v489
  %v491 = vpop.f32.mrf.mxu0
  %v492 = vadd.f32 0.0, %v491
  %493 = vmatmul.bf16.gmra.mxu0 %v361
  %v494 = vpop.f32.mrf.mxu0
  %v495 = vadd.f32 0.0, %v494
  %v496 = vpop.f32.mrf.mxu0
  %v497 = vadd.f32 0.0, %v496
  %498 = vmatmul.bf16.gmra.mxu0 %v362
  %v499 = vpop.f32.mrf.mxu0
  %v500 = vadd.f32 0.0, %v499
  %v501 = vpop.f32.mrf.mxu0
  %v502 = vadd.f32 0.0, %v501
  %503 = vmatmul.bf16.gmra.mxu0 %v363
  %v504 = vpop.f32.mrf.mxu0
  %v505 = vadd.f32 0.0, %v504
  %v506 = vpop.f32.mrf.mxu0
  %v507 = vadd.f32 0.0, %v506
  %508 = vmatmul.bf16.gmra.mxu0 %v364
  %v509 = vpop.f32.mrf.mxu0
  %v510 = vadd.f32 0.0, %v509
  %v511 = vpop.f32.mrf.mxu0
  %v512 = vadd.f32 0.0, %v511
  %513 = vmatmul.bf16.gmra.mxu0 %v365
  %v514 = vpop.f32.mrf.mxu0
  %v515 = vadd.f32 0.0, %v514
  %v516 = vpop.f32.mrf.mxu0
  %v517 = vadd.f32 0.0, %v516
  %518 = vmatmul.bf16.gmra.mxu0 %v366
  %v519 = vpop.f32.mrf.mxu0
  %v520 = vadd.f32 0.0, %v519
  %v521 = vpop.f32.mrf.mxu0
  %v522 = vadd.f32 0.0, %v521
  %523 = vmatmul.bf16.gmra.mxu0 %v367
  %v524 = vpop.f32.mrf.mxu0
  %v525 = vadd.f32 0.0, %v524
  %v526 = vpop.f32.mrf.mxu0
  %v527 = vadd.f32 0.0, %v526
  %528 = vmatmul.bf16.gmra.mxu0 %v368
  %v529 = vpop.f32.mrf.mxu0
  %v530 = vadd.f32 0.0, %v529
  %v531 = vpop.f32.mrf.mxu0
  %v532 = vadd.f32 0.0, %v531
  %533 = vmatmul.bf16.gmra.mxu0 %v369
  %v534 = vpop.f32.mrf.mxu0
  %v535 = vadd.f32 0.0, %v534
  %v536 = vpop.f32.mrf.mxu0
  %v537 = vadd.f32 0.0, %v536
  %538 = vmatmul.bf16.gmra.mxu0 %v370
  %v539 = vpop.f32.mrf.mxu0
  %v540 = vadd.f32 0.0, %v539
  %v541 = vpop.f32.mrf.mxu0
  %v542 = vadd.f32 0.0, %v541
  %543 = vmatmul.bf16.gmra.mxu0 %v371
  %v544 = vpop.f32.mrf.mxu0
  %v545 = vadd.f32 0.0, %v544
  %v546 = vpop.f32.mrf.mxu0
  %v547 = vadd.f32 0.0, %v546
  %548 = vmatmul.bf16.gmra.mxu0 %v372
  %v549 = vpop.f32.mrf.mxu0
  %v550 = vadd.f32 0.0, %v549
  %v551 = vpop.f32.mrf.mxu0
  %v552 = vadd.f32 0.0, %v551
  %553 = vmatmul.bf16.gmra.mxu0 %v373
  %v554 = vpop.f32.mrf.mxu0
  %v555 = vadd.f32 0.0, %v554
  %v556 = vpop.f32.mrf.mxu0
  %v557 = vadd.f32 0.0, %v556
  %558 = vmatmul.bf16.gmra.mxu0 %v374
  %v559 = vpop.f32.mrf.mxu0
  %v560 = vadd.f32 0.0, %v559
  %v561 = vpop.f32.mrf.mxu0
  %v562 = vadd.f32 0.0, %v561
  %563 = vmatmul.bf16.gmra.mxu0 %v375
  %v564 = vpop.f32.mrf.mxu0
  %v565 = vadd.f32 0.0, %v564
  %v566 = vpop.f32.mrf.mxu0
  %v567 = vadd.f32 0.0, %v566
  %568 = vmatmul.bf16.gmra.mxu0 %v376
  %v569 = vpop.f32.mrf.mxu0
  %v570 = vadd.f32 0.0, %v569
  %v571 = vpop.f32.mrf.mxu0
  %v572 = vadd.f32 0.0, %v571
  %573 = vmatmul.bf16.gmra.mxu0 %v377
  %v574 = vpop.f32.mrf.mxu0
  %v575 = vadd.f32 0.0, %v574
  %v576 = vpop.f32.mrf.mxu0
  %v577 = vadd.f32 0.0, %v576
  %578 = vmatmul.bf16.gmra.mxu0 %v378
  %v579 = vpop.f32.mrf.mxu0
  %v580 = vadd.f32 0.0, %v579
  %v581 = vpop.f32.mrf.mxu0
  %v582 = vadd.f32 0.0, %v581
  %583 = vmatmul.bf16.gmra.mxu0 %v379
  %v584 = vpop.f32.mrf.mxu0
  %v585 = vadd.f32 0.0, %v584
  %v586 = vpop.f32.mrf.mxu0
  %v587 = vadd.f32 0.0, %v586
  %588 = vmatmul.bf16.gmra.mxu0 %v380
  %v589 = vpop.f32.mrf.mxu0
  %v590 = vadd.f32 0.0, %v589
  %v591 = vpop.f32.mrf.mxu0
  %v592 = vadd.f32 0.0, %v591
  %593 = vmatmul.bf16.gmra.mxu0 %v381
  %v594 = vpop.f32.mrf.mxu0
  %v595 = vadd.f32 0.0, %v594
  %v596 = vpop.f32.mrf.mxu0
  %v597 = vadd.f32 0.0, %v596
  %598 = vmatmul.bf16.gmra.mxu0 %v382
  %v599 = vpop.f32.mrf.mxu0
  %v600 = vadd.f32 0.0, %v599
  %v601 = vpop.f32.mrf.mxu0
  %v602 = vadd.f32 0.0, %v601
  %603 = vmatmul.bf16.gmra.mxu0 %v383
  %v604 = vpop.f32.mrf.mxu0
  %v605 = vadd.f32 0.0, %v604
  %v606 = vpop.f32.mrf.mxu0
  %v607 = vadd.f32 0.0, %v606
  %608 = vmatmul.bf16.gmra.mxu0 %v384
  %v609 = vpop.f32.mrf.mxu0
  %v610 = vadd.f32 0.0, %v609
  %v611 = vpop.f32.mrf.mxu0
  %v612 = vadd.f32 0.0, %v611
  %613 = vmatmul.bf16.gmra.mxu0 %v385
  %v614 = vpop.f32.mrf.mxu0
  %v615 = vadd.f32 0.0, %v614
  %v616 = vpop.f32.mrf.mxu0
  %v617 = vadd.f32 0.0, %v616
  %618 = vmatmul.bf16.gmra.mxu0 %v386
  %v619 = vpop.f32.mrf.mxu0
  %v620 = vadd.f32 0.0, %v619
  %v621 = vpop.f32.mrf.mxu0
  %v622 = vadd.f32 0.0, %v621
  %623 = vmatmul.bf16.gmra.mxu0 %v387
  %v624 = vpop.f32.mrf.mxu0
  %v625 = vadd.f32 0.0, %v624
  %v626 = vpop.f32.mrf.mxu0
  %v627 = vadd.f32 0.0, %v626
  %628 = vmatmul.bf16.gmra.mxu0 %v388
  %v629 = vpop.f32.mrf.mxu0
  %v630 = vadd.f32 0.0, %v629
  %v631 = vpop.f32.mrf.mxu0
  %v632 = vadd.f32 0.0, %v631
  %633 = vmatmul.bf16.gmra.mxu0 %v389
  %v634 = vpop.f32.mrf.mxu0
  %v635 = vadd.f32 0.0, %v634
  %v636 = vpop.f32.mrf.mxu0
  %v637 = vadd.f32 0.0, %v636
  %638 = vdwg.mxu0
  %v639 = vadd.f32 %v86, %v480
  %v640 = vadd.f32 %v87, %v482
  %v641 = vadd.f32 %v88, %v485
  %v642 = vadd.f32 %v89, %v487
  %v643 = vadd.f32 %v90, %v490
  %v644 = vadd.f32 %v91, %v492
  %v645 = vadd.f32 %v92, %v495
  %v646 = vadd.f32 %v93, %v497
  %v647 = vadd.f32 %v94, %v500
  %v648 = vadd.f32 %v95, %v502
  %v649 = vadd.f32 %v96, %v505
  %v650 = vadd.f32 %v97, %v507
  %v651 = vadd.f32 %v98, %v510
  %v652 = vadd.f32 %v99, %v512
  %v653 = vadd.f32 %v100, %v515
  %v654 = vadd.f32 %v101, %v517
  %v655 = vadd.f32 %v102, %v520
  %v656 = vadd.f32 %v103, %v522
  %v657 = vadd.f32 %v104, %v525
  %v658 = vadd.f32 %v105, %v527
  %v659 = vadd.f32 %v106, %v530
  %v660 = vadd.f32 %v107, %v532
  %v661 = vadd.f32 %v108, %v535
  %v662 = vadd.f32 %v109, %v537
  %v663 = vadd.f32 %v110, %v540
  %v664 = vadd.f32 %v111, %v542
  %v665 = vadd.f32 %v112, %v545
  %v666 = vadd.f32 %v113, %v547
  %v667 = vadd.f32 %v114, %v550
  %v668 = vadd.f32 %v115, %v552
  %v669 = vadd.f32 %v116, %v555
  %v670 = vadd.f32 %v117, %v557
  %v671 = vadd.f32 %v118, %v560
  %v672 = vadd.f32 %v119, %v562
  %v673 = vadd.f32 %v120, %v565
  %v674 = vadd.f32 %v121, %v567
  %v675 = vadd.f32 %v122, %v570
  %v676 = vadd.f32 %v123, %v572
  %v677 = vadd.f32 %v124, %v575
  %v678 = vadd.f32 %v125, %v577
  %v679 = vadd.f32 %v126, %v580
  %v680 = vadd.f32 %v127, %v582
  %v681 = vadd.f32 %v128, %v585
  %v682 = vadd.f32 %v129, %v587
  %v683 = vadd.f32 %v130, %v590
  %v684 = vadd.f32 %v131, %v592
  %v685 = vadd.f32 %v132, %v595
  %v686 = vadd.f32 %v133, %v597
  %v687 = vadd.f32 %v134, %v600
  %v688 = vadd.f32 %v135, %v602
  %v689 = vadd.f32 %v136, %v605
  %v690 = vadd.f32 %v137, %v607
  %v691 = vadd.f32 %v138, %v610
  %v692 = vadd.f32 %v139, %v612
  %v693 = vadd.f32 %v140, %v615
  %v694 = vadd.f32 %v141, %v617
  %v695 = vadd.f32 %v142, %v620
  %v696 = vadd.f32 %v143, %v622
  %v697 = vadd.f32 %v144, %v625
  %v698 = vadd.f32 %v145, %v627
  %v699 = vadd.f32 %v146, %v630
  %v700 = vadd.f32 %v147, %v632
  %v701 = vadd.f32 %v148, %v635
  %v702 = vadd.f32 %v149, %v637
  %703 = vst [vmem:[%s3] sm:$0xff] %v639
  %704 = vst [vmem:[%s3 + $0x8] sm:$0xff] %v640
  %705 = vst [vmem:[%s3 + $0x10] sm:$0xff] %v641
  %706 = vst [vmem:[%s3 + $0x18] sm:$0xff] %v642
  %707 = vst [vmem:[%s3 + $0x20] sm:$0xff] %v643
  %708 = vst [vmem:[%s3 + $0x28] sm:$0xff] %v644
  %709 = vst [vmem:[%s3 + $0x30] sm:$0xff] %v645
  %710 = vst [vmem:[%s3 + $0x38] sm:$0xff] %v646
  %711 = vst [vmem:[%s3 + $0x40] sm:$0xff] %v647
  %712 = vst [vmem:[%s3 + $0x48] sm:$0xff] %v648
  %713 = vst [vmem:[%s3 + $0x50] sm:$0xff] %v649
  %714 = vst [vmem:[%s3 + $0x58] sm:$0xff] %v650
  %715 = vst [vmem:[%s3 + $0x60] sm:$0xff] %v651
  %716 = vst [vmem:[%s3 + $0x68] sm:$0xff] %v652
  %717 = vst [vmem:[%s3 + $0x70] sm:$0xff] %v653
  %718 = vst [vmem:[%s3 + $0x78] sm:$0xff] %v654
  %719 = vst [vmem:[%s3 + $0x80] sm:$0xff] %v655
  %720 = vst [vmem:[%s3 + $0x88] sm:$0xff] %v656
  %721 = vst [vmem:[%s3 + $0x90] sm:$0xff] %v657
  %722 = vst [vmem:[%s3 + $0x98] sm:$0xff] %v658
  %723 = vst [vmem:[%s3 + $0xa0] sm:$0xff] %v659
  %724 = vst [vmem:[%s3 + $0xa8] sm:$0xff] %v660
  %725 = vst [vmem:[%s3 + $0xb0] sm:$0xff] %v661
  %726 = vst [vmem:[%s3 + $0xb8] sm:$0xff] %v662
  %727 = vst [vmem:[%s3 + $0xc0] sm:$0xff] %v663
  %728 = vst [vmem:[%s3 + $0xc8] sm:$0xff] %v664
  %729 = vst [vmem:[%s3 + $0xd0] sm:$0xff] %v665
  %730 = vst [vmem:[%s3 + $0xd8] sm:$0xff] %v666
  %731 = vst [vmem:[%s3 + $0xe0] sm:$0xff] %v667
  %732 = vst [vmem:[%s3 + $0xe8] sm:$0xff] %v668
  %733 = vst [vmem:[%s3 + $0xf0] sm:$0xff] %v669
  %734 = vst [vmem:[%s3 + $0xf8] sm:$0xff] %v670
  %735 = vst [vmem:[%s3 + $0x100] sm:$0xff] %v671
  %736 = vst [vmem:[%s3 + $0x108] sm:$0xff] %v672
  %737 = vst [vmem:[%s3 + $0x110] sm:$0xff] %v673
  %738 = vst [vmem:[%s3 + $0x118] sm:$0xff] %v674
  %739 = vst [vmem:[%s3 + $0x120] sm:$0xff] %v675
  %740 = vst [vmem:[%s3 + $0x128] sm:$0xff] %v676
  %741 = vst [vmem:[%s3 + $0x130] sm:$0xff] %v677
  %742 = vst [vmem:[%s3 + $0x138] sm:$0xff] %v678
  %743 = vst [vmem:[%s3 + $0x140] sm:$0xff] %v679
  %744 = vst [vmem:[%s3 + $0x148] sm:$0xff] %v680
  %745 = vst [vmem:[%s3 + $0x150] sm:$0xff] %v681
  %746 = vst [vmem:[%s3 + $0x158] sm:$0xff] %v682
  %747 = vst [vmem:[%s3 + $0x160] sm:$0xff] %v683
  %748 = vst [vmem:[%s3 + $0x168] sm:$0xff] %v684
  %749 = vst [vmem:[%s3 + $0x170] sm:$0xff] %v685
  %750 = vst [vmem:[%s3 + $0x178] sm:$0xff] %v686
  %751 = vst [vmem:[%s3 + $0x180] sm:$0xff] %v687
  %752 = vst [vmem:[%s3 + $0x188] sm:$0xff] %v688
  %753 = vst [vmem:[%s3 + $0x190] sm:$0xff] %v689
  %754 = vst [vmem:[%s3 + $0x198] sm:$0xff] %v690
  %755 = vst [vmem:[%s3 + $0x1a0] sm:$0xff] %v691
  %756 = vst [vmem:[%s3 + $0x1a8] sm:$0xff] %v692
  %757 = vst [vmem:[%s3 + $0x1b0] sm:$0xff] %v693
  %758 = vst [vmem:[%s3 + $0x1b8] sm:$0xff] %v694
  %759 = vst [vmem:[%s3 + $0x1c0] sm:$0xff] %v695
  %760 = vst [vmem:[%s3 + $0x1c8] sm:$0xff] %v696
  %761 = vst [vmem:[%s3 + $0x1d0] sm:$0xff] %v697
  %762 = vst [vmem:[%s3 + $0x1d8] sm:$0xff] %v698
  %763 = vst [vmem:[%s3 + $0x1e0] sm:$0xff] %v699
  %764 = vst [vmem:[%s3 + $0x1e8] sm:$0xff] %v700
  %765 = vst [vmem:[%s3 + $0x1f0] sm:$0xff] %v701
  %766 = vst [vmem:[%s3 + $0x1f8] sm:$0xff] %v702
  // Predicated region
  $region18: #{_lambda_.7} parent=0 // pred_check
    %p767 = pneg %p14
  $region19: #{_lambda_.7} parent=0 // pred_check_branch
    %769 = sbr.rel (%p767) target = $region21
  $region20: #{_lambda_.7} parent=0 // pred_region
    %v770 = vld [vmem:[%s3] sm:$0xff]
    %v771 = vld [vmem:[%s3 + $0x8] sm:$0xff]
    %v772 = vld [vmem:[%s3 + $0x10] sm:$0xff]
    %v773 = vld [vmem:[%s3 + $0x18] sm:$0xff]
    %v774 = vld [vmem:[%s3 + $0x20] sm:$0xff]
    %v775 = vld [vmem:[%s3 + $0x28] sm:$0xff]
    %v776 = vld [vmem:[%s3 + $0x30] sm:$0xff]
    %v777 = vld [vmem:[%s3 + $0x38] sm:$0xff]
    %v778 = vld [vmem:[%s3 + $0x40] sm:$0xff]
    %v779 = vld [vmem:[%s3 + $0x48] sm:$0xff]
    %v780 = vld [vmem:[%s3 + $0x50] sm:$0xff]
    %v781 = vld [vmem:[%s3 + $0x58] sm:$0xff]
    %v782 = vld [vmem:[%s3 + $0x60] sm:$0xff]
    %v783 = vld [vmem:[%s3 + $0x68] sm:$0xff]
    %v784 = vld [vmem:[%s3 + $0x70] sm:$0xff]
    %v785 = vld [vmem:[%s3 + $0x78] sm:$0xff]
    %v786 = vld [vmem:[%s3 + $0x80] sm:$0xff]
    %v787 = vld [vmem:[%s3 + $0x88] sm:$0xff]
    %v788 = vld [vmem:[%s3 + $0x90] sm:$0xff]
    %v789 = vld [vmem:[%s3 + $0x98] sm:$0xff]
    %v790 = vld [vmem:[%s3 + $0xa0] sm:$0xff]
    %v791 = vld [vmem:[%s3 + $0xa8] sm:$0xff]
    %v792 = vld [vmem:[%s3 + $0xb0] sm:$0xff]
    %v793 = vld [vmem:[%s3 + $0xb8] sm:$0xff]
    %v794 = vld [vmem:[%s3 + $0xc0] sm:$0xff]
    %v795 = vld [vmem:[%s3 + $0xc8] sm:$0xff]
    %v796 = vld [vmem:[%s3 + $0xd0] sm:$0xff]
    %v797 = vld [vmem:[%s3 + $0xd8] sm:$0xff]
    %v798 = vld [vmem:[%s3 + $0xe0] sm:$0xff]
    %v799 = vld [vmem:[%s3 + $0xe8] sm:$0xff]
    %v800 = vld [vmem:[%s3 + $0xf0] sm:$0xff]
    %v801 = vld [vmem:[%s3 + $0xf8] sm:$0xff]
    %v802 = vld [vmem:[%s3 + $0x100] sm:$0xff]
    %v803 = vld [vmem:[%s3 + $0x108] sm:$0xff]
    %v804 = vld [vmem:[%s3 + $0x110] sm:$0xff]
    %v805 = vld [vmem:[%s3 + $0x118] sm:$0xff]
    %v806 = vld [vmem:[%s3 + $0x120] sm:$0xff]
    %v807 = vld [vmem:[%s3 + $0x128] sm:$0xff]
    %v808 = vld [vmem:[%s3 + $0x130] sm:$0xff]
    %v809 = vld [vmem:[%s3 + $0x138] sm:$0xff]
    %v810 = vld [vmem:[%s3 + $0x140] sm:$0xff]
    %v811 = vld [vmem:[%s3 + $0x148] sm:$0xff]
    %v812 = vld [vmem:[%s3 + $0x150] sm:$0xff]
    %v813 = vld [vmem:[%s3 + $0x158] sm:$0xff]
    %v814 = vld [vmem:[%s3 + $0x160] sm:$0xff]
    %v815 = vld [vmem:[%s3 + $0x168] sm:$0xff]
    %v816 = vld [vmem:[%s3 + $0x170] sm:$0xff]
    %v817 = vld [vmem:[%s3 + $0x178] sm:$0xff]
    %v818 = vld [vmem:[%s3 + $0x180] sm:$0xff]
    %v819 = vld [vmem:[%s3 + $0x188] sm:$0xff]
    %v820 = vld [vmem:[%s3 + $0x190] sm:$0xff]
    %v821 = vld [vmem:[%s3 + $0x198] sm:$0xff]
    %v822 = vld [vmem:[%s3 + $0x1a0] sm:$0xff]
    %v823 = vld [vmem:[%s3 + $0x1a8] sm:$0xff]
    %v824 = vld [vmem:[%s3 + $0x1b0] sm:$0xff]
    %v825 = vld [vmem:[%s3 + $0x1b8] sm:$0xff]
    %v826 = vld [vmem:[%s3 + $0x1c0] sm:$0xff]
    %v827 = vld [vmem:[%s3 + $0x1c8] sm:$0xff]
    %v828 = vld [vmem:[%s3 + $0x1d0] sm:$0xff]
    %v829 = vld [vmem:[%s3 + $0x1d8] sm:$0xff]
    %v830 = vld [vmem:[%s3 + $0x1e0] sm:$0xff]
    %v831 = vld [vmem:[%s3 + $0x1e8] sm:$0xff]
    %v832 = vld [vmem:[%s3 + $0x1f0] sm:$0xff]
    %v833 = vld [vmem:[%s3 + $0x1f8] sm:$0xff]
    %v834 = vmul.f32 %v770, 0.2
    %v835 = vmul.f32 %v771, 0.2
    %v836 = vmul.f32 %v772, 0.2
    %v837 = vmul.f32 %v773, 0.2
    %v838 = vmul.f32 %v774, 0.2
    %v839 = vmul.f32 %v775, 0.2
    %v840 = vmul.f32 %v776, 0.2
    %v841 = vmul.f32 %v777, 0.2
    %v842 = vmul.f32 %v778, 0.2
    %v843 = vmul.f32 %v779, 0.2
    %v844 = vmul.f32 %v780, 0.2
    %v845 = vmul.f32 %v781, 0.2
    %v846 = vmul.f32 %v782, 0.2
    %v847 = vmul.f32 %v783, 0.2
    %v848 = vmul.f32 %v784, 0.2
    %v849 = vmul.f32 %v785, 0.2
    %v850 = vmul.f32 %v786, 0.2
    %v851 = vmul.f32 %v787, 0.2
    %v852 = vmul.f32 %v788, 0.2
    %v853 = vmul.f32 %v789, 0.2
    %v854 = vmul.f32 %v790, 0.2
    %v855 = vmul.f32 %v791, 0.2
    %v856 = vmul.f32 %v792, 0.2
    %v857 = vmul.f32 %v793, 0.2
    %v858 = vmul.f32 %v794, 0.2
    %v859 = vmul.f32 %v795, 0.2
    %v860 = vmul.f32 %v796, 0.2
    %v861 = vmul.f32 %v797, 0.2
    %v862 = vmul.f32 %v798, 0.2
    %v863 = vmul.f32 %v799, 0.2
    %v864 = vmul.f32 %v800, 0.2
    %v865 = vmul.f32 %v801, 0.2
    %v866 = vmul.f32 %v802, 0.2
    %v867 = vmul.f32 %v803, 0.2
    %v868 = vmul.f32 %v804, 0.2
    %v869 = vmul.f32 %v805, 0.2
    %v870 = vmul.f32 %v806, 0.2
    %v871 = vmul.f32 %v807, 0.2
    %v872 = vmul.f32 %v808, 0.2
    %v873 = vmul.f32 %v809, 0.2
    %v874 = vmul.f32 %v810, 0.2
    %v875 = vmul.f32 %v811, 0.2
    %v876 = vmul.f32 %v812, 0.2
    %v877 = vmul.f32 %v813, 0.2
    %v878 = vmul.f32 %v814, 0.2
    %v879 = vmul.f32 %v815, 0.2
    %v880 = vmul.f32 %v816, 0.2
    %v881 = vmul.f32 %v817, 0.2
    %v882 = vmul.f32 %v818, 0.2
    %v883 = vmul.f32 %v819, 0.2
    %v884 = vmul.f32 %v820, 0.2
    %v885 = vmul.f32 %v821, 0.2
    %v886 = vmul.f32 %v822, 0.2
    %v887 = vmul.f32 %v823, 0.2
    %v888 = vmul.f32 %v824, 0.2
    %v889 = vmul.f32 %v825, 0.2
    %v890 = vmul.f32 %v826, 0.2
    %v891 = vmul.f32 %v827, 0.2
    %v892 = vmul.f32 %v828, 0.2
    %v893 = vmul.f32 %v829, 0.2
    %v894 = vmul.f32 %v830, 0.2
    %v895 = vmul.f32 %v831, 0.2
    %v896 = vmul.f32 %v832, 0.2
    %v897 = vmul.f32 %v833, 0.2
    %v898 = vmax.f32 %v770, %v834
    %v899 = vmax.f32 %v771, %v835
    %v900 = vmax.f32 %v772, %v836
    %v901 = vmax.f32 %v773, %v837
    %v902 = vmax.f32 %v774, %v838
    %v903 = vmax.f32 %v775, %v839
    %v904 = vmax.f32 %v776, %v840
    %v905 = vmax.f32 %v777, %v841
    %v906 = vmax.f32 %v778, %v842
    %v907 = vmax.f32 %v779, %v843
    %v908 = vmax.f32 %v780, %v844
    %v909 = vmax.f32 %v781, %v845
    %v910 = vmax.f32 %v782, %v846
    %v911 = vmax.f32 %v783, %v847
    %v912 = vmax.f32 %v784, %v848
    %v913 = vmax.f32 %v785, %v849
    %v914 = vmax.f32 %v786, %v850
    %v915 = vmax.f32 %v787, %v851
    %v916 = vmax.f32 %v788, %v852
    %v917 = vmax.f32 %v789, %v853
    %v918 = vmax.f32 %v790, %v854
    %v919 = vmax.f32 %v791, %v855
    %v920 = vmax.f32 %v792, %v856
    %v921 = vmax.f32 %v793, %v857
    %v922 = vmax.f32 %v794, %v858
    %v923 = vmax.f32 %v795, %v859
    %v924 = vmax.f32 %v796, %v860
    %v925 = vmax.f32 %v797, %v861
    %v926 = vmax.f32 %v798, %v862
    %v927 = vmax.f32 %v799, %v863
    %v928 = vmax.f32 %v800, %v864
    %v929 = vmax.f32 %v801, %v865
    %v930 = vmax.f32 %v802, %v866
    %v931 = vmax.f32 %v803, %v867
    %v932 = vmax.f32 %v804, %v868
    %v933 = vmax.f32 %v805, %v869
    %v934 = vmax.f32 %v806, %v870
    %v935 = vmax.f32 %v807, %v871
    %v936 = vmax.f32 %v808, %v872
    %v937 = vmax.f32 %v809, %v873
    %v938 = vmax.f32 %v810, %v874
    %v939 = vmax.f32 %v811, %v875
    %v940 = vmax.f32 %v812, %v876
    %v941 = vmax.f32 %v813, %v877
    %v942 = vmax.f32 %v814, %v878
    %v943 = vmax.f32 %v815, %v879
    %v944 = vmax.f32 %v816, %v880
    %v945 = vmax.f32 %v817, %v881
    %v946 = vmax.f32 %v818, %v882
    %v947 = vmax.f32 %v819, %v883
    %v948 = vmax.f32 %v820, %v884
    %v949 = vmax.f32 %v821, %v885
    %v950 = vmax.f32 %v822, %v886
    %v951 = vmax.f32 %v823, %v887
    %v952 = vmax.f32 %v824, %v888
    %v953 = vmax.f32 %v825, %v889
    %v954 = vmax.f32 %v826, %v890
    %v955 = vmax.f32 %v827, %v891
    %v956 = vmax.f32 %v828, %v892
    %v957 = vmax.f32 %v829, %v893
    %v958 = vmax.f32 %v830, %v894
    %v959 = vmax.f32 %v831, %v895
    %v960 = vmax.f32 %v832, %v896
    %v961 = vmax.f32 %v833, %v897
    %962 = vst [vmem:[%s3] sm:$0xff] %v898
    %963 = vst [vmem:[%s3 + $0x8] sm:$0xff] %v899
    %964 = vst [vmem:[%s3 + $0x10] sm:$0xff] %v900
    %965 = vst [vmem:[%s3 + $0x18] sm:$0xff] %v901
    %966 = vst [vmem:[%s3 + $0x20] sm:$0xff] %v902
    %967 = vst [vmem:[%s3 + $0x28] sm:$0xff] %v903
    %968 = vst [vmem:[%s3 + $0x30] sm:$0xff] %v904
    %969 = vst [vmem:[%s3 + $0x38] sm:$0xff] %v905
    %970 = vst [vmem:[%s3 + $0x40] sm:$0xff] %v906
    %971 = vst [vmem:[%s3 + $0x48] sm:$0xff] %v907
    %972 = vst [vmem:[%s3 + $0x50] sm:$0xff] %v908
    %973 = vst [vmem:[%s3 + $0x58] sm:$0xff] %v909
    %974 = vst [vmem:[%s3 + $0x60] sm:$0xff] %v910
    %975 = vst [vmem:[%s3 + $0x68] sm:$0xff] %v911
    %976 = vst [vmem:[%s3 + $0x70] sm:$0xff] %v912
    %977 = vst [vmem:[%s3 + $0x78] sm:$0xff] %v913
    %978 = vst [vmem:[%s3 + $0x80] sm:$0xff] %v914
    %979 = vst [vmem:[%s3 + $0x88] sm:$0xff] %v915
    %980 = vst [vmem:[%s3 + $0x90] sm:$0xff] %v916
    %981 = vst [vmem:[%s3 + $0x98] sm:$0xff] %v917
    %982 = vst [vmem:[%s3 + $0xa0] sm:$0xff] %v918
    %983 = vst [vmem:[%s3 + $0xa8] sm:$0xff] %v919
    %984 = vst [vmem:[%s3 + $0xb0] sm:$0xff] %v920
    %985 = vst [vmem:[%s3 + $0xb8] sm:$0xff] %v921
    %986 = vst [vmem:[%s3 + $0xc0] sm:$0xff] %v922
    %987 = vst [vmem:[%s3 + $0xc8] sm:$0xff] %v923
    %988 = vst [vmem:[%s3 + $0xd0] sm:$0xff] %v924
    %989 = vst [vmem:[%s3 + $0xd8] sm:$0xff] %v925
    %990 = vst [vmem:[%s3 + $0xe0] sm:$0xff] %v926
    %991 = vst [vmem:[%s3 + $0xe8] sm:$0xff] %v927
    %992 = vst [vmem:[%s3 + $0xf0] sm:$0xff] %v928
    %993 = vst [vmem:[%s3 + $0xf8] sm:$0xff] %v929
    %994 = vst [vmem:[%s3 + $0x100] sm:$0xff] %v930
    %995 = vst [vmem:[%s3 + $0x108] sm:$0xff] %v931
    %996 = vst [vmem:[%s3 + $0x110] sm:$0xff] %v932
    %997 = vst [vmem:[%s3 + $0x118] sm:$0xff] %v933
    %998 = vst [vmem:[%s3 + $0x120] sm:$0xff] %v934
    %999 = vst [vmem:[%s3 + $0x128] sm:$0xff] %v935
    %1000 = vst [vmem:[%s3 + $0x130] sm:$0xff] %v936
    %1001 = vst [vmem:[%s3 + $0x138] sm:$0xff] %v937
    %1002 = vst [vmem:[%s3 + $0x140] sm:$0xff] %v938
    %1003 = vst [vmem:[%s3 + $0x148] sm:$0xff] %v939
    %1004 = vst [vmem:[%s3 + $0x150] sm:$0xff] %v940
    %1005 = vst [vmem:[%s3 + $0x158] sm:$0xff] %v941
    %1006 = vst [vmem:[%s3 + $0x160] sm:$0xff] %v942
    %1007 = vst [vmem:[%s3 + $0x168] sm:$0xff] %v943
    %1008 = vst [vmem:[%s3 + $0x170] sm:$0xff] %v944
    %1009 = vst [vmem:[%s3 + $0x178] sm:$0xff] %v945
    %1010 = vst [vmem:[%s3 + $0x180] sm:$0xff] %v946
    %1011 = vst [vmem:[%s3 + $0x188] sm:$0xff] %v947
    %1012 = vst [vmem:[%s3 + $0x190] sm:$0xff] %v948
    %1013 = vst [vmem:[%s3 + $0x198] sm:$0xff] %v949
    %1014 = vst [vmem:[%s3 + $0x1a0] sm:$0xff] %v950
    %1015 = vst [vmem:[%s3 + $0x1a8] sm:$0xff] %v951
    %1016 = vst [vmem:[%s3 + $0x1b0] sm:$0xff] %v952
    %1017 = vst [vmem:[%s3 + $0x1b8] sm:$0xff] %v953
    %1018 = vst [vmem:[%s3 + $0x1c0] sm:$0xff] %v954
    %1019 = vst [vmem:[%s3 + $0x1c8] sm:$0xff] %v955
    %1020 = vst [vmem:[%s3 + $0x1d0] sm:$0xff] %v956
    %1021 = vst [vmem:[%s3 + $0x1d8] sm:$0xff] %v957
    %1022 = vst [vmem:[%s3 + $0x1e0] sm:$0xff] %v958
    %1023 = vst [vmem:[%s3 + $0x1e8] sm:$0xff] %v959
    %1024 = vst [vmem:[%s3 + $0x1f0] sm:$0xff] %v960
    %1025 = vst [vmem:[%s3 + $0x1f8] sm:$0xff] %v961
  $region21: #{_lambda_.7} parent=0 // pred_fallthru
    _
  // Predicated region
  $region22: #{_lambda_.7} parent=0 // pred_check
    _
  $region23: #{_lambda_.7} parent=0 // pred_check_branch
    %1027 = sbr.rel (0) target = $region25
  $region24: #{_lambda_.7} parent=0 // pred_region
    _
  $region25: #{_lambda_.7} parent=0 // pred_fallthru
    _
  // Predicated region
  $region26: #{_lambda_.7} parent=0 // pred_check
    _
  $region27: #{_lambda_.7} parent=0 // pred_check_branch
    %1029 = sbr.rel (0) target = $region29
  $region28: #{_lambda_.7} parent=0 // pred_region
    _
  $region29: #{_lambda_.7} parent=0 // pred_fallthru
    _

// kernel: _lambda_.8
$region0: #{_lambda_.8}
  #allocation0 [shape = 'u32[]', space=smem, size = 0x4, offset = 0x4, fixed_abs, tag = 'smem constant byte address 0x4 - core index']
  #allocation1 [shape = 'u32[72,128]{1,0:T(1,128)}', space=vmem, size = 0x9000, scoped, tag = 'internal scratch']
  %s0 = inlined_call_operand.vmem [shape: bf16[128,128], index: 0, kind: input, shape index: {}]
  %s1 = inlined_call_operand.vmem [shape: bf16[128,128], index: 1, kind: input, shape index: {}]
  %s2 = inlined_call_operand.vmem [shape: f32[128,128], index: 2, kind: output, shape index: {0}]
  %s3 = inlined_call_operand.vmem [shape: f32[1,2,128], index: 3, kind: output, shape index: {1}]
  %4 = xla_tuple %s2, %s3
  %s5 = sld [smem:[#allocation0]]
  $region34: #{_lambda_.8} parent=0
    _
  %s7 = ssub.s32 1, %s5
  %s8 = scalar_select 0, %s7, %s5
  // Predicated region
  $region2: #{_lambda_.8} parent=0 // pred_check
    _
  $region3: #{_lambda_.8} parent=0 // pred_check_branch
    %10 = sbr.rel (0) target = $region5
  $region4: #{_lambda_.8} parent=0 // pred_region
    _
  $region5: #{_lambda_.8} parent=0 // pred_fallthru
    _
  // Predicated region
  $region6: #{_lambda_.8} parent=0 // pred_check
    _
  $region7: #{_lambda_.8} parent=0 // pred_check_branch
    %12 = sbr.rel (0) target = $region9
  $region8: #{_lambda_.8} parent=0 // pred_region
    _
  $region9: #{_lambda_.8} parent=0 // pred_fallthru
    _
  %p13 = scmp.eq.s32.totalorder 0, 0
  // Predicated region
  $region10: #{_lambda_.8} parent=0 // pred_check
    %p14 = pneg %p13
  $region11: #{_lambda_.8} parent=0 // pred_check_branch
    %16 = sbr.rel (%p14) target = $region13
  $region12: #{_lambda_.8} parent=0 // pred_region
    %17 = vst [vmem:[%s2] sm:$0xff] 0.0
    %18 = vst [vmem:[%s2 + $0x8] sm:$0xff] 0.0
    %19 = vst [vmem:[%s2 + $0x10] sm:$0xff] 0.0
    %20 = vst [vmem:[%s2 + $0x18] sm:$0xff] 0.0
    %21 = vst [vmem:[%s2 + $0x20] sm:$0xff] 0.0
    %22 = vst [vmem:[%s2 + $0x28] sm:$0xff] 0.0
    %23 = vst [vmem:[%s2 + $0x30] sm:$0xff] 0.0
    %24 = vst [vmem:[%s2 + $0x38] sm:$0xff] 0.0
    %25 = vst [vmem:[%s2 + $0x40] sm:$0xff] 0.0
    %26 = vst [vmem:[%s2 + $0x48] sm:$0xff] 0.0
    %27 = vst [vmem:[%s2 + $0x50] sm:$0xff] 0.0
    %28 = vst [vmem:[%s2 + $0x58] sm:$0xff] 0.0
    %29 = vst [vmem:[%s2 + $0x60] sm:$0xff] 0.0
    %30 = vst [vmem:[%s2 + $0x68] sm:$0xff] 0.0
    %31 = vst [vmem:[%s2 + $0x70] sm:$0xff] 0.0
    %32 = vst [vmem:[%s2 + $0x78] sm:$0xff] 0.0
  $region13: #{_lambda_.8} parent=0 // pred_fallthru
    _
  %v33 = vld [vmem:[%s2] sm:$0xff]
  %v34 = vld [vmem:[%s2 + $0x8] sm:$0xff]
  %v35 = vld [vmem:[%s2 + $0x10] sm:$0xff]
  %v36 = vld [vmem:[%s2 + $0x18] sm:$0xff]
  %v37 = vld [vmem:[%s2 + $0x20] sm:$0xff]
  %v38 = vld [vmem:[%s2 + $0x28] sm:$0xff]
  %v39 = vld [vmem:[%s2 + $0x30] sm:$0xff]
  %v40 = vld [vmem:[%s2 + $0x38] sm:$0xff]
  %v41 = vld [vmem:[%s2 + $0x40] sm:$0xff]
  %v42 = vld [vmem:[%s2 + $0x48] sm:$0xff]
  %v43 = vld [vmem:[%s2 + $0x50] sm:$0xff]
  %v44 = vld [vmem:[%s2 + $0x58] sm:$0xff]
  %v45 = vld [vmem:[%s2 + $0x60] sm:$0xff]
  %v46 = vld [vmem:[%s2 + $0x68] sm:$0xff]
  %v47 = vld [vmem:[%s2 + $0x70] sm:$0xff]
  %v48 = vld [vmem:[%s2 + $0x78] sm:$0xff]
  %v49 = vld [vmem:[%s0] sm:$0xf]
  %v50 = vld [vmem:[%s0 + $0x4] sm:$0xf]
  %v51 = vld [vmem:[%s0 + $0x8] sm:$0xf]
  %v52 = vld [vmem:[%s0 + $0xc] sm:$0xf]
  %v53 = vld [vmem:[%s0 + $0x10] sm:$0xf]
  %v54 = vld [vmem:[%s0 + $0x14] sm:$0xf]
  %v55 = vld [vmem:[%s0 + $0x18] sm:$0xf]
  %v56 = vld [vmem:[%s0 + $0x1c] sm:$0xf]
  %v57 = vld [vmem:[%s0 + $0x20] sm:$0xf]
  %v58 = vld [vmem:[%s0 + $0x24] sm:$0xf]
  %v59 = vld [vmem:[%s0 + $0x28] sm:$0xf]
  %v60 = vld [vmem:[%s0 + $0x2c] sm:$0xf]
  %v61 = vld [vmem:[%s0 + $0x30] sm:$0xf]
  %v62 = vld [vmem:[%s0 + $0x34] sm:$0xf]
  %v63 = vld [vmem:[%s0 + $0x38] sm:$0xf]
  %v64 = vld [vmem:[%s0 + $0x3c] sm:$0xf]
  %v65 = vld [vmem:[%s1] sm:$0xf]
  %v66 = vld [vmem:[%s1 + $0x4] sm:$0xf]
  %v67 = vld [vmem:[%s1 + $0x8] sm:$0xf]
  %v68 = vld [vmem:[%s1 + $0xc] sm:$0xf]
  %v69 = vld [vmem:[%s1 + $0x10] sm:$0xf]
  %v70 = vld [vmem:[%s1 + $0x14] sm:$0xf]
  %v71 = vld [vmem:[%s1 + $0x18] sm:$0xf]
  %v72 = vld [vmem:[%s1 + $0x1c] sm:$0xf]
  %v73 = vld [vmem:[%s1 + $0x20] sm:$0xf]
  %v74 = vld [vmem:[%s1 + $0x24] sm:$0xf]
  %v75 = vld [vmem:[%s1 + $0x28] sm:$0xf]
  %v76 = vld [vmem:[%s1 + $0x2c] sm:$0xf]
  %v77 = vld [vmem:[%s1 + $0x30] sm:$0xf]
  %v78 = vld [vmem:[%s1 + $0x34] sm:$0xf]
  %v79 = vld [vmem:[%s1 + $0x38] sm:$0xf]
  %v80 = vld [vmem:[%s1 + $0x3c] sm:$0xf]
  %v97 = vunpack.c.l.b16 %v49
  %v98 = vunpack.c.l.b16 %v50
  %v99 = vunpack.c.l.b16 %v51
  %v100 = vunpack.c.l.b16 %v52
  %v101 = vunpack.c.l.b16 %v53
  %v102 = vunpack.c.l.b16 %v54
  %v103 = vunpack.c.l.b16 %v55
  %v104 = vunpack.c.l.b16 %v56
  %v105 = vunpack.c.l.b16 %v57
  %v106 = vunpack.c.l.b16 %v58
  %v107 = vunpack.c.l.b16 %v59
  %v108 = vunpack.c.l.b16 %v60
  %v109 = vunpack.c.l.b16 %v61
  %v110 = vunpack.c.l.b16 %v62
  %v111 = vunpack.c.l.b16 %v63
  %v112 = vunpack.c.l.b16 %v64
  %v113 = vpack.c.b16 %v98, %v97
  %v114 = vpack.c.b16 %v100, %v99
  %v115 = vpack.c.b16 %v102, %v101
  %v116 = vpack.c.b16 %v104, %v103
  %v117 = vpack.c.b16 %v106, %v105
  %v118 = vpack.c.b16 %v108, %v107
  %v119 = vpack.c.b16 %v110, %v109
  %v120 = vpack.c.b16 %v112, %v111
  %v145 = vunpack.c.l.b16 %v65
  %v146 = vunpack.c.l.b16 %v66
  %v147 = vunpack.c.l.b16 %v67
  %v148 = vunpack.c.l.b16 %v68
  %v149 = vunpack.c.l.b16 %v69
  %v150 = vunpack.c.l.b16 %v70
  %v151 = vunpack.c.l.b16 %v71
  %v152 = vunpack.c.l.b16 %v72
  %v153 = vunpack.c.l.b16 %v73
  %v154 = vunpack.c.l.b16 %v74
  %v155 = vunpack.c.l.b16 %v75
  %v156 = vunpack.c.l.b16 %v76
  %v157 = vunpack.c.l.b16 %v77
  %v158 = vunpack.c.l.b16 %v78
  %v159 = vunpack.c.l.b16 %v79
  %v160 = vunpack.c.l.b16 %v80
  %v161 = vpack.c.b16 %v146, %v145
  %v162 = vpack.c.b16 %v148, %v147
  %v163 = vpack.c.b16 %v150, %v149
  %v164 = vpack.c.b16 %v152, %v151
  %v165 = vpack.c.b16 %v154, %v153
  %v166 = vpack.c.b16 %v156, %v155
  %v167 = vpack.c.b16 %v158, %v157
  %v168 = vpack.c.b16 %v160, %v159
  %177 = vmatpush.bf16.msra.mxu0 %v168
  %178 = vmatpush.bf16.msra.mxu0 %v167
  %179 = vmatpush.bf16.msra.mxu0 %v166
  %180 = vmatpush.bf16.msra.mxu0 %v165
  %181 = vmatpush.bf16.msra.mxu0 %v164
  %182 = vmatpush.bf16.msra.mxu0 %v163
  %183 = vmatpush.bf16.msra.mxu0 %v162
  %184 = vmatpush.bf16.msra.mxu0 %v161
  %185 = vmatmul.bf16.gmra.mxu0 %v113
  %v186 = vpop.f32.mrf.mxu0
  %v187 = vadd.f32 0.0, %v186
  %v188 = vpop.f32.mrf.mxu0
  %v189 = vadd.f32 0.0, %v188
  %190 = vmatmul.bf16.gmra.mxu0 %v114
  %v191 = vpop.f32.mrf.mxu0
  %v192 = vadd.f32 0.0, %v191
  %v193 = vpop.f32.mrf.mxu0
  %v194 = vadd.f32 0.0, %v193
  %195 = vmatmul.bf16.gmra.mxu0 %v115
  %v196 = vpop.f32.mrf.mxu0
  %v197 = vadd.f32 0.0, %v196
  %v198 = vpop.f32.mrf.mxu0
  %v199 = vadd.f32 0.0, %v198
  %200 = vmatmul.bf16.gmra.mxu0 %v116
  %v201 = vpop.f32.mrf.mxu0
  %v202 = vadd.f32 0.0, %v201
  %v203 = vpop.f32.mrf.mxu0
  %v204 = vadd.f32 0.0, %v203
  %205 = vmatmul.bf16.gmra.mxu0 %v117
  %v206 = vpop.f32.mrf.mxu0
  %v207 = vadd.f32 0.0, %v206
  %v208 = vpop.f32.mrf.mxu0
  %v209 = vadd.f32 0.0, %v208
  %210 = vmatmul.bf16.gmra.mxu0 %v118
  %v211 = vpop.f32.mrf.mxu0
  %v212 = vadd.f32 0.0, %v211
  %v213 = vpop.f32.mrf.mxu0
  %v214 = vadd.f32 0.0, %v213
  %215 = vmatmul.bf16.gmra.mxu0 %v119
  %v216 = vpop.f32.mrf.mxu0
  %v217 = vadd.f32 0.0, %v216
  %v218 = vpop.f32.mrf.mxu0
  %v219 = vadd.f32 0.0, %v218
  %220 = vmatmul.bf16.gmra.mxu0 %v120
  %v221 = vpop.f32.mrf.mxu0
  %v222 = vadd.f32 0.0, %v221
  %v223 = vpop.f32.mrf.mxu0
  %v224 = vadd.f32 0.0, %v223
  %225 = vdwg.mxu0
  %v226 = vadd.f32 %v33, %v187
  %v227 = vadd.f32 %v34, %v189
  %v228 = vadd.f32 %v35, %v192
  %v229 = vadd.f32 %v36, %v194
  %v230 = vadd.f32 %v37, %v197
  %v231 = vadd.f32 %v38, %v199
  %v232 = vadd.f32 %v39, %v202
  %v233 = vadd.f32 %v40, %v204
  %v234 = vadd.f32 %v41, %v207
  %v235 = vadd.f32 %v42, %v209
  %v236 = vadd.f32 %v43, %v212
  %v237 = vadd.f32 %v44, %v214
  %v238 = vadd.f32 %v45, %v217
  %v239 = vadd.f32 %v46, %v219
  %v240 = vadd.f32 %v47, %v222
  %v241 = vadd.f32 %v48, %v224
  %242 = vst [vmem:[%s2] sm:$0xff] %v226
  %243 = vst [vmem:[%s2 + $0x8] sm:$0xff] %v227
  %244 = vst [vmem:[%s2 + $0x10] sm:$0xff] %v228
  %245 = vst [vmem:[%s2 + $0x18] sm:$0xff] %v229
  %246 = vst [vmem:[%s2 + $0x20] sm:$0xff] %v230
  %247 = vst [vmem:[%s2 + $0x28] sm:$0xff] %v231
  %248 = vst [vmem:[%s2 + $0x30] sm:$0xff] %v232
  %249 = vst [vmem:[%s2 + $0x38] sm:$0xff] %v233
  %250 = vst [vmem:[%s2 + $0x40] sm:$0xff] %v234
  %251 = vst [vmem:[%s2 + $0x48] sm:$0xff] %v235
  %252 = vst [vmem:[%s2 + $0x50] sm:$0xff] %v236
  %253 = vst [vmem:[%s2 + $0x58] sm:$0xff] %v237
  %254 = vst [vmem:[%s2 + $0x60] sm:$0xff] %v238
  %255 = vst [vmem:[%s2 + $0x68] sm:$0xff] %v239
  %256 = vst [vmem:[%s2 + $0x70] sm:$0xff] %v240
  %257 = vst [vmem:[%s2 + $0x78] sm:$0xff] %v241
  // Predicated region
  $region14: #{_lambda_.8} parent=0 // pred_check
    %p258 = pneg %p13
  $region15: #{_lambda_.8} parent=0 // pred_check_branch
    %260 = sbr.rel (%p258) target = $region17
  $region16: #{_lambda_.8} parent=0 // pred_region
    %v261 = vld [vmem:[%s2] sm:$0xff]
    %v262 = vld [vmem:[%s2 + $0x8] sm:$0xff]
    %v263 = vld [vmem:[%s2 + $0x10] sm:$0xff]
    %v264 = vld [vmem:[%s2 + $0x18] sm:$0xff]
    %v265 = vld [vmem:[%s2 + $0x20] sm:$0xff]
    %v266 = vld [vmem:[%s2 + $0x28] sm:$0xff]
    %v267 = vld [vmem:[%s2 + $0x30] sm:$0xff]
    %v268 = vld [vmem:[%s2 + $0x38] sm:$0xff]
    %v269 = vld [vmem:[%s2 + $0x40] sm:$0xff]
    %v270 = vld [vmem:[%s2 + $0x48] sm:$0xff]
    %v271 = vld [vmem:[%s2 + $0x50] sm:$0xff]
    %v272 = vld [vmem:[%s2 + $0x58] sm:$0xff]
    %v273 = vld [vmem:[%s2 + $0x60] sm:$0xff]
    %v274 = vld [vmem:[%s2 + $0x68] sm:$0xff]
    %v275 = vld [vmem:[%s2 + $0x70] sm:$0xff]
    %v276 = vld [vmem:[%s2 + $0x78] sm:$0xff]
    %v277 = vadd.f32 %v261, %v262
    %v278 = vadd.f32 %v277, %v263
    %v279 = vadd.f32 %v278, %v264
    %v280 = vadd.f32 %v279, %v265
    %v281 = vadd.f32 %v280, %v266
    %v282 = vadd.f32 %v281, %v267
    %v283 = vadd.f32 %v282, %v268
    %v284 = vadd.f32 %v283, %v269
    %v285 = vadd.f32 %v284, %v270
    %v286 = vadd.f32 %v285, %v271
    %v287 = vadd.f32 %v286, %v272
    %v288 = vadd.f32 %v287, %v273
    %v289 = vadd.f32 %v288, %v274
    %v290 = vadd.f32 %v289, %v275
    %v291 = vadd.f32 %v290, %v276
    %v292 = vrot.slane %v291, 4
    %v293 = vadd.f32 %v291, %v292
    %v294 = vrot.slane %v293, 2
    %v295 = vadd.f32 %v293, %v294
    %v296 = vrot.slane %v295, 1
    %v297 = vadd.f32 %v295, %v296
    %v298 = vmul.f32 %v261, %v261
    %v299 = vmul.f32 %v262, %v262
    %v300 = vmul.f32 %v263, %v263
    %v301 = vmul.f32 %v264, %v264
    %v302 = vmul.f32 %v265, %v265
    %v303 = vmul.f32 %v266, %v266
    %v304 = vmul.f32 %v267, %v267
    %v305 = vmul.f32 %v268, %v268
    %v306 = vmul.f32 %v269, %v269
    %v307 = vmul.f32 %v270, %v270
    %v308 = vmul.f32 %v271, %v271
    %v309 = vmul.f32 %v272, %v272
    %v310 = vmul.f32 %v273, %v273
    %v311 = vmul.f32 %v274, %v274
    %v312 = vmul.f32 %v275, %v275
    %v313 = vmul.f32 %v276, %v276
    %v314 = vadd.f32 %v298, %v299
    %v315 = vadd.f32 %v314, %v300
    %v316 = vadd.f32 %v315, %v301
    %v317 = vadd.f32 %v316, %v302
    %v318 = vadd.f32 %v317, %v303
    %v319 = vadd.f32 %v318, %v304
    %v320 = vadd.f32 %v319, %v305
    %v321 = vadd.f32 %v320, %v306
    %v322 = vadd.f32 %v321, %v307
    %v323 = vadd.f32 %v322, %v308
    %v324 = vadd.f32 %v323, %v309
    %v325 = vadd.f32 %v324, %v310
    %v326 = vadd.f32 %v325, %v311
    %v327 = vadd.f32 %v326, %v312
    %v328 = vadd.f32 %v327, %v313
    %v329 = vrot.slane %v328, 4
    %v330 = vadd.f32 %v328, %v329
    %v331 = vrot.slane %v330, 2
    %v332 = vadd.f32 %v330, %v331
    %v333 = vrot.slane %v332, 1
    %v334 = vadd.f32 %v332, %v333
    %vm335 = vcmask 1040384
    %v336 = vsel %vm335, %v297, %v334
    %337 = vst [vmem:[%s3] sm:$0x3] %v336
  $region17: #{_lambda_.8} parent=0 // pred_fallthru
    _
  // Predicated region
  $region18: #{_lambda_.8} parent=0 // pred_check
    _
  $region19: #{_lambda_.8} parent=0 // pred_check_branch
    %339 = sbr.rel (0) target = $region21
  $region20: #{_lambda_.8} parent=0 // pred_region
    _
  $region21: #{_lambda_.8} parent=0 // pred_fallthru
    _
  // Predicated region
  $region22: #{_lambda_.8} parent=0 // pred_check
    _
  $region23: #{_lambda_.8} parent=0 // pred_check_branch
    %341 = sbr.rel (0) target = $region25
  $region24: #{_lambda_.8} parent=0 // pred_region
    _
  $region25: #{_lambda_.8} parent=0 // pred_fallthru
    _
  // Predicated region
  $region26: #{_lambda_.8} parent=0 // pred_check
    _
  $region27: #{_lambda_.8} parent=0 // pred_check_branch
    %343 = sbr.rel (0) target = $region29
  $region28: #{_lambda_.8} parent=0 // pred_region
    _
  $region29: #{_lambda_.8} parent=0 // pred_fallthru
    _
  // Predicated region
  $region30: #{_lambda_.8} parent=0 // pred_check
    _
  $region31: #{_lambda_.8} parent=0 // pred_check_branch
    %345 = sbr.rel (0) target = $region33
  $region32: #{_lambda_.8} parent=0 // pred_region
    _
  $region33: #{_lambda_.8} parent=0 // pred_fallthru
    _

// kernel: _lambda_.9
$region0: #{_lambda_.9}
  #allocation0 [shape = 'u32[]', space=smem, size = 0x4, offset = 0x4, fixed_abs, tag = 'smem constant byte address 0x4 - core index']
  #allocation1 [shape = 'u32[72,128]{1,0:T(1,128)}', space=vmem, size = 0x9000, scoped, tag = 'internal scratch']
  %s0 = inlined_call_operand.vmem [shape: f32[128,128], index: 0, kind: input, shape index: {}]
  %s1 = inlined_call_operand.vmem [shape: f32[1,128], index: 1, kind: input, shape index: {}]
  %s2 = inlined_call_operand.vmem [shape: f32[1,128], index: 2, kind: input, shape index: {}]
  %s3 = inlined_call_operand.vmem [shape: f32[128,128], index: 3, kind: output, shape index: {}]
  %s4 = sld [smem:[#allocation0]]
  $region22: #{_lambda_.9} parent=0
    _
  %s6 = ssub.s32 1, %s4
  %s7 = scalar_select 0, %s6, %s4
  // Predicated region
  $region2: #{_lambda_.9} parent=0 // pred_check
    _
  $region3: #{_lambda_.9} parent=0 // pred_check_branch
    %9 = sbr.rel (0) target = $region5
  $region4: #{_lambda_.9} parent=0 // pred_region
    _
  $region5: #{_lambda_.9} parent=0 // pred_fallthru
    _
  // Predicated region
  $region6: #{_lambda_.9} parent=0 // pred_check
    _
  $region7: #{_lambda_.9} parent=0 // pred_check_branch
    %11 = sbr.rel (0) target = $region9
  $region8: #{_lambda_.9} parent=0 // pred_region
    _
  $region9: #{_lambda_.9} parent=0 // pred_fallthru
    _
  // Predicated region
  $region10: #{_lambda_.9} parent=0 // pred_check
    _
  $region11: #{_lambda_.9} parent=0 // pred_check_branch
    %13 = sbr.rel (0) target = $region13
  $region12: #{_lambda_.9} parent=0 // pred_region
    _
  $region13: #{_lambda_.9} parent=0 // pred_fallthru
    _
  %v14 = vld [vmem:[%s0] sm:$0xff]
  %v15 = vld [vmem:[%s0 + $0x8] sm:$0xff]
  %v16 = vld [vmem:[%s0 + $0x10] sm:$0xff]
  %v17 = vld [vmem:[%s0 + $0x18] sm:$0xff]
  %v18 = vld [vmem:[%s0 + $0x20] sm:$0xff]
  %v19 = vld [vmem:[%s0 + $0x28] sm:$0xff]
  %v20 = vld [vmem:[%s0 + $0x30] sm:$0xff]
  %v21 = vld [vmem:[%s0 + $0x38] sm:$0xff]
  %v22 = vld [vmem:[%s0 + $0x40] sm:$0xff]
  %v23 = vld [vmem:[%s0 + $0x48] sm:$0xff]
  %v24 = vld [vmem:[%s0 + $0x50] sm:$0xff]
  %v25 = vld [vmem:[%s0 + $0x58] sm:$0xff]
  %v26 = vld [vmem:[%s0 + $0x60] sm:$0xff]
  %v27 = vld [vmem:[%s0 + $0x68] sm:$0xff]
  %v28 = vld [vmem:[%s0 + $0x70] sm:$0xff]
  %v29 = vld [vmem:[%s0 + $0x78] sm:$0xff]
  %v30 = vld [vmem:[%s1] sm:$0x1]
  %v32 = vperm.slane %v30, 0
  %v34 = vmul.f32 %v14, %v32
  %v35 = vmul.f32 %v15, %v32
  %v36 = vmul.f32 %v16, %v32
  %v37 = vmul.f32 %v17, %v32
  %v38 = vmul.f32 %v18, %v32
  %v39 = vmul.f32 %v19, %v32
  %v40 = vmul.f32 %v20, %v32
  %v41 = vmul.f32 %v21, %v32
  %v42 = vmul.f32 %v22, %v32
  %v43 = vmul.f32 %v23, %v32
  %v44 = vmul.f32 %v24, %v32
  %v45 = vmul.f32 %v25, %v32
  %v46 = vmul.f32 %v26, %v32
  %v47 = vmul.f32 %v27, %v32
  %v48 = vmul.f32 %v28, %v32
  %v49 = vmul.f32 %v29, %v32
  %v50 = vld [vmem:[%s2] sm:$0x1]
  %v52 = vperm.slane %v50, 0
  %v54 = vadd.f32 %v34, %v52
  %v55 = vadd.f32 %v35, %v52
  %v56 = vadd.f32 %v36, %v52
  %v57 = vadd.f32 %v37, %v52
  %v58 = vadd.f32 %v38, %v52
  %v59 = vadd.f32 %v39, %v52
  %v60 = vadd.f32 %v40, %v52
  %v61 = vadd.f32 %v41, %v52
  %v62 = vadd.f32 %v42, %v52
  %v63 = vadd.f32 %v43, %v52
  %v64 = vadd.f32 %v44, %v52
  %v65 = vadd.f32 %v45, %v52
  %v66 = vadd.f32 %v46, %v52
  %v67 = vadd.f32 %v47, %v52
  %v68 = vadd.f32 %v48, %v52
  %v69 = vadd.f32 %v49, %v52
  %v70 = vmul.f32 %v54, 0.2
  %v71 = vmul.f32 %v55, 0.2
  %v72 = vmul.f32 %v56, 0.2
  %v73 = vmul.f32 %v57, 0.2
  %v74 = vmul.f32 %v58, 0.2
  %v75 = vmul.f32 %v59, 0.2
  %v76 = vmul.f32 %v60, 0.2
  %v77 = vmul.f32 %v61, 0.2
  %v78 = vmul.f32 %v62, 0.2
  %v79 = vmul.f32 %v63, 0.2
  %v80 = vmul.f32 %v64, 0.2
  %v81 = vmul.f32 %v65, 0.2
  %v82 = vmul.f32 %v66, 0.2
  %v83 = vmul.f32 %v67, 0.2
  %v84 = vmul.f32 %v68, 0.2
  %v85 = vmul.f32 %v69, 0.2
  %v86 = vmax.f32 %v54, %v70
  %v87 = vmax.f32 %v55, %v71
  %v88 = vmax.f32 %v56, %v72
  %v89 = vmax.f32 %v57, %v73
  %v90 = vmax.f32 %v58, %v74
  %v91 = vmax.f32 %v59, %v75
  %v92 = vmax.f32 %v60, %v76
  %v93 = vmax.f32 %v61, %v77
  %v94 = vmax.f32 %v62, %v78
  %v95 = vmax.f32 %v63, %v79
  %v96 = vmax.f32 %v64, %v80
  %v97 = vmax.f32 %v65, %v81
  %v98 = vmax.f32 %v66, %v82
  %v99 = vmax.f32 %v67, %v83
  %v100 = vmax.f32 %v68, %v84
  %v101 = vmax.f32 %v69, %v85
  %102 = vst [vmem:[%s3] sm:$0xff] %v86
  %103 = vst [vmem:[%s3 + $0x8] sm:$0xff] %v87
  %104 = vst [vmem:[%s3 + $0x10] sm:$0xff] %v88
  %105 = vst [vmem:[%s3 + $0x18] sm:$0xff] %v89
  %106 = vst [vmem:[%s3 + $0x20] sm:$0xff] %v90
  %107 = vst [vmem:[%s3 + $0x28] sm:$0xff] %v91
  %108 = vst [vmem:[%s3 + $0x30] sm:$0xff] %v92
  %109 = vst [vmem:[%s3 + $0x38] sm:$0xff] %v93
  %110 = vst [vmem:[%s3 + $0x40] sm:$0xff] %v94
  %111 = vst [vmem:[%s3 + $0x48] sm:$0xff] %v95
  %112 = vst [vmem:[%s3 + $0x50] sm:$0xff] %v96
  %113 = vst [vmem:[%s3 + $0x58] sm:$0xff] %v97
  %114 = vst [vmem:[%s3 + $0x60] sm:$0xff] %v98
  %115 = vst [vmem:[%s3 + $0x68] sm:$0xff] %v99
  %116 = vst [vmem:[%s3 + $0x70] sm:$0xff] %v100
  %117 = vst [vmem:[%s3 + $0x78] sm:$0xff] %v101
  // Predicated region
  $region14: #{_lambda_.9} parent=0 // pred_check
    _
  $region15: #{_lambda_.9} parent=0 // pred_check_branch
    %119 = sbr.rel (0) target = $region17
  $region16: #{_lambda_.9} parent=0 // pred_region
    _
  $region17: #{_lambda_.9} parent=0 // pred_fallthru
    _
  // Predicated region
  $region18: #{_lambda_.9} parent=0 // pred_check
    _
  $region19: #{_lambda_.9} parent=0 // pred_check_branch
    %121 = sbr.rel (0) target = $region21
  $region20: #{_lambda_.9} parent=0 // pred_region
    _
  $region21: #{_lambda_.9} parent=0 // pred_fallthru
    _

// kernel: _lambda_.10
$region0: #{_lambda_.10}
  #allocation0 [shape = 'u32[]', space=smem, size = 0x4, offset = 0x4, fixed_abs, tag = 'smem constant byte address 0x4 - core index']
  #allocation1 [shape = 'u32[72,128]{1,0:T(1,128)}', space=vmem, size = 0x9000, scoped, tag = 'internal scratch']
  %s0 = inlined_call_operand.vmem [shape: bf16[128,256], index: 0, kind: input, shape index: {}]
  %s1 = inlined_call_operand.vmem [shape: bf16[256,128], index: 1, kind: input, shape index: {}]
  %s2 = inlined_call_operand.vmem [shape: f32[128,128], index: 2, kind: output, shape index: {0}]
  %s3 = inlined_call_operand.vmem [shape: f32[1,2,128], index: 3, kind: output, shape index: {1}]
  %4 = xla_tuple %s2, %s3
  %s5 = sld [smem:[#allocation0]]
  $region34: #{_lambda_.10} parent=0
    _
  %s7 = ssub.s32 1, %s5
  %s8 = scalar_select 0, %s7, %s5
  // Predicated region
  $region2: #{_lambda_.10} parent=0 // pred_check
    _
  $region3: #{_lambda_.10} parent=0 // pred_check_branch
    %10 = sbr.rel (0) target = $region5
  $region4: #{_lambda_.10} parent=0 // pred_region
    _
  $region5: #{_lambda_.10} parent=0 // pred_fallthru
    _
  // Predicated region
  $region6: #{_lambda_.10} parent=0 // pred_check
    _
  $region7: #{_lambda_.10} parent=0 // pred_check_branch
    %12 = sbr.rel (0) target = $region9
  $region8: #{_lambda_.10} parent=0 // pred_region
    _
  $region9: #{_lambda_.10} parent=0 // pred_fallthru
    _
  %p13 = scmp.eq.s32.totalorder 0, 0
  // Predicated region
  $region10: #{_lambda_.10} parent=0 // pred_check
    %p14 = pneg %p13
  $region11: #{_lambda_.10} parent=0 // pred_check_branch
    %16 = sbr.rel (%p14) target = $region13
  $region12: #{_lambda_.10} parent=0 // pred_region
    %17 = vst [vmem:[%s2] sm:$0xff] 0.0
    %18 = vst [vmem:[%s2 + $0x8] sm:$0xff] 0.0
    %19 = vst [vmem:[%s2 + $0x10] sm:$0xff] 0.0
    %20 = vst [vmem:[%s2 + $0x18] sm:$0xff] 0.0
    %21 = vst [vmem:[%s2 + $0x20] sm:$0xff] 0.0
    %22 = vst [vmem:[%s2 + $0x28] sm:$0xff] 0.0
    %23 = vst [vmem:[%s2 + $0x30] sm:$0xff] 0.0
    %24 = vst [vmem:[%s2 + $0x38] sm:$0xff] 0.0
    %25 = vst [vmem:[%s2 + $0x40] sm:$0xff] 0.0
    %26 = vst [vmem:[%s2 + $0x48] sm:$0xff] 0.0
    %27 = vst [vmem:[%s2 + $0x50] sm:$0xff] 0.0
    %28 = vst [vmem:[%s2 + $0x58] sm:$0xff] 0.0
    %29 = vst [vmem:[%s2 + $0x60] sm:$0xff] 0.0
    %30 = vst [vmem:[%s2 + $0x68] sm:$0xff] 0.0
    %31 = vst [vmem:[%s2 + $0x70] sm:$0xff] 0.0
    %32 = vst [vmem:[%s2 + $0x78] sm:$0xff] 0.0
  $region13: #{_lambda_.10} parent=0 // pred_fallthru
    _
  %v33 = vld [vmem:[%s2] sm:$0xff]
  %v34 = vld [vmem:[%s2 + $0x8] sm:$0xff]
  %v35 = vld [vmem:[%s2 + $0x10] sm:$0xff]
  %v36 = vld [vmem:[%s2 + $0x18] sm:$0xff]
  %v37 = vld [vmem:[%s2 + $0x20] sm:$0xff]
  %v38 = vld [vmem:[%s2 + $0x28] sm:$0xff]
  %v39 = vld [vmem:[%s2 + $0x30] sm:$0xff]
  %v40 = vld [vmem:[%s2 + $0x38] sm:$0xff]
  %v41 = vld [vmem:[%s2 + $0x40] sm:$0xff]
  %v42 = vld [vmem:[%s2 + $0x48] sm:$0xff]
  %v43 = vld [vmem:[%s2 + $0x50] sm:$0xff]
  %v44 = vld [vmem:[%s2 + $0x58] sm:$0xff]
  %v45 = vld [vmem:[%s2 + $0x60] sm:$0xff]
  %v46 = vld [vmem:[%s2 + $0x68] sm:$0xff]
  %v47 = vld [vmem:[%s2 + $0x70] sm:$0xff]
  %v48 = vld [vmem:[%s2 + $0x78] sm:$0xff]
  %v49 = vld [vmem:[%s0] sm:$0xff]
  %v50 = vld [vmem:[%s0 + $0x8] sm:$0xff]
  %v51 = vld [vmem:[%s0 + $0x10] sm:$0xff]
  %v52 = vld [vmem:[%s0 + $0x18] sm:$0xff]
  %v53 = vld [vmem:[%s0 + $0x20] sm:$0xff]
  %v54 = vld [vmem:[%s0 + $0x28] sm:$0xff]
  %v55 = vld [vmem:[%s0 + $0x30] sm:$0xff]
  %v56 = vld [vmem:[%s0 + $0x38] sm:$0xff]
  %v57 = vld [vmem:[%s0 + $0x40] sm:$0xff]
  %v58 = vld [vmem:[%s0 + $0x48] sm:$0xff]
  %v59 = vld [vmem:[%s0 + $0x50] sm:$0xff]
  %v60 = vld [vmem:[%s0 + $0x58] sm:$0xff]
  %v61 = vld [vmem:[%s0 + $0x60] sm:$0xff]
  %v62 = vld [vmem:[%s0 + $0x68] sm:$0xff]
  %v63 = vld [vmem:[%s0 + $0x70] sm:$0xff]
  %v64 = vld [vmem:[%s0 + $0x78] sm:$0xff]
  %v65 = vld [vmem:[%s1] sm:$0xf]
  %v66 = vld [vmem:[%s1 + $0x4] sm:$0xf]
  %v67 = vld [vmem:[%s1 + $0x8] sm:$0xf]
  %v68 = vld [vmem:[%s1 + $0xc] sm:$0xf]
  %v69 = vld [vmem:[%s1 + $0x10] sm:$0xf]
  %v70 = vld [vmem:[%s1 + $0x14] sm:$0xf]
  %v71 = vld [vmem:[%s1 + $0x18] sm:$0xf]
  %v72 = vld [vmem:[%s1 + $0x1c] sm:$0xf]
  %v73 = vld [vmem:[%s1 + $0x20] sm:$0xf]
  %v74 = vld [vmem:[%s1 + $0x24] sm:$0xf]
  %v75 = vld [vmem:[%s1 + $0x28] sm:$0xf]
  %v76 = vld [vmem:[%s1 + $0x2c] sm:$0xf]
  %v77 = vld [vmem:[%s1 + $0x30] sm:$0xf]
  %v78 = vld [vmem:[%s1 + $0x34] sm:$0xf]
  %v79 = vld [vmem:[%s1 + $0x38] sm:$0xf]
  %v80 = vld [vmem:[%s1 + $0x3c] sm:$0xf]
  %v81 = vld [vmem:[%s1 + $0x40] sm:$0xf]
  %v82 = vld [vmem:[%s1 + $0x44] sm:$0xf]
  %v83 = vld [vmem:[%s1 + $0x48] sm:$0xf]
  %v84 = vld [vmem:[%s1 + $0x4c] sm:$0xf]
  %v85 = vld [vmem:[%s1 + $0x50] sm:$0xf]
  %v86 = vld [vmem:[%s1 + $0x54] sm:$0xf]
  %v87 = vld [vmem:[%s1 + $0x58] sm:$0xf]
  %v88 = vld [vmem:[%s1 + $0x5c] sm:$0xf]
  %v89 = vld [vmem:[%s1 + $0x60] sm:$0xf]
  %v90 = vld [vmem:[%s1 + $0x64] sm:$0xf]
  %v91 = vld [vmem:[%s1 + $0x68] sm:$0xf]
  %v92 = vld [vmem:[%s1 + $0x6c] sm:$0xf]
  %v93 = vld [vmem:[%s1 + $0x70] sm:$0xf]
  %v94 = vld [vmem:[%s1 + $0x74] sm:$0xf]
  %v95 = vld [vmem:[%s1 + $0x78] sm:$0xf]
  %v96 = vld [vmem:[%s1 + $0x7c] sm:$0xf]
  %v113 = vunpack.c.l.b16 %v49
  %v114 = vunpack.c.h.b16 %v49
  %v115 = vunpack.c.l.b16 %v50
  %v116 = vunpack.c.h.b16 %v50
  %v117 = vunpack.c.l.b16 %v51
  %v118 = vunpack.c.h.b16 %v51
  %v119 = vunpack.c.l.b16 %v52
  %v120 = vunpack.c.h.b16 %v52
  %v121 = vunpack.c.l.b16 %v53
  %v122 = vunpack.c.h.b16 %v53
  %v123 = vunpack.c.l.b16 %v54
  %v124 = vunpack.c.h.b16 %v54
  %v125 = vunpack.c.l.b16 %v55
  %v126 = vunpack.c.h.b16 %v55
  %v127 = vunpack.c.l.b16 %v56
  %v128 = vunpack.c.h.b16 %v56
  %v129 = vunpack.c.l.b16 %v57
  %v130 = vunpack.c.h.b16 %v57
  %v131 = vunpack.c.l.b16 %v58
  %v132 = vunpack.c.h.b16 %v58
  %v133 = vunpack.c.l.b16 %v59
  %v134 = vunpack.c.h.b16 %v59
  %v135 = vunpack.c.l.b16 %v60
  %v136 = vunpack.c.h.b16 %v60
  %v137 = vunpack.c.l.b16 %v61
  %v138 = vunpack.c.h.b16 %v61
  %v139 = vunpack.c.l.b16 %v62
  %v140 = vunpack.c.h.b16 %v62
  %v141 = vunpack.c.l.b16 %v63
  %v142 = vunpack.c.h.b16 %v63
  %v143 = vunpack.c.l.b16 %v64
  %v144 = vunpack.c.h.b16 %v64
  %v145 = vpack.c.b16 %v115, %v113
  %v146 = vpack.c.b16 %v116, %v114
  %v147 = vpack.c.b16 %v119, %v117
  %v148 = vpack.c.b16 %v120, %v118
  %v149 = vpack.c.b16 %v123, %v121
  %v150 = vpack.c.b16 %v124, %v122
  %v151 = vpack.c.b16 %v127, %v125
  %v152 = vpack.c.b16 %v128, %v126
  %v153 = vpack.c.b16 %v131, %v129
  %v154 = vpack.c.b16 %v132, %v130
  %v155 = vpack.c.b16 %v135, %v133
  %v156 = vpack.c.b16 %v136, %v134
  %v157 = vpack.c.b16 %v139, %v137
  %v158 = vpack.c.b16 %v140, %v138
  %v159 = vpack.c.b16 %v143, %v141
  %v160 = vpack.c.b16 %v144, %v142
  %v209 = vunpack.c.l.b16 %v65
  %v210 = vunpack.c.l.b16 %v66
  %v211 = vunpack.c.l.b16 %v67
  %v212 = vunpack.c.l.b16 %v68
  %v213 = vunpack.c.l.b16 %v69
  %v214 = vunpack.c.l.b16 %v70
  %v215 = vunpack.c.l.b16 %v71
  %v216 = vunpack.c.l.b16 %v72
  %v217 = vunpack.c.l.b16 %v73
  %v218 = vunpack.c.l.b16 %v74
  %v219 = vunpack.c.l.b16 %v75
  %v220 = vunpack.c.l.b16 %v76
  %v221 = vunpack.c.l.b16 %v77
  %v222 = vunpack.c.l.b16 %v78
  %v223 = vunpack.c.l.b16 %v79
  %v224 = vunpack.c.l.b16 %v80
  %v225 = vunpack.c.l.b16 %v81
  %v226 = vunpack.c.l.b16 %v82
  %v227 = vunpack.c.l.b16 %v83
  %v228 = vunpack.c.l.b16 %v84
  %v229 = vunpack.c.l.b16 %v85
  %v230 = vunpack.c.l.b16 %v86
  %v231 = vunpack.c.l.b16 %v87
  %v232 = vunpack.c.l.b16 %v88
  %v233 = vunpack.c.l.b16 %v89
  %v234 = vunpack.c.l.b16 %v90
  %v235 = vunpack.c.l.b16 %v91
  %v236 = vunpack.c.l.b16 %v92
  %v237 = vunpack.c.l.b16 %v93
  %v238 = vunpack.c.l.b16 %v94
  %v239 = vunpack.c.l.b16 %v95
  %v240 = vunpack.c.l.b16 %v96
  %v241 = vpack.c.b16 %v210, %v209
  %v242 = vpack.c.b16 %v212, %v211
  %v243 = vpack.c.b16 %v214, %v213
  %v244 = vpack.c.b16 %v216, %v215
  %v245 = vpack.c.b16 %v218, %v217
  %v246 = vpack.c.b16 %v220, %v219
  %v247 = vpack.c.b16 %v222, %v221
  %v248 = vpack.c.b16 %v224, %v223
  %v249 = vpack.c.b16 %v226, %v225
  %v250 = vpack.c.b16 %v228, %v227
  %v251 = vpack.c.b16 %v230, %v229
  %v252 = vpack.c.b16 %v232, %v231
  %v253 = vpack.c.b16 %v234, %v233
  %v254 = vpack.c.b16 %v236, %v235
  %v255 = vpack.c.b16 %v238, %v237
  %v256 = vpack.c.b16 %v240, %v239
  %273 = vmatpush.bf16.msra.mxu0 %v248
  %274 = vmatpush.bf16.msra.mxu0 %v247
  %275 = vmatpush.bf16.msra.mxu0 %v246
  %276 = vmatpush.bf16.msra.mxu0 %v245
  %277 = vmatpush.bf16.msra.mxu0 %v244
  %278 = vmatpush.bf16.msra.mxu0 %v243
  %279 = vmatpush.bf16.msra.mxu0 %v242
  %280 = vmatpush.bf16.msra.mxu0 %v241
  %281 = vmatmul.bf16.gmra.mxu0 %v145
  %v282 = vpop.f32.mrf.mxu0
  %v283 = vadd.f32 0.0, %v282
  %v284 = vpop.f32.mrf.mxu0
  %v285 = vadd.f32 0.0, %v284
  %286 = vmatmul.bf16.gmra.mxu0 %v147
  %v287 = vpop.f32.mrf.mxu0
  %v288 = vadd.f32 0.0, %v287
  %v289 = vpop.f32.mrf.mxu0
  %v290 = vadd.f32 0.0, %v289
  %291 = vmatmul.bf16.gmra.mxu0 %v149
  %v292 = vpop.f32.mrf.mxu0
  %v293 = vadd.f32 0.0, %v292
  %v294 = vpop.f32.mrf.mxu0
  %v295 = vadd.f32 0.0, %v294
  %296 = vmatmul.bf16.gmra.mxu0 %v151
  %v297 = vpop.f32.mrf.mxu0
  %v298 = vadd.f32 0.0, %v297
  %v299 = vpop.f32.mrf.mxu0
  %v300 = vadd.f32 0.0, %v299
  %301 = vmatmul.bf16.gmra.mxu0 %v153
  %v302 = vpop.f32.mrf.mxu0
  %v303 = vadd.f32 0.0, %v302
  %v304 = vpop.f32.mrf.mxu0
  %v305 = vadd.f32 0.0, %v304
  %306 = vmatmul.bf16.gmra.mxu0 %v155
  %v307 = vpop.f32.mrf.mxu0
  %v308 = vadd.f32 0.0, %v307
  %v309 = vpop.f32.mrf.mxu0
  %v310 = vadd.f32 0.0, %v309
  %311 = vmatmul.bf16.gmra.mxu0 %v157
  %v312 = vpop.f32.mrf.mxu0
  %v313 = vadd.f32 0.0, %v312
  %v314 = vpop.f32.mrf.mxu0
  %v315 = vadd.f32 0.0, %v314
  %316 = vmatmul.bf16.gmra.mxu0 %v159
  %v317 = vpop.f32.mrf.mxu0
  %v318 = vadd.f32 0.0, %v317
  %v319 = vpop.f32.mrf.mxu0
  %v320 = vadd.f32 0.0, %v319
  %321 = vdwg.mxu0
  %322 = vmatpush.bf16.msra.mxu0 %v256
  %323 = vmatpush.bf16.msra.mxu0 %v255
  %324 = vmatpush.bf16.msra.mxu0 %v254
  %325 = vmatpush.bf16.msra.mxu0 %v253
  %326 = vmatpush.bf16.msra.mxu0 %v252
  %327 = vmatpush.bf16.msra.mxu0 %v251
  %328 = vmatpush.bf16.msra.mxu0 %v250
  %329 = vmatpush.bf16.msra.mxu0 %v249
  %330 = vmatmul.bf16.gmra.mxu0 %v146
  %v331 = vpop.f32.mrf.mxu0
  %v332 = vadd.f32 %v283, %v331
  %v333 = vpop.f32.mrf.mxu0
  %v334 = vadd.f32 %v285, %v333
  %335 = vmatmul.bf16.gmra.mxu0 %v148
  %v336 = vpop.f32.mrf.mxu0
  %v337 = vadd.f32 %v288, %v336
  %v338 = vpop.f32.mrf.mxu0
  %v339 = vadd.f32 %v290, %v338
  %340 = vmatmul.bf16.gmra.mxu0 %v150
  %v341 = vpop.f32.mrf.mxu0
  %v342 = vadd.f32 %v293, %v341
  %v343 = vpop.f32.mrf.mxu0
  %v344 = vadd.f32 %v295, %v343
  %345 = vmatmul.bf16.gmra.mxu0 %v152
  %v346 = vpop.f32.mrf.mxu0
  %v347 = vadd.f32 %v298, %v346
  %v348 = vpop.f32.mrf.mxu0
  %v349 = vadd.f32 %v300, %v348
  %350 = vmatmul.bf16.gmra.mxu0 %v154
  %v351 = vpop.f32.mrf.mxu0
  %v352 = vadd.f32 %v303, %v351
  %v353 = vpop.f32.mrf.mxu0
  %v354 = vadd.f32 %v305, %v353
  %355 = vmatmul.bf16.gmra.mxu0 %v156
  %v356 = vpop.f32.mrf.mxu0
  %v357 = vadd.f32 %v308, %v356
  %v358 = vpop.f32.mrf.mxu0
  %v359 = vadd.f32 %v310, %v358
  %360 = vmatmul.bf16.gmra.mxu0 %v158
  %v361 = vpop.f32.mrf.mxu0
  %v362 = vadd.f32 %v313, %v361
  %v363 = vpop.f32.mrf.mxu0
  %v364 = vadd.f32 %v315, %v363
  %365 = vmatmul.bf16.gmra.mxu0 %v160
  %v366 = vpop.f32.mrf.mxu0
  %v367 = vadd.f32 %v318, %v366
  %v368 = vpop.f32.mrf.mxu0
  %v369 = vadd.f32 %v320, %v368
  %370 = vdwg.mxu0
  %v371 = vadd.f32 %v33, %v332
  %v372 = vadd.f32 %v34, %v334
  %v373 = vadd.f32 %v35, %v337
  %v374 = vadd.f32 %v36, %v339
  %v375 = vadd.f32 %v37, %v342
  %v376 = vadd.f32 %v38, %v344
  %v377 = vadd.f32 %v39, %v347
  %v378 = vadd.f32 %v40, %v349
  %v379 = vadd.f32 %v41, %v352
  %v380 = vadd.f32 %v42, %v354
  %v381 = vadd.f32 %v43, %v357
  %v382 = vadd.f32 %v44, %v359
  %v383 = vadd.f32 %v45, %v362
  %v384 = vadd.f32 %v46, %v364
  %v385 = vadd.f32 %v47, %v367
  %v386 = vadd.f32 %v48, %v369
  %387 = vst [vmem:[%s2] sm:$0xff] %v371
  %388 = vst [vmem:[%s2 + $0x8] sm:$0xff] %v372
  %389 = vst [vmem:[%s2 + $0x10] sm:$0xff] %v373
  %390 = vst [vmem:[%s2 + $0x18] sm:$0xff] %v374
  %391 = vst [vmem:[%s2 + $0x20] sm:$0xff] %v375
  %392 = vst [vmem:[%s2 + $0x28] sm:$0xff] %v376
  %393 = vst [vmem:[%s2 + $0x30] sm:$0xff] %v377
  %394 = vst [vmem:[%s2 + $0x38] sm:$0xff] %v378
  %395 = vst [vmem:[%s2 + $0x40] sm:$0xff] %v379
  %396 = vst [vmem:[%s2 + $0x48] sm:$0xff] %v380
  %397 = vst [vmem:[%s2 + $0x50] sm:$0xff] %v381
  %398 = vst [vmem:[%s2 + $0x58] sm:$0xff] %v382
  %399 = vst [vmem:[%s2 + $0x60] sm:$0xff] %v383
  %400 = vst [vmem:[%s2 + $0x68] sm:$0xff] %v384
  %401 = vst [vmem:[%s2 + $0x70] sm:$0xff] %v385
  %402 = vst [vmem:[%s2 + $0x78] sm:$0xff] %v386
  // Predicated region
  $region14: #{_lambda_.10} parent=0 // pred_check
    %p403 = pneg %p13
  $region15: #{_lambda_.10} parent=0 // pred_check_branch
    %405 = sbr.rel (%p403) target = $region17
  $region16: #{_lambda_.10} parent=0 // pred_region
    %v406 = vld [vmem:[%s2] sm:$0xff]
    %v407 = vld [vmem:[%s2 + $0x8] sm:$0xff]
    %v408 = vld [vmem:[%s2 + $0x10] sm:$0xff]
    %v409 = vld [vmem:[%s2 + $0x18] sm:$0xff]
    %v410 = vld [vmem:[%s2 + $0x20] sm:$0xff]
    %v411 = vld [vmem:[%s2 + $0x28] sm:$0xff]
    %v412 = vld [vmem:[%s2 + $0x30] sm:$0xff]
    %v413 = vld [vmem:[%s2 + $0x38] sm:$0xff]
    %v414 = vld [vmem:[%s2 + $0x40] sm:$0xff]
    %v415 = vld [vmem:[%s2 + $0x48] sm:$0xff]
    %v416 = vld [vmem:[%s2 + $0x50] sm:$0xff]
    %v417 = vld [vmem:[%s2 + $0x58] sm:$0xff]
    %v418 = vld [vmem:[%s2 + $0x60] sm:$0xff]
    %v419 = vld [vmem:[%s2 + $0x68] sm:$0xff]
    %v420 = vld [vmem:[%s2 + $0x70] sm:$0xff]
    %v421 = vld [vmem:[%s2 + $0x78] sm:$0xff]
    %v422 = vadd.f32 %v406, %v407
    %v423 = vadd.f32 %v422, %v408
    %v424 = vadd.f32 %v423, %v409
    %v425 = vadd.f32 %v424, %v410
    %v426 = vadd.f32 %v425, %v411
    %v427 = vadd.f32 %v426, %v412
    %v428 = vadd.f32 %v427, %v413
    %v429 = vadd.f32 %v428, %v414
    %v430 = vadd.f32 %v429, %v415
    %v431 = vadd.f32 %v430, %v416
    %v432 = vadd.f32 %v431, %v417
    %v433 = vadd.f32 %v432, %v418
    %v434 = vadd.f32 %v433, %v419
    %v435 = vadd.f32 %v434, %v420
    %v436 = vadd.f32 %v435, %v421
    %v437 = vrot.slane %v436, 4
    %v438 = vadd.f32 %v436, %v437
    %v439 = vrot.slane %v438, 2
    %v440 = vadd.f32 %v438, %v439
    %v441 = vrot.slane %v440, 1
    %v442 = vadd.f32 %v440, %v441
    %v443 = vmul.f32 %v406, %v406
    %v444 = vmul.f32 %v407, %v407
    %v445 = vmul.f32 %v408, %v408
    %v446 = vmul.f32 %v409, %v409
    %v447 = vmul.f32 %v410, %v410
    %v448 = vmul.f32 %v411, %v411
    %v449 = vmul.f32 %v412, %v412
    %v450 = vmul.f32 %v413, %v413
    %v451 = vmul.f32 %v414, %v414
    %v452 = vmul.f32 %v415, %v415
    %v453 = vmul.f32 %v416, %v416
    %v454 = vmul.f32 %v417, %v417
    %v455 = vmul.f32 %v418, %v418
    %v456 = vmul.f32 %v419, %v419
    %v457 = vmul.f32 %v420, %v420
    %v458 = vmul.f32 %v421, %v421
    %v459 = vadd.f32 %v443, %v444
    %v460 = vadd.f32 %v459, %v445
    %v461 = vadd.f32 %v460, %v446
    %v462 = vadd.f32 %v461, %v447
    %v463 = vadd.f32 %v462, %v448
    %v464 = vadd.f32 %v463, %v449
    %v465 = vadd.f32 %v464, %v450
    %v466 = vadd.f32 %v465, %v451
    %v467 = vadd.f32 %v466, %v452
    %v468 = vadd.f32 %v467, %v453
    %v469 = vadd.f32 %v468, %v454
    %v470 = vadd.f32 %v469, %v455
    %v471 = vadd.f32 %v470, %v456
    %v472 = vadd.f32 %v471, %v457
    %v473 = vadd.f32 %v472, %v458
    %v474 = vrot.slane %v473, 4
    %v475 = vadd.f32 %v473, %v474
    %v476 = vrot.slane %v475, 2
    %v477 = vadd.f32 %v475, %v476
    %v478 = vrot.slane %v477, 1
    %v479 = vadd.f32 %v477, %v478
    %vm480 = vcmask 1040384
    %v481 = vsel %vm480, %v442, %v479
    %482 = vst [vmem:[%s3] sm:$0x3] %v481
  $region17: #{_lambda_.10} parent=0 // pred_fallthru
    _
  // Predicated region
  $region18: #{_lambda_.10} parent=0 // pred_check
    _
  $region19: #{_lambda_.10} parent=0 // pred_check_branch
    %484 = sbr.rel (0) target = $region21
  $region20: #{_lambda_.10} parent=0 // pred_region
    _
  $region21: #{_lambda_.10} parent=0 // pred_fallthru
    _
  // Predicated region
  $region22: #{_lambda_.10} parent=0 // pred_check
    _
  $region23: #{_lambda_.10} parent=0 // pred_check_branch
    %486 = sbr.rel (0) target = $region25
  $region24: #{_lambda_.10} parent=0 // pred_region
    _
  $region25: #{_lambda_.10} parent=0 // pred_fallthru
    _
  // Predicated region
  $region26: #{_lambda_.10} parent=0 // pred_check
    _
  $region27: #{_lambda_.10} parent=0 // pred_check_branch
    %488 = sbr.rel (0) target = $region29
  $region28: #{_lambda_.10} parent=0 // pred_region
    _
  $region29: #{_lambda_.10} parent=0 // pred_fallthru
    _
  // Predicated region
  $region30: #{_lambda_.10} parent=0 // pred_check
    _
  $region31: #{_lambda_.10} parent=0 // pred_check_branch
    %490 = sbr.rel (0) target = $region33
  $region32: #{_lambda_.10} parent=0 // pred_region
    _
  $region33: #{_lambda_.10} parent=0 // pred_fallthru
    _

// kernel: _lambda_.12
$region0: #{_lambda_.12}
  #allocation0 [shape = 'u32[]', space=smem, size = 0x4, offset = 0x4, fixed_abs, tag = 'smem constant byte address 0x4 - core index']
  #allocation1 [shape = 'u32[72,128]{1,0:T(1,128)}', space=vmem, size = 0x9000, scoped, tag = 'internal scratch']
  %s0 = inlined_call_operand.vmem [shape: bf16[128,512], index: 0, kind: input, shape index: {}]
  %s1 = inlined_call_operand.vmem [shape: bf16[512,128], index: 1, kind: input, shape index: {}]
  %s2 = inlined_call_operand.vmem [shape: f32[128,128], index: 2, kind: output, shape index: {0}]
  %s3 = inlined_call_operand.vmem [shape: f32[1,2,128], index: 3, kind: output, shape index: {1}]
  %4 = xla_tuple %s2, %s3
  %s5 = sld [smem:[#allocation0]]
  $region34: #{_lambda_.12} parent=0
    _
  %s7 = ssub.s32 1, %s5
  %s8 = scalar_select 0, %s7, %s5
  // Predicated region
  $region2: #{_lambda_.12} parent=0 // pred_check
    _
  $region3: #{_lambda_.12} parent=0 // pred_check_branch
    %10 = sbr.rel (0) target = $region5
  $region4: #{_lambda_.12} parent=0 // pred_region
    _
  $region5: #{_lambda_.12} parent=0 // pred_fallthru
    _
  // Predicated region
  $region6: #{_lambda_.12} parent=0 // pred_check
    _
  $region7: #{_lambda_.12} parent=0 // pred_check_branch
    %12 = sbr.rel (0) target = $region9
  $region8: #{_lambda_.12} parent=0 // pred_region
    _
  $region9: #{_lambda_.12} parent=0 // pred_fallthru
    _
  %p13 = scmp.eq.s32.totalorder 0, 0
  // Predicated region
  $region10: #{_lambda_.12} parent=0 // pred_check
    %p14 = pneg %p13
  $region11: #{_lambda_.12} parent=0 // pred_check_branch
    %16 = sbr.rel (%p14) target = $region13
  $region12: #{_lambda_.12} parent=0 // pred_region
    %17 = vst [vmem:[%s2] sm:$0xff] 0.0
    %18 = vst [vmem:[%s2 + $0x8] sm:$0xff] 0.0
    %19 = vst [vmem:[%s2 + $0x10] sm:$0xff] 0.0
    %20 = vst [vmem:[%s2 + $0x18] sm:$0xff] 0.0
    %21 = vst [vmem:[%s2 + $0x20] sm:$0xff] 0.0
    %22 = vst [vmem:[%s2 + $0x28] sm:$0xff] 0.0
    %23 = vst [vmem:[%s2 + $0x30] sm:$0xff] 0.0
    %24 = vst [vmem:[%s2 + $0x38] sm:$0xff] 0.0
    %25 = vst [vmem:[%s2 + $0x40] sm:$0xff] 0.0
    %26 = vst [vmem:[%s2 + $0x48] sm:$0xff] 0.0
    %27 = vst [vmem:[%s2 + $0x50] sm:$0xff] 0.0
    %28 = vst [vmem:[%s2 + $0x58] sm:$0xff] 0.0
    %29 = vst [vmem:[%s2 + $0x60] sm:$0xff] 0.0
    %30 = vst [vmem:[%s2 + $0x68] sm:$0xff] 0.0
    %31 = vst [vmem:[%s2 + $0x70] sm:$0xff] 0.0
    %32 = vst [vmem:[%s2 + $0x78] sm:$0xff] 0.0
  $region13: #{_lambda_.12} parent=0 // pred_fallthru
    _
  %v33 = vld [vmem:[%s2] sm:$0xff]
  %v34 = vld [vmem:[%s2 + $0x8] sm:$0xff]
  %v35 = vld [vmem:[%s2 + $0x10] sm:$0xff]
  %v36 = vld [vmem:[%s2 + $0x18] sm:$0xff]
  %v37 = vld [vmem:[%s2 + $0x20] sm:$0xff]
  %v38 = vld [vmem:[%s2 + $0x28] sm:$0xff]
  %v39 = vld [vmem:[%s2 + $0x30] sm:$0xff]
  %v40 = vld [vmem:[%s2 + $0x38] sm:$0xff]
  %v41 = vld [vmem:[%s2 + $0x40] sm:$0xff]
  %v42 = vld [vmem:[%s2 + $0x48] sm:$0xff]
  %v43 = vld [vmem:[%s2 + $0x50] sm:$0xff]
  %v44 = vld [vmem:[%s2 + $0x58] sm:$0xff]
  %v45 = vld [vmem:[%s2 + $0x60] sm:$0xff]
  %v46 = vld [vmem:[%s2 + $0x68] sm:$0xff]
  %v47 = vld [vmem:[%s2 + $0x70] sm:$0xff]
  %v48 = vld [vmem:[%s2 + $0x78] sm:$0xff]
  %v49 = vld [vmem:[%s0] sm:$0xff]
  %v50 = vld [vmem:[%s0 + $0x8] sm:$0xff]
  %v51 = vld [vmem:[%s0 + $0x10] sm:$0xff]
  %v52 = vld [vmem:[%s0 + $0x18] sm:$0xff]
  %v53 = vld [vmem:[%s0 + $0x20] sm:$0xff]
  %v54 = vld [vmem:[%s0 + $0x28] sm:$0xff]
  %v55 = vld [vmem:[%s0 + $0x30] sm:$0xff]
  %v56 = vld [vmem:[%s0 + $0x38] sm:$0xff]
  %v57 = vld [vmem:[%s0 + $0x40] sm:$0xff]
  %v58 = vld [vmem:[%s0 + $0x48] sm:$0xff]
  %v59 = vld [vmem:[%s0 + $0x50] sm:$0xff]
  %v60 = vld [vmem:[%s0 + $0x58] sm:$0xff]
  %v61 = vld [vmem:[%s0 + $0x60] sm:$0xff]
  %v62 = vld [vmem:[%s0 + $0x68] sm:$0xff]
  %v63 = vld [vmem:[%s0 + $0x70] sm:$0xff]
  %v64 = vld [vmem:[%s0 + $0x78] sm:$0xff]
  %v65 = vld [vmem:[%s0 + $0x80] sm:$0xff]
  %v66 = vld [vmem:[%s0 + $0x88] sm:$0xff]
  %v67 = vld [vmem:[%s0 + $0x90] sm:$0xff]
  %v68 = vld [vmem:[%s0 + $0x98] sm:$0xff]
  %v69 = vld [vmem:[%s0 + $0xa0] sm:$0xff]
  %v70 = vld [vmem:[%s0 + $0xa8] sm:$0xff]
  %v71 = vld [vmem:[%s0 + $0xb0] sm:$0xff]
  %v72 = vld [vmem:[%s0 + $0xb8] sm:$0xff]
  %v73 = vld [vmem:[%s0 + $0xc0] sm:$0xff]
  %v74 = vld [vmem:[%s0 + $0xc8] sm:$0xff]
  %v75 = vld [vmem:[%s0 + $0xd0] sm:$0xff]
  %v76 = vld [vmem:[%s0 + $0xd8] sm:$0xff]
  %v77 = vld [vmem:[%s0 + $0xe0] sm:$0xff]
  %v78 = vld [vmem:[%s0 + $0xe8] sm:$0xff]
  %v79 = vld [vmem:[%s0 + $0xf0] sm:$0xff]
  %v80 = vld [vmem:[%s0 + $0xf8] sm:$0xff]
  %v81 = vld [vmem:[%s1] sm:$0xf]
  %v82 = vld [vmem:[%s1 + $0x4] sm:$0xf]
  %v83 = vld [vmem:[%s1 + $0x8] sm:$0xf]
  %v84 = vld [vmem:[%s1 + $0xc] sm:$0xf]
  %v85 = vld [vmem:[%s1 + $0x10] sm:$0xf]
  %v86 = vld [vmem:[%s1 + $0x14] sm:$0xf]
  %v87 = vld [vmem:[%s1 + $0x18] sm:$0xf]
  %v88 = vld [vmem:[%s1 + $0x1c] sm:$0xf]
  %v89 = vld [vmem:[%s1 + $0x20] sm:$0xf]
  %v90 = vld [vmem:[%s1 + $0x24] sm:$0xf]
  %v91 = vld [vmem:[%s1 + $0x28] sm:$0xf]
  %v92 = vld [vmem:[%s1 + $0x2c] sm:$0xf]
  %v93 = vld [vmem:[%s1 + $0x30] sm:$0xf]
  %v94 = vld [vmem:[%s1 + $0x34] sm:$0xf]
  %v95 = vld [vmem:[%s1 + $0x38] sm:$0xf]
  %v96 = vld [vmem:[%s1 + $0x3c] sm:$0xf]
  %v97 = vld [vmem:[%s1 + $0x40] sm:$0xf]
  %v98 = vld [vmem:[%s1 + $0x44] sm:$0xf]
  %v99 = vld [vmem:[%s1 + $0x48] sm:$0xf]
  %v100 = vld [vmem:[%s1 + $0x4c] sm:$0xf]
  %v101 = vld [vmem:[%s1 + $0x50] sm:$0xf]
  %v102 = vld [vmem:[%s1 + $0x54] sm:$0xf]
  %v103 = vld [vmem:[%s1 + $0x58] sm:$0xf]
  %v104 = vld [vmem:[%s1 + $0x5c] sm:$0xf]
  %v105 = vld [vmem:[%s1 + $0x60] sm:$0xf]
  %v106 = vld [vmem:[%s1 + $0x64] sm:$0xf]
  %v107 = vld [vmem:[%s1 + $0x68] sm:$0xf]
  %v108 = vld [vmem:[%s1 + $0x6c] sm:$0xf]
  %v109 = vld [vmem:[%s1 + $0x70] sm:$0xf]
  %v110 = vld [vmem:[%s1 + $0x74] sm:$0xf]
  %v111 = vld [vmem:[%s1 + $0x78] sm:$0xf]
  %v112 = vld [vmem:[%s1 + $0x7c] sm:$0xf]
  %v113 = vld [vmem:[%s1 + $0x80] sm:$0xf]
  %v114 = vld [vmem:[%s1 + $0x84] sm:$0xf]
  %v115 = vld [vmem:[%s1 + $0x88] sm:$0xf]
  %v116 = vld [vmem:[%s1 + $0x8c] sm:$0xf]
  %v117 = vld [vmem:[%s1 + $0x90] sm:$0xf]
  %v118 = vld [vmem:[%s1 + $0x94] sm:$0xf]
  %v119 = vld [vmem:[%s1 + $0x98] sm:$0xf]
  %v120 = vld [vmem:[%s1 + $0x9c] sm:$0xf]
  %v121 = vld [vmem:[%s1 + $0xa0] sm:$0xf]
  %v122 = vld [vmem:[%s1 + $0xa4] sm:$0xf]
  %v123 = vld [vmem:[%s1 + $0xa8] sm:$0xf]
  %v124 = vld [vmem:[%s1 + $0xac] sm:$0xf]
  %v125 = vld [vmem:[%s1 + $0xb0] sm:$0xf]
  %v126 = vld [vmem:[%s1 + $0xb4] sm:$0xf]
  %v127 = vld [vmem:[%s1 + $0xb8] sm:$0xf]
  %v128 = vld [vmem:[%s1 + $0xbc] sm:$0xf]
  %v129 = vld [vmem:[%s1 + $0xc0] sm:$0xf]
  %v130 = vld [vmem:[%s1 + $0xc4] sm:$0xf]
  %v131 = vld [vmem:[%s1 + $0xc8] sm:$0xf]
  %v132 = vld [vmem:[%s1 + $0xcc] sm:$0xf]
  %v133 = vld [vmem:[%s1 + $0xd0] sm:$0xf]
  %v134 = vld [vmem:[%s1 + $0xd4] sm:$0xf]
  %v135 = vld [vmem:[%s1 + $0xd8] sm:$0xf]
  %v136 = vld [vmem:[%s1 + $0xdc] sm:$0xf]
  %v137 = vld [vmem:[%s1 + $0xe0] sm:$0xf]
  %v138 = vld [vmem:[%s1 + $0xe4] sm:$0xf]
  %v139 = vld [vmem:[%s1 + $0xe8] sm:$0xf]
  %v140 = vld [vmem:[%s1 + $0xec] sm:$0xf]
  %v141 = vld [vmem:[%s1 + $0xf0] sm:$0xf]
  %v142 = vld [vmem:[%s1 + $0xf4] sm:$0xf]
  %v143 = vld [vmem:[%s1 + $0xf8] sm:$0xf]
  %v144 = vld [vmem:[%s1 + $0xfc] sm:$0xf]
  %v177 = vunpack.c.l.b16 %v49
  %v178 = vunpack.c.h.b16 %v49
  %v179 = vunpack.c.l.b16 %v50
  %v180 = vunpack.c.h.b16 %v50
  %v181 = vunpack.c.l.b16 %v51
  %v182 = vunpack.c.h.b16 %v51
  %v183 = vunpack.c.l.b16 %v52
  %v184 = vunpack.c.h.b16 %v52
  %v185 = vunpack.c.l.b16 %v53
  %v186 = vunpack.c.h.b16 %v53
  %v187 = vunpack.c.l.b16 %v54
  %v188 = vunpack.c.h.b16 %v54
  %v189 = vunpack.c.l.b16 %v55
  %v190 = vunpack.c.h.b16 %v55
  %v191 = vunpack.c.l.b16 %v56
  %v192 = vunpack.c.h.b16 %v56
  %v193 = vunpack.c.l.b16 %v57
  %v194 = vunpack.c.h.b16 %v57
  %v195 = vunpack.c.l.b16 %v58
  %v196 = vunpack.c.h.b16 %v58
  %v197 = vunpack.c.l.b16 %v59
  %v198 = vunpack.c.h.b16 %v59
  %v199 = vunpack.c.l.b16 %v60
  %v200 = vunpack.c.h.b16 %v60
  %v201 = vunpack.c.l.b16 %v61
  %v202 = vunpack.c.h.b16 %v61
  %v203 = vunpack.c.l.b16 %v62
  %v204 = vunpack.c.h.b16 %v62
  %v205 = vunpack.c.l.b16 %v63
  %v206 = vunpack.c.h.b16 %v63
  %v207 = vunpack.c.l.b16 %v64
  %v208 = vunpack.c.h.b16 %v64
  %v209 = vunpack.c.l.b16 %v65
  %v210 = vunpack.c.h.b16 %v65
  %v211 = vunpack.c.l.b16 %v66
  %v212 = vunpack.c.h.b16 %v66
  %v213 = vunpack.c.l.b16 %v67
  %v214 = vunpack.c.h.b16 %v67
  %v215 = vunpack.c.l.b16 %v68
  %v216 = vunpack.c.h.b16 %v68
  %v217 = vunpack.c.l.b16 %v69
  %v218 = vunpack.c.h.b16 %v69
  %v219 = vunpack.c.l.b16 %v70
  %v220 = vunpack.c.h.b16 %v70
  %v221 = vunpack.c.l.b16 %v71
  %v222 = vunpack.c.h.b16 %v71
  %v223 = vunpack.c.l.b16 %v72
  %v224 = vunpack.c.h.b16 %v72
  %v225 = vunpack.c.l.b16 %v73
  %v226 = vunpack.c.h.b16 %v73
  %v227 = vunpack.c.l.b16 %v74
  %v228 = vunpack.c.h.b16 %v74
  %v229 = vunpack.c.l.b16 %v75
  %v230 = vunpack.c.h.b16 %v75
  %v231 = vunpack.c.l.b16 %v76
  %v232 = vunpack.c.h.b16 %v76
  %v233 = vunpack.c.l.b16 %v77
  %v234 = vunpack.c.h.b16 %v77
  %v235 = vunpack.c.l.b16 %v78
  %v236 = vunpack.c.h.b16 %v78
  %v237 = vunpack.c.l.b16 %v79
  %v238 = vunpack.c.h.b16 %v79
  %v239 = vunpack.c.l.b16 %v80
  %v240 = vunpack.c.h.b16 %v80
  %v241 = vpack.c.b16 %v181, %v177
  %v242 = vpack.c.b16 %v182, %v178
  %v243 = vpack.c.b16 %v183, %v179
  %v244 = vpack.c.b16 %v184, %v180
  %v245 = vpack.c.b16 %v189, %v185
  %v246 = vpack.c.b16 %v190, %v186
  %v247 = vpack.c.b16 %v191, %v187
  %v248 = vpack.c.b16 %v192, %v188
  %v249 = vpack.c.b16 %v197, %v193
  %v250 = vpack.c.b16 %v198, %v194
  %v251 = vpack.c.b16 %v199, %v195
  %v252 = vpack.c.b16 %v200, %v196
  %v253 = vpack.c.b16 %v205, %v201
  %v254 = vpack.c.b16 %v206, %v202
  %v255 = vpack.c.b16 %v207, %v203
  %v256 = vpack.c.b16 %v208, %v204
  %v257 = vpack.c.b16 %v213, %v209
  %v258 = vpack.c.b16 %v214, %v210
  %v259 = vpack.c.b16 %v215, %v211
  %v260 = vpack.c.b16 %v216, %v212
  %v261 = vpack.c.b16 %v221, %v217
  %v262 = vpack.c.b16 %v222, %v218
  %v263 = vpack.c.b16 %v223, %v219
  %v264 = vpack.c.b16 %v224, %v220
  %v265 = vpack.c.b16 %v229, %v225
  %v266 = vpack.c.b16 %v230, %v226
  %v267 = vpack.c.b16 %v231, %v227
  %v268 = vpack.c.b16 %v232, %v228
  %v269 = vpack.c.b16 %v237, %v233
  %v270 = vpack.c.b16 %v238, %v234
  %v271 = vpack.c.b16 %v239, %v235
  %v272 = vpack.c.b16 %v240, %v236
  %v369 = vunpack.c.l.b16 %v81
  %v370 = vunpack.c.l.b16 %v82
  %v371 = vunpack.c.l.b16 %v83
  %v372 = vunpack.c.l.b16 %v84
  %v373 = vunpack.c.l.b16 %v85
  %v374 = vunpack.c.l.b16 %v86
  %v375 = vunpack.c.l.b16 %v87
  %v376 = vunpack.c.l.b16 %v88
  %v377 = vunpack.c.l.b16 %v89
  %v378 = vunpack.c.l.b16 %v90
  %v379 = vunpack.c.l.b16 %v91
  %v380 = vunpack.c.l.b16 %v92
  %v381 = vunpack.c.l.b16 %v93
  %v382 = vunpack.c.l.b16 %v94
  %v383 = vunpack.c.l.b16 %v95
  %v384 = vunpack.c.l.b16 %v96
  %v385 = vunpack.c.l.b16 %v97
  %v386 = vunpack.c.l.b16 %v98
  %v387 = vunpack.c.l.b16 %v99
  %v388 = vunpack.c.l.b16 %v100
  %v389 = vunpack.c.l.b16 %v101
  %v390 = vunpack.c.l.b16 %v102
  %v391 = vunpack.c.l.b16 %v103
  %v392 = vunpack.c.l.b16 %v104
  %v393 = vunpack.c.l.b16 %v105
  %v394 = vunpack.c.l.b16 %v106
  %v395 = vunpack.c.l.b16 %v107
  %v396 = vunpack.c.l.b16 %v108
  %v397 = vunpack.c.l.b16 %v109
  %v398 = vunpack.c.l.b16 %v110
  %v399 = vunpack.c.l.b16 %v111
  %v400 = vunpack.c.l.b16 %v112
  %v401 = vunpack.c.l.b16 %v113
  %v402 = vunpack.c.l.b16 %v114
  %v403 = vunpack.c.l.b16 %v115
  %v404 = vunpack.c.l.b16 %v116
  %v405 = vunpack.c.l.b16 %v117
  %v406 = vunpack.c.l.b16 %v118
  %v407 = vunpack.c.l.b16 %v119
  %v408 = vunpack.c.l.b16 %v120
  %v409 = vunpack.c.l.b16 %v121
  %v410 = vunpack.c.l.b16 %v122
  %v411 = vunpack.c.l.b16 %v123
  %v412 = vunpack.c.l.b16 %v124
  %v413 = vunpack.c.l.b16 %v125
  %v414 = vunpack.c.l.b16 %v126
  %v415 = vunpack.c.l.b16 %v127
  %v416 = vunpack.c.l.b16 %v128
  %v417 = vunpack.c.l.b16 %v129
  %v418 = vunpack.c.l.b16 %v130
  %v419 = vunpack.c.l.b16 %v131
  %v420 = vunpack.c.l.b16 %v132
  %v421 = vunpack.c.l.b16 %v133
  %v422 = vunpack.c.l.b16 %v134
  %v423 = vunpack.c.l.b16 %v135
  %v424 = vunpack.c.l.b16 %v136
  %v425 = vunpack.c.l.b16 %v137
  %v426 = vunpack.c.l.b16 %v138
  %v427 = vunpack.c.l.b16 %v139
  %v428 = vunpack.c.l.b16 %v140
  %v429 = vunpack.c.l.b16 %v141
  %v430 = vunpack.c.l.b16 %v142
  %v431 = vunpack.c.l.b16 %v143
  %v432 = vunpack.c.l.b16 %v144
  %v433 = vpack.c.b16 %v370, %v369
  %v434 = vpack.c.b16 %v372, %v371
  %v435 = vpack.c.b16 %v374, %v373
  %v436 = vpack.c.b16 %v376, %v375
  %v437 = vpack.c.b16 %v378, %v377
  %v438 = vpack.c.b16 %v380, %v379
  %v439 = vpack.c.b16 %v382, %v381
  %v440 = vpack.c.b16 %v384, %v383
  %v441 = vpack.c.b16 %v386, %v385
  %v442 = vpack.c.b16 %v388, %v387
  %v443 = vpack.c.b16 %v390, %v389
  %v444 = vpack.c.b16 %v392, %v391
  %v445 = vpack.c.b16 %v394, %v393
  %v446 = vpack.c.b16 %v396, %v395
  %v447 = vpack.c.b16 %v398, %v397
  %v448 = vpack.c.b16 %v400, %v399
  %v449 = vpack.c.b16 %v402, %v401
  %v450 = vpack.c.b16 %v404, %v403
  %v451 = vpack.c.b16 %v406, %v405
  %v452 = vpack.c.b16 %v408, %v407
  %v453 = vpack.c.b16 %v410, %v409
  %v454 = vpack.c.b16 %v412, %v411
  %v455 = vpack.c.b16 %v414, %v413
  %v456 = vpack.c.b16 %v416, %v415
  %v457 = vpack.c.b16 %v418, %v417
  %v458 = vpack.c.b16 %v420, %v419
  %v459 = vpack.c.b16 %v422, %v421
  %v460 = vpack.c.b16 %v424, %v423
  %v461 = vpack.c.b16 %v426, %v425
  %v462 = vpack.c.b16 %v428, %v427
  %v463 = vpack.c.b16 %v430, %v429
  %v464 = vpack.c.b16 %v432, %v431
  %497 = vmatpush.bf16.msra.mxu0 %v440
  %498 = vmatpush.bf16.msra.mxu0 %v439
  %499 = vmatpush.bf16.msra.mxu0 %v438
  %500 = vmatpush.bf16.msra.mxu0 %v437
  %501 = vmatpush.bf16.msra.mxu0 %v436
  %502 = vmatpush.bf16.msra.mxu0 %v435
  %503 = vmatpush.bf16.msra.mxu0 %v434
  %504 = vmatpush.bf16.msra.mxu0 %v433
  %505 = vmatmul.bf16.gmra.mxu0 %v241
  %v506 = vpop.f32.mrf.mxu0
  %v507 = vadd.f32 0.0, %v506
  %v508 = vpop.f32.mrf.mxu0
  %v509 = vadd.f32 0.0, %v508
  %510 = vmatmul.bf16.gmra.mxu0 %v245
  %v511 = vpop.f32.mrf.mxu0
  %v512 = vadd.f32 0.0, %v511
  %v513 = vpop.f32.mrf.mxu0
  %v514 = vadd.f32 0.0, %v513
  %515 = vmatmul.bf16.gmra.mxu0 %v249
  %v516 = vpop.f32.mrf.mxu0
  %v517 = vadd.f32 0.0, %v516
  %v518 = vpop.f32.mrf.mxu0
  %v519 = vadd.f32 0.0, %v518
  %520 = vmatmul.bf16.gmra.mxu0 %v253
  %v521 = vpop.f32.mrf.mxu0
  %v522 = vadd.f32 0.0, %v521
  %v523 = vpop.f32.mrf.mxu0
  %v524 = vadd.f32 0.0, %v523
  %525 = vmatmul.bf16.gmra.mxu0 %v257
  %v526 = vpop.f32.mrf.mxu0
  %v527 = vadd.f32 0.0, %v526
  %v528 = vpop.f32.mrf.mxu0
  %v529 = vadd.f32 0.0, %v528
  %530 = vmatmul.bf16.gmra.mxu0 %v261
  %v531 = vpop.f32.mrf.mxu0
  %v532 = vadd.f32 0.0, %v531
  %v533 = vpop.f32.mrf.mxu0
  %v534 = vadd.f32 0.0, %v533
  %535 = vmatmul.bf16.gmra.mxu0 %v265
  %v536 = vpop.f32.mrf.mxu0
  %v537 = vadd.f32 0.0, %v536
  %v538 = vpop.f32.mrf.mxu0
  %v539 = vadd.f32 0.0, %v538
  %540 = vmatmul.bf16.gmra.mxu0 %v269
  %v541 = vpop.f32.mrf.mxu0
  %v542 = vadd.f32 0.0, %v541
  %v543 = vpop.f32.mrf.mxu0
  %v544 = vadd.f32 0.0, %v543
  %545 = vdwg.mxu0
  %546 = vmatpush.bf16.msra.mxu0 %v448
  %547 = vmatpush.bf16.msra.mxu0 %v447
  %548 = vmatpush.bf16.msra.mxu0 %v446
  %549 = vmatpush.bf16.msra.mxu0 %v445
  %550 = vmatpush.bf16.msra.mxu0 %v444
  %551 = vmatpush.bf16.msra.mxu0 %v443
  %552 = vmatpush.bf16.msra.mxu0 %v442
  %553 = vmatpush.bf16.msra.mxu0 %v441
  %554 = vmatmul.bf16.gmra.mxu0 %v242
  %v555 = vpop.f32.mrf.mxu0
  %v556 = vadd.f32 %v507, %v555
  %v557 = vpop.f32.mrf.mxu0
  %v558 = vadd.f32 %v509, %v557
  %559 = vmatmul.bf16.gmra.mxu0 %v246
  %v560 = vpop.f32.mrf.mxu0
  %v561 = vadd.f32 %v512, %v560
  %v562 = vpop.f32.mrf.mxu0
  %v563 = vadd.f32 %v514, %v562
  %564 = vmatmul.bf16.gmra.mxu0 %v250
  %v565 = vpop.f32.mrf.mxu0
  %v566 = vadd.f32 %v517, %v565
  %v567 = vpop.f32.mrf.mxu0
  %v568 = vadd.f32 %v519, %v567
  %569 = vmatmul.bf16.gmra.mxu0 %v254
  %v570 = vpop.f32.mrf.mxu0
  %v571 = vadd.f32 %v522, %v570
  %v572 = vpop.f32.mrf.mxu0
  %v573 = vadd.f32 %v524, %v572
  %574 = vmatmul.bf16.gmra.mxu0 %v258
  %v575 = vpop.f32.mrf.mxu0
  %v576 = vadd.f32 %v527, %v575
  %v577 = vpop.f32.mrf.mxu0
  %v578 = vadd.f32 %v529, %v577
  %579 = vmatmul.bf16.gmra.mxu0 %v262
  %v580 = vpop.f32.mrf.mxu0
  %v581 = vadd.f32 %v532, %v580
  %v582 = vpop.f32.mrf.mxu0
  %v583 = vadd.f32 %v534, %v582
  %584 = vmatmul.bf16.gmra.mxu0 %v266
  %v585 = vpop.f32.mrf.mxu0
  %v586 = vadd.f32 %v537, %v585
  %v587 = vpop.f32.mrf.mxu0
  %v588 = vadd.f32 %v539, %v587
  %589 = vmatmul.bf16.gmra.mxu0 %v270
  %v590 = vpop.f32.mrf.mxu0
  %v591 = vadd.f32 %v542, %v590
  %v592 = vpop.f32.mrf.mxu0
  %v593 = vadd.f32 %v544, %v592
  %594 = vdwg.mxu0
  %595 = vmatpush.bf16.msra.mxu0 %v456
  %596 = vmatpush.bf16.msra.mxu0 %v455
  %597 = vmatpush.bf16.msra.mxu0 %v454
  %598 = vmatpush.bf16.msra.mxu0 %v453
  %599 = vmatpush.bf16.msra.mxu0 %v452
  %600 = vmatpush.bf16.msra.mxu0 %v451
  %601 = vmatpush.bf16.msra.mxu0 %v450
  %602 = vmatpush.bf16.msra.mxu0 %v449
  %603 = vmatmul.bf16.gmra.mxu0 %v243
  %v604 = vpop.f32.mrf.mxu0
  %v605 = vadd.f32 %v556, %v604
  %v606 = vpop.f32.mrf.mxu0
  %v607 = vadd.f32 %v558, %v606
  %608 = vmatmul.bf16.gmra.mxu0 %v247
  %v609 = vpop.f32.mrf.mxu0
  %v610 = vadd.f32 %v561, %v609
  %v611 = vpop.f32.mrf.mxu0
  %v612 = vadd.f32 %v563, %v611
  %613 = vmatmul.bf16.gmra.mxu0 %v251
  %v614 = vpop.f32.mrf.mxu0
  %v615 = vadd.f32 %v566, %v614
  %v616 = vpop.f32.mrf.mxu0
  %v617 = vadd.f32 %v568, %v616
  %618 = vmatmul.bf16.gmra.mxu0 %v255
  %v619 = vpop.f32.mrf.mxu0
  %v620 = vadd.f32 %v571, %v619
  %v621 = vpop.f32.mrf.mxu0
  %v622 = vadd.f32 %v573, %v621
  %623 = vmatmul.bf16.gmra.mxu0 %v259
  %v624 = vpop.f32.mrf.mxu0
  %v625 = vadd.f32 %v576, %v624
  %v626 = vpop.f32.mrf.mxu0
  %v627 = vadd.f32 %v578, %v626
  %628 = vmatmul.bf16.gmra.mxu0 %v263
  %v629 = vpop.f32.mrf.mxu0
  %v630 = vadd.f32 %v581, %v629
  %v631 = vpop.f32.mrf.mxu0
  %v632 = vadd.f32 %v583, %v631
  %633 = vmatmul.bf16.gmra.mxu0 %v267
  %v634 = vpop.f32.mrf.mxu0
  %v635 = vadd.f32 %v586, %v634
  %v636 = vpop.f32.mrf.mxu0
  %v637 = vadd.f32 %v588, %v636
  %638 = vmatmul.bf16.gmra.mxu0 %v271
  %v639 = vpop.f32.mrf.mxu0
  %v640 = vadd.f32 %v591, %v639
  %v641 = vpop.f32.mrf.mxu0
  %v642 = vadd.f32 %v593, %v641
  %643 = vdwg.mxu0
  %644 = vmatpush.bf16.msra.mxu0 %v464
  %645 = vmatpush.bf16.msra.mxu0 %v463
  %646 = vmatpush.bf16.msra.mxu0 %v462
  %647 = vmatpush.bf16.msra.mxu0 %v461
  %648 = vmatpush.bf16.msra.mxu0 %v460
  %649 = vmatpush.bf16.msra.mxu0 %v459
  %650 = vmatpush.bf16.msra.mxu0 %v458
  %651 = vmatpush.bf16.msra.mxu0 %v457
  %652 = vmatmul.bf16.gmra.mxu0 %v244
  %v653 = vpop.f32.mrf.mxu0
  %v654 = vadd.f32 %v605, %v653
  %v655 = vpop.f32.mrf.mxu0
  %v656 = vadd.f32 %v607, %v655
  %657 = vmatmul.bf16.gmra.mxu0 %v248
  %v658 = vpop.f32.mrf.mxu0
  %v659 = vadd.f32 %v610, %v658
  %v660 = vpop.f32.mrf.mxu0
  %v661 = vadd.f32 %v612, %v660
  %662 = vmatmul.bf16.gmra.mxu0 %v252
  %v663 = vpop.f32.mrf.mxu0
  %v664 = vadd.f32 %v615, %v663
  %v665 = vpop.f32.mrf.mxu0
  %v666 = vadd.f32 %v617, %v665
  %667 = vmatmul.bf16.gmra.mxu0 %v256
  %v668 = vpop.f32.mrf.mxu0
  %v669 = vadd.f32 %v620, %v668
  %v670 = vpop.f32.mrf.mxu0
  %v671 = vadd.f32 %v622, %v670
  %672 = vmatmul.bf16.gmra.mxu0 %v260
  %v673 = vpop.f32.mrf.mxu0
  %v674 = vadd.f32 %v625, %v673
  %v675 = vpop.f32.mrf.mxu0
  %v676 = vadd.f32 %v627, %v675
  %677 = vmatmul.bf16.gmra.mxu0 %v264
  %v678 = vpop.f32.mrf.mxu0
  %v679 = vadd.f32 %v630, %v678
  %v680 = vpop.f32.mrf.mxu0
  %v681 = vadd.f32 %v632, %v680
  %682 = vmatmul.bf16.gmra.mxu0 %v268
  %v683 = vpop.f32.mrf.mxu0
  %v684 = vadd.f32 %v635, %v683
  %v685 = vpop.f32.mrf.mxu0
  %v686 = vadd.f32 %v637, %v685
  %687 = vmatmul.bf16.gmra.mxu0 %v272
  %v688 = vpop.f32.mrf.mxu0
  %v689 = vadd.f32 %v640, %v688
  %v690 = vpop.f32.mrf.mxu0
  %v691 = vadd.f32 %v642, %v690
  %692 = vdwg.mxu0
  %v693 = vadd.f32 %v33, %v654
  %v694 = vadd.f32 %v34, %v656
  %v695 = vadd.f32 %v35, %v659
  %v696 = vadd.f32 %v36, %v661
  %v697 = vadd.f32 %v37, %v664
  %v698 = vadd.f32 %v38, %v666
  %v699 = vadd.f32 %v39, %v669
  %v700 = vadd.f32 %v40, %v671
  %v701 = vadd.f32 %v41, %v674
  %v702 = vadd.f32 %v42, %v676
  %v703 = vadd.f32 %v43, %v679
  %v704 = vadd.f32 %v44, %v681
  %v705 = vadd.f32 %v45, %v684
  %v706 = vadd.f32 %v46, %v686
  %v707 = vadd.f32 %v47, %v689
  %v708 = vadd.f32 %v48, %v691
  %709 = vst [vmem:[%s2] sm:$0xff] %v693
  %710 = vst [vmem:[%s2 + $0x8] sm:$0xff] %v694
  %711 = vst [vmem:[%s2 + $0x10] sm:$0xff] %v695
  %712 = vst [vmem:[%s2 + $0x18] sm:$0xff] %v696
  %713 = vst [vmem:[%s2 + $0x20] sm:$0xff] %v697
  %714 = vst [vmem:[%s2 + $0x28] sm:$0xff] %v698
  %715 = vst [vmem:[%s2 + $0x30] sm:$0xff] %v699
  %716 = vst [vmem:[%s2 + $0x38] sm:$0xff] %v700
  %717 = vst [vmem:[%s2 + $0x40] sm:$0xff] %v701
  %718 = vst [vmem:[%s2 + $0x48] sm:$0xff] %v702
  %719 = vst [vmem:[%s2 + $0x50] sm:$0xff] %v703
  %720 = vst [vmem:[%s2 + $0x58] sm:$0xff] %v704
  %721 = vst [vmem:[%s2 + $0x60] sm:$0xff] %v705
  %722 = vst [vmem:[%s2 + $0x68] sm:$0xff] %v706
  %723 = vst [vmem:[%s2 + $0x70] sm:$0xff] %v707
  %724 = vst [vmem:[%s2 + $0x78] sm:$0xff] %v708
  // Predicated region
  $region14: #{_lambda_.12} parent=0 // pred_check
    %p725 = pneg %p13
  $region15: #{_lambda_.12} parent=0 // pred_check_branch
    %727 = sbr.rel (%p725) target = $region17
  $region16: #{_lambda_.12} parent=0 // pred_region
    %v728 = vld [vmem:[%s2] sm:$0xff]
    %v729 = vld [vmem:[%s2 + $0x8] sm:$0xff]
    %v730 = vld [vmem:[%s2 + $0x10] sm:$0xff]
    %v731 = vld [vmem:[%s2 + $0x18] sm:$0xff]
    %v732 = vld [vmem:[%s2 + $0x20] sm:$0xff]
    %v733 = vld [vmem:[%s2 + $0x28] sm:$0xff]
    %v734 = vld [vmem:[%s2 + $0x30] sm:$0xff]
    %v735 = vld [vmem:[%s2 + $0x38] sm:$0xff]
    %v736 = vld [vmem:[%s2 + $0x40] sm:$0xff]
    %v737 = vld [vmem:[%s2 + $0x48] sm:$0xff]
    %v738 = vld [vmem:[%s2 + $0x50] sm:$0xff]
    %v739 = vld [vmem:[%s2 + $0x58] sm:$0xff]
    %v740 = vld [vmem:[%s2 + $0x60] sm:$0xff]
    %v741 = vld [vmem:[%s2 + $0x68] sm:$0xff]
    %v742 = vld [vmem:[%s2 + $0x70] sm:$0xff]
    %v743 = vld [vmem:[%s2 + $0x78] sm:$0xff]
    %v744 = vadd.f32 %v728, %v729
    %v745 = vadd.f32 %v744, %v730
    %v746 = vadd.f32 %v745, %v731
    %v747 = vadd.f32 %v746, %v732
    %v748 = vadd.f32 %v747, %v733
    %v749 = vadd.f32 %v748, %v734
    %v750 = vadd.f32 %v749, %v735
    %v751 = vadd.f32 %v750, %v736
    %v752 = vadd.f32 %v751, %v737
    %v753 = vadd.f32 %v752, %v738
    %v754 = vadd.f32 %v753, %v739
    %v755 = vadd.f32 %v754, %v740
    %v756 = vadd.f32 %v755, %v741
    %v757 = vadd.f32 %v756, %v742
    %v758 = vadd.f32 %v757, %v743
    %v759 = vrot.slane %v758, 4
    %v760 = vadd.f32 %v758, %v759
    %v761 = vrot.slane %v760, 2
    %v762 = vadd.f32 %v760, %v761
    %v763 = vrot.slane %v762, 1
    %v764 = vadd.f32 %v762, %v763
    %v765 = vmul.f32 %v728, %v728
    %v766 = vmul.f32 %v729, %v729
    %v767 = vmul.f32 %v730, %v730
    %v768 = vmul.f32 %v731, %v731
    %v769 = vmul.f32 %v732, %v732
    %v770 = vmul.f32 %v733, %v733
    %v771 = vmul.f32 %v734, %v734
    %v772 = vmul.f32 %v735, %v735
    %v773 = vmul.f32 %v736, %v736
    %v774 = vmul.f32 %v737, %v737
    %v775 = vmul.f32 %v738, %v738
    %v776 = vmul.f32 %v739, %v739
    %v777 = vmul.f32 %v740, %v740
    %v778 = vmul.f32 %v741, %v741
    %v779 = vmul.f32 %v742, %v742
    %v780 = vmul.f32 %v743, %v743
    %v781 = vadd.f32 %v765, %v766
    %v782 = vadd.f32 %v781, %v767
    %v783 = vadd.f32 %v782, %v768
    %v784 = vadd.f32 %v783, %v769
    %v785 = vadd.f32 %v784, %v770
    %v786 = vadd.f32 %v785, %v771
    %v787 = vadd.f32 %v786, %v772
    %v788 = vadd.f32 %v787, %v773
    %v789 = vadd.f32 %v788, %v774
    %v790 = vadd.f32 %v789, %v775
    %v791 = vadd.f32 %v790, %v776
    %v792 = vadd.f32 %v791, %v777
    %v793 = vadd.f32 %v792, %v778
    %v794 = vadd.f32 %v793, %v779
    %v795 = vadd.f32 %v794, %v780
    %v796 = vrot.slane %v795, 4
    %v797 = vadd.f32 %v795, %v796
    %v798 = vrot.slane %v797, 2
    %v799 = vadd.f32 %v797, %v798
    %v800 = vrot.slane %v799, 1
    %v801 = vadd.f32 %v799, %v800
    %vm802 = vcmask 1040384
    %v803 = vsel %vm802, %v764, %v801
    %804 = vst [vmem:[%s3] sm:$0x3] %v803
  $region17: #{_lambda_.12} parent=0 // pred_fallthru
    _
  // Predicated region
  $region18: #{_lambda_.12} parent=0 // pred_check
    _
  $region19: #{_lambda_.12} parent=0 // pred_check_branch
    %806 = sbr.rel (0) target = $region21
  $region20: #{_lambda_.12} parent=0 // pred_region
    _
  $region21: #{_lambda_.12} parent=0 // pred_fallthru
    _
  // Predicated region
  $region22: #{_lambda_.12} parent=0 // pred_check
    _
  $region23: #{_lambda_.12} parent=0 // pred_check_branch
    %808 = sbr.rel (0) target = $region25
  $region24: #{_lambda_.12} parent=0 // pred_region
    _
  $region25: #{_lambda_.12} parent=0 // pred_fallthru
    _
  // Predicated region
  $region26: #{_lambda_.12} parent=0 // pred_check
    _
  $region27: #{_lambda_.12} parent=0 // pred_check_branch
    %810 = sbr.rel (0) target = $region29
  $region28: #{_lambda_.12} parent=0 // pred_region
    _
  $region29: #{_lambda_.12} parent=0 // pred_fallthru
    _
  // Predicated region
  $region30: #{_lambda_.12} parent=0 // pred_check
    _
  $region31: #{_lambda_.12} parent=0 // pred_check_branch
    %812 = sbr.rel (0) target = $region33
  $region32: #{_lambda_.12} parent=0 // pred_region
    _
  $region33: #{_lambda_.12} parent=0 // pred_fallthru
    _

</llo_original>
